<compile_context>
chip_gen: v7x
topology: tpu7x:2x2x1
jax: 0.10.0
libtpu: 0.0.40
codegen_flags: <defaults>
</compile_context>

<pallas_src>
import math
import functools

import jax
import jax.numpy as jnp
from jax import lax
from jax.experimental import pallas as pl
from jax.experimental.pallas import tpu as pltpu


# ------------------------------ fused layer kernel ------------------------------


def _tts_layer_kernel(
    x_ref,       # (BB*S, H)        activations
    wqkv_ref,    # (H, 2H+3*kvH)    bf16  [wq*scale | wq*scale@R | wk | wk@R | wv]
    wo_ref,      # (H, H)           bf16
    wgu_ref,     # (H, 2I)          bf16  [w_gate | w_up]
    wd_ref,      # (I, H)           bf16
    ln1_ref,     # (1, H)  f32      self_attn_layer_norm weight
    ln2_ref,     # (1, H)  f32      final_layer_norm weight
    ropeq_ref,   # (2, S, H)  f32   [cos ; sin] tiled per query head (lane-dense)
    ropek_ref,   # (2, S, kvH) f32  [cos ; sin] tiled per kv head
    o_ref,       # (BB*S, H)
    *,
    num_heads,
    num_kv_heads,
    eps,
):
    S = ropeq_ref.shape[1]
    H = x_ref.shape[1]
    R = x_ref.shape[0]
    BB = R // S                           # batch elements folded into this block
    D = H // num_heads
    groups = num_heads // num_kv_heads
    kvH = num_kv_heads * D

    x = x_ref[...].astype(jnp.float32)    # residual kept in f32
    x_bf = x.astype(jnp.bfloat16)

    # ---- fused projection: q | rotate_half(q) | k | rotate_half(k) | v (one MXU pass) ----
    proj = jnp.dot(x_bf, wqkv_ref[...], preferred_element_type=jnp.float32)  # (R, 2H+3kvH)

    cos_q = ropeq_ref[0]
    sin_q = ropeq_ref[1]
    cos_k = ropek_ref[0]
    sin_k = ropek_ref[1]

    # causal mask bias, built once (hoisted out of the head / batch loops)
    rows = groups * S
    q_pos = lax.broadcasted_iota(jnp.int32, (rows, S), 0) % S
    k_pos = lax.broadcasted_iota(jnp.int32, (rows, S), 1)
    mask_bias = jnp.where(k_pos <= q_pos, jnp.float32(0.0), jnp.float32(-1e30))

    # ---- attention (per batch element; GQA query heads of a group stacked along rows) ----
    attn_rows = []
    for b in range(BB):
        r0 = b * S
        q_b = proj[r0:r0 + S, 0:H]
        q_rh = proj[r0:r0 + S, H:2 * H]
        k_b = proj[r0:r0 + S, 2 * H:2 * H + kvH]
        k_rh = proj[r0:r0 + S, 2 * H + kvH:2 * H + 2 * kvH]
        v_b = proj[r0:r0 + S, 2 * H + 2 * kvH:].astype(jnp.bfloat16)

        # lane-dense RoPE: y = x*cos + rotate_half(x)*sin  (signs live inside the R columns,
        # softmax scale already folded into wq)
        q_rot = q_b * cos_q + q_rh * sin_q               # (S, H)  f32
        k_rot = k_b * cos_k + k_rh * sin_k               # (S, kvH) f32

        acc_b = jnp.zeros((S, H), jnp.float32)
        for g in range(num_kv_heads):
            c0 = g * D
            k_g = k_rot[:, c0:c0 + D].astype(jnp.bfloat16)       # (S, D)
            v_g = v_b[:, c0:c0 + D]                              # (S, D) bf16

            q_stack = jnp.concatenate(
                [q_rot[:, h * D:(h + 1) * D]
                 for h in range(g * groups, (g + 1) * groups)],
                axis=0,
            ).astype(jnp.bfloat16)                               # (groups*S, D)

            # scores: contract last dims directly (no explicit K transpose)
            s = lax.dot_general(q_stack, k_g, (((1,), (1,)), ((), ())),
                                preferred_element_type=jnp.float32)     # (groups*S, S)
            s = s + mask_bias

            m = jnp.max(s, axis=-1, keepdims=True)
            p = jnp.exp(s - m)
            p = p * pl.reciprocal(jnp.sum(p, axis=-1, keepdims=True), approx=True)

            o_st = jnp.dot(p.astype(jnp.bfloat16), v_g,
                           preferred_element_type=jnp.float32)          # (groups*S, D)

            # per-head o_proj accumulation (no lane-axis head-merge concat)
            for i in range(groups):
                h = g * groups + i
                acc_b = acc_b + jnp.dot(
                    o_st[i * S:(i + 1) * S, :].astype(jnp.bfloat16),
                    wo_ref[h * D:(h + 1) * D, :],
                    preferred_element_type=jnp.float32)
        attn_rows.append(acc_b)

    attn_out = attn_rows[0] if BB == 1 else jnp.concatenate(attn_rows, axis=0)   # (R, H)

    # ---- residual + RMSNorm (self_attn_layer_norm), f32 statistics ----
    h1 = x + attn_out
    h1n = h1 * lax.rsqrt(jnp.mean(h1 * h1, axis=-1, keepdims=True) + eps) * ln1_ref[...]

    # TODO(synk): encoder cross-attention block omitted (encoder_hidden_states=None path);
    #             KV-cache outputs likewise (no-cache path).

    # ---- SwiGLU MLP: fused gate|up matmul, then down proj ----
    gu = jnp.dot(h1n.astype(jnp.bfloat16), wgu_ref[...],
                 preferred_element_type=jnp.float32)                    # (R, 2I)
    inter_dim = wgu_ref.shape[1] // 2
    inter = (jax.nn.silu(gu[:, :inter_dim]) * gu[:, inter_dim:]).astype(jnp.bfloat16)
    down = jnp.dot(inter, wd_ref[...], preferred_element_type=jnp.float32)   # (R, H)

    # ---- residual + RMSNorm (final_layer_norm) ----
    h2 = h1n + down
    out = h2 * lax.rsqrt(jnp.mean(h2 * h2, axis=-1, keepdims=True) + eps) * ln2_ref[...]

    o_ref[...] = out.astype(o_ref.dtype)


# ------------------------------ one-time weight prep ------------------------------


def prepare_layer(params, *, num_heads, num_kv_heads, seq_len, rope_theta=10000.0):
    """One-time prep (outside the per-call hot path): fuse + cast weights to bf16, fold the
    softmax scale into wq, fold rotate_half into extra projection columns, and build the
    lane-dense RoPE cos/sin tables."""
    H = params["wq"].shape[0]
    D = H // num_heads
    half = D // 2
    scale = 1.0 / math.sqrt(D)

    # block-diagonal signed permutation implementing Llama rotate_half per head
    eye = jnp.eye(half, dtype=jnp.float32)
    zero = jnp.zeros((half, half), jnp.float32)
    r_head = jnp.block([[zero, eye], [-eye, zero]])                       # (D, D)
    r_q = jnp.kron(jnp.eye(num_heads, dtype=jnp.float32), r_head)         # (H, H)
    r_k = jnp.kron(jnp.eye(num_kv_heads, dtype=jnp.float32), r_head)      # (kvH, kvH)

    wq = params["wq"].astype(jnp.float32) * scale      # fold softmax scale into wq
    wk = params["wk"].astype(jnp.float32)
    wv = params["wv"].astype(jnp.float32)
    wqkv = jnp.concatenate([wq, wq @ r_q, wk, wk @ r_k, wv], axis=1).astype(jnp.bfloat16)

    # RoPE tables (Llama convention), tiled per head so in-kernel RoPE is lane-dense
    inv_freq = 1.0 / (rope_theta ** (jnp.arange(0, D, 2, dtype=jnp.float32) / D))
    t = jnp.arange(seq_len, dtype=jnp.float32)
    freqs = jnp.outer(t, inv_freq)                                        # (S, D/2)
    cos = jnp.concatenate([jnp.cos(freqs)] * 2, axis=-1)                  # (S, D)
    sin = jnp.concatenate([jnp.sin(freqs)] * 2, axis=-1)
    ropeq = jnp.stack([jnp.tile(cos, (1, num_heads)), jnp.tile(sin, (1, num_heads))])
    ropek = jnp.stack([jnp.tile(cos, (1, num_kv_heads)), jnp.tile(sin, (1, num_kv_heads))])

    return {
        "wqkv": wqkv,
        "wo": params["wo"].astype(jnp.bfloat16),
        "wgu": jnp.concatenate([params["wg"], params["wu"]], axis=1).astype(jnp.bfloat16),
        "wd": params["wd"].astype(jnp.bfloat16),
        "ln1": params["ln_attn"].astype(jnp.float32).reshape(1, H),
        "ln2": params["ln_final"].astype(jnp.float32).reshape(1, H),
        "ropeq": ropeq,
        "ropek": ropek,
    }


# ----------------------------------- wrapper -----------------------------------


def _default_batch_blocks(batch):
    # v7x has two TensorCores per chip -> split the batch across them; v5e/v6e run the
    # grid serially on one core, so fold everything into one block (max MXU M dimension).
    try:
        kind = jax.devices()[0].device_kind.lower()
    except Exception:
        kind = ""
    if ("v7" in kind or "7x" in kind) and batch >= 2 and batch % 2 == 0:
        return 2
    return 1


def tts_adapter_layer(hidden_states, prep, *, num_heads, num_kv_heads,
                      eps=1e-6, batch_blocks=None):
    B, S, H = hidden_states.shape
    D = H // num_heads
    kvH = num_kv_heads * D
    inter2 = prep["wgu"].shape[1]

    nb = batch_blocks if batch_blocks is not None else _default_batch_blocks(B)
    if B % nb != 0:
        nb = 1
    BB = B // nb                              # batch elements folded per grid step

    x2d = hidden_states.reshape(B * S, H)     # free reshape: merges leading dims only

    kernel = functools.partial(
        _tts_layer_kernel, num_heads=num_heads, num_kv_heads=num_kv_heads, eps=eps)

    const2 = lambda i: (0, 0)
    const3 = lambda i: (0, 0, 0)
    out2d = pl.pallas_call(
        kernel,
        out_shape=jax.ShapeDtypeStruct((B * S, H), hidden_states.dtype),
        grid=(nb,),
        in_specs=[
            pl.BlockSpec((BB * S, H), lambda i: (i, 0)),            # activations
            pl.BlockSpec((H, 2 * H + 3 * kvH), const2),             # fused qkv(+rot) weight
            pl.BlockSpec((H, H), const2),                           # wo
            pl.BlockSpec((H, inter2), const2),                      # gate|up
            pl.BlockSpec((prep["wd"].shape[0], H), const2),         # down
            pl.BlockSpec((1, H), const2),                           # ln1
            pl.BlockSpec((1, H), const2),                           # ln2
            pl.BlockSpec((2, S, H), const3),                        # rope cos/sin (q)
            pl.BlockSpec((2, S, kvH), const3),                      # rope cos/sin (k)
        ],
        out_specs=pl.BlockSpec((BB * S, H), lambda i: (i, 0)),      # lane-dense output
        compiler_params=pltpu.CompilerParams(
            dimension_semantics=("parallel",),
        ),
        # NOTE: at production H/I sizes, tile the MLP matmuls with an extra "arbitrary"
        # grid axis, single-buffer the resident weights, and set vmem_limit_bytes
        # explicitly (v7x has only 64 MiB VMEM). Unnecessary at this config (<1 MiB).
    )(x2d, prep["wqkv"], prep["wo"], prep["wgu"], prep["wd"],
      prep["ln1"], prep["ln2"], prep["ropeq"], prep["ropek"])

    return out2d.reshape(B, S, H)


# ----------------------------------- params -----------------------------------


def make_params(key, hidden, kv_hidden, intermediate):
    ks = jax.random.split(key, 7)
    std = 0.02
    return {
        "wq": jax.random.normal(ks[0], (hidden, hidden), jnp.float32) * std,
        "wk": jax.random.normal(ks[1], (hidden, kv_hidden), jnp.float32) * std,
        "wv": jax.random.normal(ks[2], (hidden, kv_hidden), jnp.float32) * std,
        "wo": jax.random.normal(ks[3], (hidden, hidden), jnp.float32) * std,
        "wg": jax.random.normal(ks[4], (hidden, intermediate), jnp.float32) * std,
        "wu": jax.random.normal(ks[5], (hidden, intermediate), jnp.float32) * std,
        "wd": jax.random.normal(ks[6], (intermediate, hidden), jnp.float32) * std,
        "ln_attn": jnp.ones((1, hidden), jnp.float32),
        "ln_final": jnp.ones((1, hidden), jnp.float32),
    }


# ------------------------------ pure-JAX reference ------------------------------


def ref_tts_adapter_layer(x, params, *, num_heads, num_kv_heads, eps=1e-6,
                          rope_theta=10000.0):
    B, S, H = x.shape
    D = H // num_heads
    groups = num_heads // num_kv_heads
    scale = 1.0 / math.sqrt(D)

    q = x @ params["wq"]
    k = x @ params["wk"]
    v = x @ params["wv"]

    inv_freq = 1.0 / (rope_theta ** (jnp.arange(0, D, 2, dtype=jnp.float32) / D))
    freqs = jnp.outer(jnp.arange(S, dtype=jnp.float32), inv_freq)
    cos = jnp.concatenate([jnp.cos(freqs)] * 2, axis=-1)
    sin = jnp.concatenate([jnp.sin(freqs)] * 2, axis=-1)

    def rope(z, nh):
        z = z.reshape(B, S, nh, D)
        z1, z2 = z[..., :D // 2], z[..., D // 2:]
        rot = jnp.concatenate([-z2, z1], axis=-1)
        return z * cos[None, :, None, :] + rot * sin[None, :, None, :]

    qh = rope(q, num_heads)
    kh = jnp.repeat(rope(k, num_kv_heads), groups, axis=2)
    vh = jnp.repeat(v.reshape(B, S, num_kv_heads, D), groups, axis=2)

    s = jnp.einsum("bqhd,bkhd->bhqk", qh, kh) * scale
    causal = jnp.tril(jnp.ones((S, S), bool))
    s = jnp.where(causal[None, None], s, -jnp.inf)
    p = jax.nn.softmax(s, axis=-1)
    attn = jnp.einsum("bhqk,bkhd->bqhd", p, vh).reshape(B, S, H) @ params["wo"]

    h1 = x + attn
    h1n = h1 * jax.lax.rsqrt(jnp.mean(h1 * h1, -1, keepdims=True) + eps) \
        * params["ln_attn"].reshape(H)
    down = (jax.nn.silu(h1n @ params["wg"]) * (h1n @ params["wu"])) @ params["wd"]
    h2 = h1n + down
    return h2 * jax.lax.rsqrt(jnp.mean(h2 * h2, -1, keepdims=True) + eps) \
        * params["ln_final"].reshape(H)


# ------------------------------------- main -------------------------------------

if __name__ == "__main__":
    # config consistent with the module:
    #   tts_adapter_hidden_size=128, heads=4 -> head_dim=32, kv_heads = heads // 4 = 1
    #   tts_adapter_intermediate_size=256
    B, S, H = 2, 64, 128
    NUM_HEADS = 4
    NUM_KV_HEADS = NUM_HEADS // 4
    INTERMEDIATE = 256
    HEAD_DIM = H // NUM_HEADS

    key = jax.random.PRNGKey(0)
    k_x, k_p = jax.random.split(key)

    x = jax.random.normal(k_x, (B, S, H), dtype=jnp.float32)
    params = make_params(k_p, H, NUM_KV_HEADS * HEAD_DIM, INTERMEDIATE)

    # one-time prep (NOT in the per-call path): fused bf16 weights + RoPE tables
    prep = prepare_layer(params, num_heads=NUM_HEADS, num_kv_heads=NUM_KV_HEADS, seq_len=S)
    prep = jax.tree_util.tree_map(jax.block_until_ready, prep)

    fn = jax.jit(functools.partial(
        tts_adapter_layer, num_heads=NUM_HEADS, num_kv_heads=NUM_KV_HEADS))
    out = fn(x, prep)
    jax.block_until_ready(out)

    assert out.shape == (B, S, H), out.shape
    assert bool(jnp.all(jnp.isfinite(out))), "non-finite output"

    # parity vs pure-JAX f32 reference (loose tol: bf16 matmuls + approx reciprocal)
    ref = ref_tts_adapter_layer(x, params, num_heads=NUM_HEADS, num_kv_heads=NUM_KV_HEADS)
    err = float(jnp.max(jnp.abs(out.astype(jnp.float32) - ref)))
    assert err < 0.1, f"kernel vs reference max abs error too large: {err}"

    print("KERNEL_OK")
</pallas_src>

<mosaic_0001>
module attributes {stable_mosaic.version = 11 : i64} {
  func.func @_tts_layer_kernel(%arg0: i32, %arg1: memref<128x128xf32, #tpu.memory_space<vmem>>, %arg2: memref<128x352xbf16, #tpu.memory_space<vmem>>, %arg3: memref<128x128xbf16, #tpu.memory_space<vmem>>, %arg4: memref<128x512xbf16, #tpu.memory_space<vmem>>, %arg5: memref<256x128xbf16, #tpu.memory_space<vmem>>, %arg6: memref<1x128xf32, #tpu.memory_space<vmem>>, %arg7: memref<1x128xf32, #tpu.memory_space<vmem>>, %arg8: memref<2x64x128xf32, #tpu.memory_space<vmem>>, %arg9: memref<2x64x32xf32, #tpu.memory_space<vmem>>, %arg10: memref<128x128xf32, #tpu.memory_space<vmem>>) attributes {dimension_semantics = [#tpu.dimension_semantics<parallel>], iteration_bounds = array<i64: 1>, scalar_prefetch = 0 : i64, scratch_operands = 0 : i64, tpu.core_type = #tpu.core_type<tc>, window_params = [{transform_indices = @transform_0, window_bounds = array<i64: 128, 128>}, {pipeline_mode = #tpu.pipeline_mode<synchronous>, transform_indices = @transform_1, window_bounds = array<i64: 128, 352>}, {pipeline_mode = #tpu.pipeline_mode<synchronous>, transform_indices = @transform_2, window_bounds = array<i64: 128, 128>}, {pipeline_mode = #tpu.pipeline_mode<synchronous>, transform_indices = @transform_3, window_bounds = array<i64: 128, 512>}, {pipeline_mode = #tpu.pipeline_mode<synchronous>, transform_indices = @transform_4, window_bounds = array<i64: 256, 128>}, {pipeline_mode = #tpu.pipeline_mode<synchronous>, transform_indices = @transform_5, window_bounds = array<i64: 1, 128>}, {pipeline_mode = #tpu.pipeline_mode<synchronous>, transform_indices = @transform_6, window_bounds = array<i64: 1, 128>}, {pipeline_mode = #tpu.pipeline_mode<synchronous>, transform_indices = @transform_7, window_bounds = array<i64: 2, 64, 128>}, {pipeline_mode = #tpu.pipeline_mode<synchronous>, transform_indices = @transform_8, window_bounds = array<i64: 2, 64, 32>}, {transform_indices = @transform_9, window_bounds = array<i64: 128, 128>}]} {
    %c0 = arith.constant 0 : index
    %c0_0 = arith.constant 0 : index
    %0 = vector.load %arg1[%c0, %c0_0] : memref<128x128xf32, #tpu.memory_space<vmem>>, vector<128x128xf32>
    %1 = arith.truncf %0 : vector<128x128xf32> to vector<128x128xbf16>
    %c0_1 = arith.constant 0 : index
    %c0_2 = arith.constant 0 : index
    %2 = vector.load %arg2[%c0_1, %c0_2] : memref<128x352xbf16, #tpu.memory_space<vmem>>, vector<128x352xbf16>
    %cst = arith.constant dense<0.000000e+00> : vector<128x352xf32>
    %3 = tpu.matmul %1, %2, %cst {dimension_numbers = #tpu.dot_dimension_numbers<[1], [0], [0], [1], [0, 0, 1, 1], [], []>} : vector<128x128xbf16>, vector<128x352xbf16>, vector<128x352xf32> -> vector<128x352xf32>
    %c0_3 = arith.constant 0 : index
    %c0_4 = arith.constant 0 : index
    %c0_5 = arith.constant 0 : index
    %4 = vector.load %arg8[%c0_3, %c0_4, %c0_5] : memref<2x64x128xf32, #tpu.memory_space<vmem>>, vector<1x64x128xf32>
    %5 = vector.shape_cast %4 : vector<1x64x128xf32> to vector<64x128xf32>
    %c1 = arith.constant 1 : index
    %c0_6 = arith.constant 0 : index
    %c0_7 = arith.constant 0 : index
    %6 = vector.load %arg8[%c1, %c0_6, %c0_7] : memref<2x64x128xf32, #tpu.memory_space<vmem>>, vector<1x64x128xf32>
    %7 = vector.shape_cast %6 : vector<1x64x128xf32> to vector<64x128xf32>
    %c0_8 = arith.constant 0 : index
    %c0_9 = arith.constant 0 : index
    %c0_10 = arith.constant 0 : index
    %8 = vector.load %arg9[%c0_8, %c0_9, %c0_10] : memref<2x64x32xf32, #tpu.memory_space<vmem>>, vector<1x64x32xf32>
    %9 = vector.shape_cast %8 : vector<1x64x32xf32> to vector<64x32xf32>
    %c1_11 = arith.constant 1 : index
    %c0_12 = arith.constant 0 : index
    %c0_13 = arith.constant 0 : index
    %10 = vector.load %arg9[%c1_11, %c0_12, %c0_13] : memref<2x64x32xf32, #tpu.memory_space<vmem>>, vector<1x64x32xf32>
    %11 = vector.shape_cast %10 : vector<1x64x32xf32> to vector<64x32xf32>
    %12 = tpu.iota {dimensions = array<i32: 0>} : vector<256x64xi32>
    %c64_i32 = arith.constant 64 : i32
    %c0_i32 = arith.constant 0 : i32
    %13 = arith.cmpi eq, %c64_i32, %c0_i32 : i32
    %c1_i32 = arith.constant 1 : i32
    %14 = arith.select %13, %c1_i32, %c64_i32 : i32
    %15 = vector.broadcast %14 : i32 to vector<256x64xi32>
    %16 = arith.remsi %12, %15 : vector<256x64xi32>
    %c0_i32_14 = arith.constant 0 : i32
    %17 = vector.broadcast %c0_i32_14 : i32 to vector<256x64xi32>
    %18 = arith.cmpi ne, %16, %17 : vector<256x64xi32>
    %c0_i32_15 = arith.constant 0 : i32
    %19 = vector.broadcast %c0_i32_15 : i32 to vector<256x64xi32>
    %20 = arith.cmpi slt, %16, %19 : vector<256x64xi32>
    %c0_i32_16 = arith.constant 0 : i32
    %21 = arith.cmpi slt, %14, %c0_i32_16 : i32
    %22 = vector.broadcast %21 : i1 to vector<256x64xi1>
    %23 = vector.broadcast %22 : vector<256x64xi1> to vector<256x64xi1>
    %24 = arith.xori %20, %23 : vector<256x64xi1>
    %25 = arith.andi %24, %18 : vector<256x64xi1>
    %26 = vector.broadcast %14 : i32 to vector<256x64xi32>
    %27 = arith.addi %16, %26 : vector<256x64xi32>
    %28 = arith.select %25, %27, %16 : vector<256x64xi1>, vector<256x64xi32>
    %29 = tpu.iota {dimensions = array<i32: 1>} : vector<256x64xi32>
    %30 = arith.cmpi sle, %29, %28 : vector<256x64xi32>
    %cst_17 = arith.constant 0.000000e+00 : f32
    %cst_18 = arith.constant -1.000000e+30 : f32
    %31 = vector.broadcast %cst_17 : f32 to vector<256x64xf32>
    %32 = vector.broadcast %cst_18 : f32 to vector<256x64xf32>
    %33 = arith.select %30, %31, %32 : vector<256x64xi1>, vector<256x64xf32>
    %34 = vector.extract_strided_slice %3 {offsets = [0, 0], sizes = [64, 128], strides = [1, 1]} : vector<128x352xf32> to vector<64x128xf32>
    %35 = vector.extract_strided_slice %3 {offsets = [0, 128], sizes = [64, 128], strides = [1, 1]} : vector<128x352xf32> to vector<64x128xf32>
    %36 = vector.extract_strided_slice %3 {offsets = [0, 256], sizes = [64, 32], strides = [1, 1]} : vector<128x352xf32> to vector<64x32xf32>
    %37 = vector.extract_strided_slice %3 {offsets = [0, 288], sizes = [64, 32], strides = [1, 1]} : vector<128x352xf32> to vector<64x32xf32>
    %38 = vector.extract_strided_slice %3 {offsets = [0, 320], sizes = [64, 32], strides = [1, 1]} : vector<128x352xf32> to vector<64x32xf32>
    %39 = arith.truncf %38 : vector<64x32xf32> to vector<64x32xbf16>
    %40 = arith.mulf %34, %5 : vector<64x128xf32>
    %41 = arith.mulf %35, %7 : vector<64x128xf32>
    %42 = arith.addf %40, %41 : vector<64x128xf32>
    %43 = arith.mulf %36, %9 : vector<64x32xf32>
    %44 = arith.mulf %37, %11 : vector<64x32xf32>
    %45 = arith.addf %43, %44 : vector<64x32xf32>
    %cst_19 = arith.constant 0.000000e+00 : f32
    %46 = vector.broadcast %cst_19 : f32 to vector<64x128xf32>
    %47 = arith.truncf %45 : vector<64x32xf32> to vector<64x32xbf16>
    %48 = vector.extract_strided_slice %42 {offsets = [0, 0], sizes = [64, 32], strides = [1, 1]} : vector<64x128xf32> to vector<64x32xf32>
    %49 = vector.extract_strided_slice %42 {offsets = [0, 32], sizes = [64, 32], strides = [1, 1]} : vector<64x128xf32> to vector<64x32xf32>
    %50 = vector.extract_strided_slice %42 {offsets = [0, 64], sizes = [64, 32], strides = [1, 1]} : vector<64x128xf32> to vector<64x32xf32>
    %51 = vector.extract_strided_slice %42 {offsets = [0, 96], sizes = [64, 32], strides = [1, 1]} : vector<64x128xf32> to vector<64x32xf32>
    %52 = tpu.concatenate %48, %49, %50, %51 in 0 : vector<64x32xf32>, vector<64x32xf32>, vector<64x32xf32>, vector<64x32xf32> -> vector<256x32xf32>
    %53 = arith.truncf %52 : vector<256x32xf32> to vector<256x32xbf16>
    %cst_20 = arith.constant dense<0.000000e+00> : vector<256x64xf32>
    %54 = tpu.matmul %53, %47, %cst_20 {dimension_numbers = #tpu.dot_dimension_numbers<[1], [1], [0], [0], [0, 0, 1, 0], [], []>} : vector<256x32xbf16>, vector<64x32xbf16>, vector<256x64xf32> -> vector<256x64xf32>
    %55 = arith.addf %54, %33 : vector<256x64xf32>
    %cst_21 = arith.constant dense<0xFF800000> : vector<256xf32>
    %56 = vector.multi_reduction <maximumf>, %55, %cst_21 [1] : vector<256x64xf32> to vector<256xf32>
    %57 = vector.shape_cast %56 : vector<256xf32> to vector<256x1xf32>
    %58 = vector.broadcast %57 : vector<256x1xf32> to vector<256x64xf32>
    %59 = arith.subf %55, %58 : vector<256x64xf32>
    %60 = math.exp %59 : vector<256x64xf32>
    %cst_22 = arith.constant dense<0.000000e+00> : vector<256xf32>
    %61 = vector.multi_reduction <add>, %60, %cst_22 [1] : vector<256x64xf32> to vector<256xf32>
    %62 = vector.shape_cast %61 : vector<256xf32> to vector<256x1xf32>
    %63 = tpu.reciprocal %62 {approx = true} : vector<256x1xf32> -> vector<256x1xf32>
    %64 = vector.broadcast %63 : vector<256x1xf32> to vector<256x64xf32>
    %65 = arith.mulf %60, %64 : vector<256x64xf32>
    %66 = arith.truncf %65 : vector<256x64xf32> to vector<256x64xbf16>
    %cst_23 = arith.constant dense<0.000000e+00> : vector<256x32xf32>
    %67 = tpu.matmul %66, %39, %cst_23 {dimension_numbers = #tpu.dot_dimension_numbers<[1], [0], [0], [1], [0, 0, 1, 1], [], []>} : vector<256x64xbf16>, vector<64x32xbf16>, vector<256x32xf32> -> vector<256x32xf32>
    %68 = vector.extract_strided_slice %67 {offsets = [0, 0], sizes = [64, 32], strides = [1, 1]} : vector<256x32xf32> to vector<64x32xf32>
    %69 = arith.truncf %68 : vector<64x32xf32> to vector<64x32xbf16>
    %c0_24 = arith.constant 0 : index
    %c0_25 = arith.constant 0 : index
    %70 = vector.load %arg3[%c0_24, %c0_25] : memref<128x128xbf16, #tpu.memory_space<vmem>>, vector<32x128xbf16>
    %cst_26 = arith.constant dense<0.000000e+00> : vector<64x128xf32>
    %71 = tpu.matmul %69, %70, %cst_26 {dimension_numbers = #tpu.dot_dimension_numbers<[1], [0], [0], [1], [0, 0, 1, 1], [], []>} : vector<64x32xbf16>, vector<32x128xbf16>, vector<64x128xf32> -> vector<64x128xf32>
    %72 = arith.addf %46, %71 : vector<64x128xf32>
    %73 = vector.extract_strided_slice %67 {offsets = [64, 0], sizes = [64, 32], strides = [1, 1]} : vector<256x32xf32> to vector<64x32xf32>
    %74 = arith.truncf %73 : vector<64x32xf32> to vector<64x32xbf16>
    %c32 = arith.constant 32 : index
    %c0_27 = arith.constant 0 : index
    %75 = vector.load %arg3[%c32, %c0_27] : memref<128x128xbf16, #tpu.memory_space<vmem>>, vector<32x128xbf16>
    %cst_28 = arith.constant dense<0.000000e+00> : vector<64x128xf32>
    %76 = tpu.matmul %74, %75, %cst_28 {dimension_numbers = #tpu.dot_dimension_numbers<[1], [0], [0], [1], [0, 0, 1, 1], [], []>} : vector<64x32xbf16>, vector<32x128xbf16>, vector<64x128xf32> -> vector<64x128xf32>
    %77 = arith.addf %72, %76 : vector<64x128xf32>
    %78 = vector.extract_strided_slice %67 {offsets = [128, 0], sizes = [64, 32], strides = [1, 1]} : vector<256x32xf32> to vector<64x32xf32>
    %79 = arith.truncf %78 : vector<64x32xf32> to vector<64x32xbf16>
    %c64 = arith.constant 64 : index
    %c0_29 = arith.constant 0 : index
    %80 = vector.load %arg3[%c64, %c0_29] : memref<128x128xbf16, #tpu.memory_space<vmem>>, vector<32x128xbf16>
    %cst_30 = arith.constant dense<0.000000e+00> : vector<64x128xf32>
    %81 = tpu.matmul %79, %80, %cst_30 {dimension_numbers = #tpu.dot_dimension_numbers<[1], [0], [0], [1], [0, 0, 1, 1], [], []>} : vector<64x32xbf16>, vector<32x128xbf16>, vector<64x128xf32> -> vector<64x128xf32>
    %82 = arith.addf %77, %81 : vector<64x128xf32>
    %83 = vector.extract_strided_slice %67 {offsets = [192, 0], sizes = [64, 32], strides = [1, 1]} : vector<256x32xf32> to vector<64x32xf32>
    %84 = arith.truncf %83 : vector<64x32xf32> to vector<64x32xbf16>
    %c96 = arith.constant 96 : index
    %c0_31 = arith.constant 0 : index
    %85 = vector.load %arg3[%c96, %c0_31] : memref<128x128xbf16, #tpu.memory_space<vmem>>, vector<32x128xbf16>
    %cst_32 = arith.constant dense<0.000000e+00> : vector<64x128xf32>
    %86 = tpu.matmul %84, %85, %cst_32 {dimension_numbers = #tpu.dot_dimension_numbers<[1], [0], [0], [1], [0, 0, 1, 1], [], []>} : vector<64x32xbf16>, vector<32x128xbf16>, vector<64x128xf32> -> vector<64x128xf32>
    %87 = arith.addf %82, %86 : vector<64x128xf32>
    %88 = vector.extract_strided_slice %3 {offsets = [64, 0], sizes = [64, 128], strides = [1, 1]} : vector<128x352xf32> to vector<64x128xf32>
    %89 = vector.extract_strided_slice %3 {offsets = [64, 128], sizes = [64, 128], strides = [1, 1]} : vector<128x352xf32> to vector<64x128xf32>
    %90 = vector.extract_strided_slice %3 {offsets = [64, 256], sizes = [64, 32], strides = [1, 1]} : vector<128x352xf32> to vector<64x32xf32>
    %91 = vector.extract_strided_slice %3 {offsets = [64, 288], sizes = [64, 32], strides = [1, 1]} : vector<128x352xf32> to vector<64x32xf32>
    %92 = vector.extract_strided_slice %3 {offsets = [64, 320], sizes = [64, 32], strides = [1, 1]} : vector<128x352xf32> to vector<64x32xf32>
    %93 = arith.truncf %92 : vector<64x32xf32> to vector<64x32xbf16>
    %94 = arith.mulf %88, %5 : vector<64x128xf32>
    %95 = arith.mulf %89, %7 : vector<64x128xf32>
    %96 = arith.addf %94, %95 : vector<64x128xf32>
    %97 = arith.mulf %90, %9 : vector<64x32xf32>
    %98 = arith.mulf %91, %11 : vector<64x32xf32>
    %99 = arith.addf %97, %98 : vector<64x32xf32>
    %cst_33 = arith.constant 0.000000e+00 : f32
    %100 = vector.broadcast %cst_33 : f32 to vector<64x128xf32>
    %101 = arith.truncf %99 : vector<64x32xf32> to vector<64x32xbf16>
    %102 = vector.extract_strided_slice %96 {offsets = [0, 0], sizes = [64, 32], strides = [1, 1]} : vector<64x128xf32> to vector<64x32xf32>
    %103 = vector.extract_strided_slice %96 {offsets = [0, 32], sizes = [64, 32], strides = [1, 1]} : vector<64x128xf32> to vector<64x32xf32>
    %104 = vector.extract_strided_slice %96 {offsets = [0, 64], sizes = [64, 32], strides = [1, 1]} : vector<64x128xf32> to vector<64x32xf32>
    %105 = vector.extract_strided_slice %96 {offsets = [0, 96], sizes = [64, 32], strides = [1, 1]} : vector<64x128xf32> to vector<64x32xf32>
    %106 = tpu.concatenate %102, %103, %104, %105 in 0 : vector<64x32xf32>, vector<64x32xf32>, vector<64x32xf32>, vector<64x32xf32> -> vector<256x32xf32>
    %107 = arith.truncf %106 : vector<256x32xf32> to vector<256x32xbf16>
    %cst_34 = arith.constant dense<0.000000e+00> : vector<256x64xf32>
    %108 = tpu.matmul %107, %101, %cst_34 {dimension_numbers = #tpu.dot_dimension_numbers<[1], [1], [0], [0], [0, 0, 1, 0], [], []>} : vector<256x32xbf16>, vector<64x32xbf16>, vector<256x64xf32> -> vector<256x64xf32>
    %109 = arith.addf %108, %33 : vector<256x64xf32>
    %cst_35 = arith.constant dense<0xFF800000> : vector<256xf32>
    %110 = vector.multi_reduction <maximumf>, %109, %cst_35 [1] : vector<256x64xf32> to vector<256xf32>
    %111 = vector.shape_cast %110 : vector<256xf32> to vector<256x1xf32>
    %112 = vector.broadcast %111 : vector<256x1xf32> to vector<256x64xf32>
    %113 = arith.subf %109, %112 : vector<256x64xf32>
    %114 = math.exp %113 : vector<256x64xf32>
    %cst_36 = arith.constant dense<0.000000e+00> : vector<256xf32>
    %115 = vector.multi_reduction <add>, %114, %cst_36 [1] : vector<256x64xf32> to vector<256xf32>
    %116 = vector.shape_cast %115 : vector<256xf32> to vector<256x1xf32>
    %117 = tpu.reciprocal %116 {approx = true} : vector<256x1xf32> -> vector<256x1xf32>
    %118 = vector.broadcast %117 : vector<256x1xf32> to vector<256x64xf32>
    %119 = arith.mulf %114, %118 : vector<256x64xf32>
    %120 = arith.truncf %119 : vector<256x64xf32> to vector<256x64xbf16>
    %cst_37 = arith.constant dense<0.000000e+00> : vector<256x32xf32>
    %121 = tpu.matmul %120, %93, %cst_37 {dimension_numbers = #tpu.dot_dimension_numbers<[1], [0], [0], [1], [0, 0, 1, 1], [], []>} : vector<256x64xbf16>, vector<64x32xbf16>, vector<256x32xf32> -> vector<256x32xf32>
    %122 = vector.extract_strided_slice %121 {offsets = [0, 0], sizes = [64, 32], strides = [1, 1]} : vector<256x32xf32> to vector<64x32xf32>
    %123 = arith.truncf %122 : vector<64x32xf32> to vector<64x32xbf16>
    %c0_38 = arith.constant 0 : index
    %c0_39 = arith.constant 0 : index
    %124 = vector.load %arg3[%c0_38, %c0_39] : memref<128x128xbf16, #tpu.memory_space<vmem>>, vector<32x128xbf16>
    %cst_40 = arith.constant dense<0.000000e+00> : vector<64x128xf32>
    %125 = tpu.matmul %123, %124, %cst_40 {dimension_numbers = #tpu.dot_dimension_numbers<[1], [0], [0], [1], [0, 0, 1, 1], [], []>} : vector<64x32xbf16>, vector<32x128xbf16>, vector<64x128xf32> -> vector<64x128xf32>
    %126 = arith.addf %100, %125 : vector<64x128xf32>
    %127 = vector.extract_strided_slice %121 {offsets = [64, 0], sizes = [64, 32], strides = [1, 1]} : vector<256x32xf32> to vector<64x32xf32>
    %128 = arith.truncf %127 : vector<64x32xf32> to vector<64x32xbf16>
    %c32_41 = arith.constant 32 : index
    %c0_42 = arith.constant 0 : index
    %129 = vector.load %arg3[%c32_41, %c0_42] : memref<128x128xbf16, #tpu.memory_space<vmem>>, vector<32x128xbf16>
    %cst_43 = arith.constant dense<0.000000e+00> : vector<64x128xf32>
    %130 = tpu.matmul %128, %129, %cst_43 {dimension_numbers = #tpu.dot_dimension_numbers<[1], [0], [0], [1], [0, 0, 1, 1], [], []>} : vector<64x32xbf16>, vector<32x128xbf16>, vector<64x128xf32> -> vector<64x128xf32>
    %131 = arith.addf %126, %130 : vector<64x128xf32>
    %132 = vector.extract_strided_slice %121 {offsets = [128, 0], sizes = [64, 32], strides = [1, 1]} : vector<256x32xf32> to vector<64x32xf32>
    %133 = arith.truncf %132 : vector<64x32xf32> to vector<64x32xbf16>
    %c64_44 = arith.constant 64 : index
    %c0_45 = arith.constant 0 : index
    %134 = vector.load %arg3[%c64_44, %c0_45] : memref<128x128xbf16, #tpu.memory_space<vmem>>, vector<32x128xbf16>
    %cst_46 = arith.constant dense<0.000000e+00> : vector<64x128xf32>
    %135 = tpu.matmul %133, %134, %cst_46 {dimension_numbers = #tpu.dot_dimension_numbers<[1], [0], [0], [1], [0, 0, 1, 1], [], []>} : vector<64x32xbf16>, vector<32x128xbf16>, vector<64x128xf32> -> vector<64x128xf32>
    %136 = arith.addf %131, %135 : vector<64x128xf32>
    %137 = vector.extract_strided_slice %121 {offsets = [192, 0], sizes = [64, 32], strides = [1, 1]} : vector<256x32xf32> to vector<64x32xf32>
    %138 = arith.truncf %137 : vector<64x32xf32> to vector<64x32xbf16>
    %c96_47 = arith.constant 96 : index
    %c0_48 = arith.constant 0 : index
    %139 = vector.load %arg3[%c96_47, %c0_48] : memref<128x128xbf16, #tpu.memory_space<vmem>>, vector<32x128xbf16>
    %cst_49 = arith.constant dense<0.000000e+00> : vector<64x128xf32>
    %140 = tpu.matmul %138, %139, %cst_49 {dimension_numbers = #tpu.dot_dimension_numbers<[1], [0], [0], [1], [0, 0, 1, 1], [], []>} : vector<64x32xbf16>, vector<32x128xbf16>, vector<64x128xf32> -> vector<64x128xf32>
    %141 = arith.addf %136, %140 : vector<64x128xf32>
    %142 = tpu.concatenate %87, %141 in 0 : vector<64x128xf32>, vector<64x128xf32> -> vector<128x128xf32>
    %143 = arith.addf %0, %142 : vector<128x128xf32>
    %144 = arith.mulf %143, %143 : vector<128x128xf32>
    %cst_50 = arith.constant dense<0.000000e+00> : vector<128xf32>
    %145 = vector.multi_reduction <add>, %144, %cst_50 [1] : vector<128x128xf32> to vector<128xf32>
    %146 = vector.shape_cast %145 : vector<128xf32> to vector<128x1xf32>
    %cst_51 = arith.constant 1.280000e+02 : f32
    %147 = vector.broadcast %cst_51 : f32 to vector<128x1xf32>
    %148 = arith.divf %146, %147 : vector<128x1xf32>
    %cst_52 = arith.constant 9.99999997E-7 : f32
    %149 = vector.broadcast %cst_52 : f32 to vector<128x1xf32>
    %150 = arith.addf %148, %149 : vector<128x1xf32>
    %151 = math.rsqrt %150 : vector<128x1xf32>
    %152 = vector.broadcast %151 : vector<128x1xf32> to vector<128x128xf32>
    %153 = arith.mulf %143, %152 : vector<128x128xf32>
    %c0_53 = arith.constant 0 : index
    %c0_54 = arith.constant 0 : index
    %154 = vector.load %arg6[%c0_53, %c0_54] : memref<1x128xf32, #tpu.memory_space<vmem>>, vector<1x128xf32>
    %155 = vector.broadcast %154 : vector<1x128xf32> to vector<128x128xf32>
    %156 = arith.mulf %153, %155 : vector<128x128xf32>
    %157 = arith.truncf %156 : vector<128x128xf32> to vector<128x128xbf16>
    %c0_55 = arith.constant 0 : index
    %c0_56 = arith.constant 0 : index
    %158 = vector.load %arg4[%c0_55, %c0_56] : memref<128x512xbf16, #tpu.memory_space<vmem>>, vector<128x512xbf16>
    %cst_57 = arith.constant dense<0.000000e+00> : vector<128x512xf32>
    %159 = tpu.matmul %157, %158, %cst_57 {dimension_numbers = #tpu.dot_dimension_numbers<[1], [0], [0], [1], [0, 0, 1, 1], [], []>} : vector<128x128xbf16>, vector<128x512xbf16>, vector<128x512xf32> -> vector<128x512xf32>
    %160 = vector.extract_strided_slice %159 {offsets = [0, 0], sizes = [128, 256], strides = [1, 1]} : vector<128x512xf32> to vector<128x256xf32>
    %161 = arith.negf %160 : vector<128x256xf32>
    %162 = math.exp %161 : vector<128x256xf32>
    %cst_58 = arith.constant 1.000000e+00 : f32
    %163 = vector.broadcast %cst_58 : f32 to vector<128x256xf32>
    %164 = arith.addf %163, %162 : vector<128x256xf32>
    %165 = arith.divf %163, %164 : vector<128x256xf32>
    %166 = arith.mulf %160, %165 : vector<128x256xf32>
    %167 = vector.extract_strided_slice %159 {offsets = [0, 256], sizes = [128, 256], strides = [1, 1]} : vector<128x512xf32> to vector<128x256xf32>
    %168 = arith.mulf %166, %167 : vector<128x256xf32>
    %169 = arith.truncf %168 : vector<128x256xf32> to vector<128x256xbf16>
    %c0_59 = arith.constant 0 : index
    %c0_60 = arith.constant 0 : index
    %170 = vector.load %arg5[%c0_59, %c0_60] : memref<256x128xbf16, #tpu.memory_space<vmem>>, vector<256x128xbf16>
    %cst_61 = arith.constant dense<0.000000e+00> : vector<128x128xf32>
    %171 = tpu.matmul %169, %170, %cst_61 {dimension_numbers = #tpu.dot_dimension_numbers<[1], [0], [0], [1], [0, 0, 1, 1], [], []>} : vector<128x256xbf16>, vector<256x128xbf16>, vector<128x128xf32> -> vector<128x128xf32>
    %172 = arith.addf %156, %171 : vector<128x128xf32>
    %173 = arith.mulf %172, %172 : vector<128x128xf32>
    %cst_62 = arith.constant dense<0.000000e+00> : vector<128xf32>
    %174 = vector.multi_reduction <add>, %173, %cst_62 [1] : vector<128x128xf32> to vector<128xf32>
    %175 = vector.shape_cast %174 : vector<128xf32> to vector<128x1xf32>
    %cst_63 = arith.constant 1.280000e+02 : f32
    %176 = vector.broadcast %cst_63 : f32 to vector<128x1xf32>
    %177 = arith.divf %175, %176 : vector<128x1xf32>
    %cst_64 = arith.constant 9.99999997E-7 : f32
    %178 = vector.broadcast %cst_64 : f32 to vector<128x1xf32>
    %179 = arith.addf %177, %178 : vector<128x1xf32>
    %180 = math.rsqrt %179 : vector<128x1xf32>
    %181 = vector.broadcast %180 : vector<128x1xf32> to vector<128x128xf32>
    %182 = arith.mulf %172, %181 : vector<128x128xf32>
    %c0_65 = arith.constant 0 : index
    %c0_66 = arith.constant 0 : index
    %183 = vector.load %arg7[%c0_65, %c0_66] : memref<1x128xf32, #tpu.memory_space<vmem>>, vector<1x128xf32>
    %184 = vector.broadcast %183 : vector<1x128xf32> to vector<128x128xf32>
    %185 = arith.mulf %182, %184 : vector<128x128xf32>
    %c0_67 = arith.constant 0 : index
    %c0_68 = arith.constant 0 : index
    %186 = vector.load %arg10[%c0_67, %c0_68] : memref<128x128xf32, #tpu.memory_space<vmem>>, vector<128x128xf32>
    tpu.vector_store %arg10[%c0_67, %c0_68], %185 {strides = array<i32>} : memref<128x128xf32, #tpu.memory_space<vmem>>, vector<128x128xf32>,
    return
  }
  func.func @transform_0(%arg0: i32) -> (i32, i32) {
    %c0_i32 = arith.constant 0 : i32
    %c0_i32_0 = arith.constant 0 : i32
    return %arg0, %c0_i32 : i32, i32
  }
  func.func @transform_1(%arg0: i32) -> (i32, i32) {
    %c0_i32 = arith.constant 0 : i32
    %c0_i32_0 = arith.constant 0 : i32
    %c0_i32_1 = arith.constant 0 : i32
    return %c0_i32, %c0_i32_0 : i32, i32
  }
  func.func @transform_2(%arg0: i32) -> (i32, i32) {
    %c0_i32 = arith.constant 0 : i32
    %c0_i32_0 = arith.constant 0 : i32
    %c0_i32_1 = arith.constant 0 : i32
    return %c0_i32, %c0_i32_0 : i32, i32
  }
  func.func @transform_3(%arg0: i32) -> (i32, i32) {
    %c0_i32 = arith.constant 0 : i32
    %c0_i32_0 = arith.constant 0 : i32
    %c0_i32_1 = arith.constant 0 : i32
    return %c0_i32, %c0_i32_0 : i32, i32
  }
  func.func @transform_4(%arg0: i32) -> (i32, i32) {
    %c0_i32 = arith.constant 0 : i32
    %c0_i32_0 = arith.constant 0 : i32
    %c0_i32_1 = arith.constant 0 : i32
    return %c0_i32, %c0_i32_0 : i32, i32
  }
  func.func @transform_5(%arg0: i32) -> (i32, i32) {
    %c0_i32 = arith.constant 0 : i32
    %c0_i32_0 = arith.constant 0 : i32
    %c0_i32_1 = arith.constant 0 : i32
    return %c0_i32, %c0_i32_0 : i32, i32
  }
  func.func @transform_6(%arg0: i32) -> (i32, i32) {
    %c0_i32 = arith.constant 0 : i32
    %c0_i32_0 = arith.constant 0 : i32
    %c0_i32_1 = arith.constant 0 : i32
    return %c0_i32, %c0_i32_0 : i32, i32
  }
  func.func @transform_7(%arg0: i32) -> (i32, i32, i32) {
    %c0_i32 = arith.constant 0 : i32
    %c0_i32_0 = arith.constant 0 : i32
    %c0_i32_1 = arith.constant 0 : i32
    %c0_i32_2 = arith.constant 0 : i32
    return %c0_i32, %c0_i32_0, %c0_i32_1 : i32, i32, i32
  }
  func.func @transform_8(%arg0: i32) -> (i32, i32, i32) {
    %c0_i32 = arith.constant 0 : i32
    %c0_i32_0 = arith.constant 0 : i32
    %c0_i32_1 = arith.constant 0 : i32
    %c0_i32_2 = arith.constant 0 : i32
    return %c0_i32, %c0_i32_0, %c0_i32_1 : i32, i32, i32
  }
  func.func @transform_9(%arg0: i32) -> (i32, i32) {
    %c0_i32 = arith.constant 0 : i32
    %c0_i32_0 = arith.constant 0 : i32
    return %arg0, %c0_i32 : i32, i32
  }
}

</mosaic_0001>

<llo_original>
// kernel: tts_adapter_layer.1
$region0: #{tts_adapter_layer.1}
  #allocation0 [shape = 'u32[]', space=smem, size = 0x4, offset = 0x4, fixed_abs, tag = 'smem constant byte address 0x4 - core index']
  #allocation1 [shape = 'u32[144,128]{1,0:T(1,128)}', space=vmem, size = 0x12000, scoped, tag = 'internal scratch']
  %s0 = inlined_call_operand.vmem [shape: f32[128,128], index: 0, kind: input, shape index: {}]
  %s1 = inlined_call_operand.vmem [shape: bf16[128,352], index: 1, kind: input, shape index: {}]
  %s2 = inlined_call_operand.hbm [shape: bf16[128,128], index: 2, kind: input, shape index: {}]
  %s3 = inlined_call_operand.vmem [shape: bf16[128,512], index: 3, kind: input, shape index: {}]
  %s4 = inlined_call_operand.hbm [shape: bf16[256,128], index: 4, kind: input, shape index: {}]
  %s5 = inlined_call_operand.vmem [shape: f32[1,128], index: 5, kind: input, shape index: {}]
  %s6 = inlined_call_operand.vmem [shape: f32[1,128], index: 6, kind: input, shape index: {}]
  %s7 = inlined_call_operand.hbm [shape: f32[2,64,128], index: 7, kind: input, shape index: {}]
  %s8 = inlined_call_operand.vmem [shape: f32[2,64,32], index: 8, kind: input, shape index: {}]
  %s9 = inlined_call_operand.hbm [shape: f32[128,128], index: 9, kind: output, shape index: {}]
  %s10 = sld [smem:[#allocation0]]
  $region58: #{tts_adapter_layer.1} parent=0
    _
  %s12 = ssub.s32 1, %s10
  %s13 = scalar_select 0, %s12, %s10
  $region1: #{tts_adapter_layer.1} parent=0
    #allocation2 [shape = 'u8[32768]{0}', space=vmem, size = 0x8000, scoped, tag = 'input window, operand 2, single buffered']
    #allocation3 [shape = 's32[1]{0}', space=sflag, size = 0x4, scoped, tag = 'scoped memory for tts_adapter_layer.1']
    #allocation4 [shape = 's32[1]{0}', space=sflag, size = 0x4, scoped, tag = 'scoped memory for tts_adapter_layer.1']
    #allocation5 [shape = 'u8[65536]{0}', space=vmem, size = 0x10000, scoped, tag = 'input window, operand 4, single buffered']
    #allocation6 [shape = 's32[1]{0}', space=sflag, size = 0x4, scoped, tag = 'scoped memory for tts_adapter_layer.1']
    #allocation7 [shape = 'u8[65536]{0}', space=vmem, size = 0x10000, scoped, tag = 'input window, operand 7, single buffered']
    #allocation8 [shape = 'u8[65536]{0}', space=vmem, size = 0x10000, scoped, tag = 'output window, operand 0, single buffered']
    %14 = vsyncpa [#allocation3], 0
    %15 = vsyncpa [#allocation6], 0
    %16 = vsyncpa [#allocation4], 0
    // Predicated region
    $region2: #{tts_adapter_layer.1} parent=1 // pred_check
      _
    $region3: #{tts_adapter_layer.1} parent=1 // pred_check_branch
      %18 = sbr.rel (0) target = $region5
    $region4: #{tts_adapter_layer.1} parent=1 // pred_region
      _
    $region5: #{tts_adapter_layer.1} parent=1 // pred_fallthru
      _
    // Predicated region
    $region6: #{tts_adapter_layer.1} parent=1 // pred_check
      _
    $region7: #{tts_adapter_layer.1} parent=1 // pred_check_branch
      %20 = sbr.rel (0) target = $region9
    $region8: #{tts_adapter_layer.1} parent=1 // pred_region
      _
    $region9: #{tts_adapter_layer.1} parent=1 // pred_fallthru
      _
    // Predicated region
    $region10: #{tts_adapter_layer.1} parent=1 // pred_check
      _
    $region11: #{tts_adapter_layer.1} parent=1 // pred_check_branch
      %22 = sbr.rel (0) target = $region13
    $region12: #{tts_adapter_layer.1} parent=1 // pred_region
      %s24 = ssub.s32 1024, 1024
      %25 = vsyncadd [#allocation3], %s24
      %s26 = sshll.u32 [#allocation2], 4
      %s27 = int_to_ptr.vmem [resolvable:$true] %s26
      %32 = dma.hbm_to_vmem [thread:$0]  %s2, 1024, %s27, [#allocation3], 64, 64, 4
    $region13: #{tts_adapter_layer.1} parent=1 // pred_fallthru
      _
    // Predicated region
    $region14: #{tts_adapter_layer.1} parent=1 // pred_check
      _
    $region15: #{tts_adapter_layer.1} parent=1 // pred_check_branch
      %34 = sbr.rel (0) target = $region17
    $region16: #{tts_adapter_layer.1} parent=1 // pred_region
      _
    $region17: #{tts_adapter_layer.1} parent=1 // pred_fallthru
      _
    // Predicated region
    $region18: #{tts_adapter_layer.1} parent=1 // pred_check
      _
    $region19: #{tts_adapter_layer.1} parent=1 // pred_check_branch
      %36 = sbr.rel (0) target = $region21
    $region20: #{tts_adapter_layer.1} parent=1 // pred_region
      %s38 = ssub.s32 2048, 2048
      %39 = vsyncadd [#allocation6], %s38
      %s40 = sshll.u32 [#allocation5], 4
      %s41 = int_to_ptr.vmem [resolvable:$true] %s40
      %46 = dma.hbm_to_vmem [thread:$0]  %s4, 2048, %s41, [#allocation6], 64, 64, 4
    $region21: #{tts_adapter_layer.1} parent=1 // pred_fallthru
      _
    // Predicated region
    $region22: #{tts_adapter_layer.1} parent=1 // pred_check
      _
    $region23: #{tts_adapter_layer.1} parent=1 // pred_check_branch
      %48 = sbr.rel (0) target = $region25
    $region24: #{tts_adapter_layer.1} parent=1 // pred_region
      _
    $region25: #{tts_adapter_layer.1} parent=1 // pred_fallthru
      _
    // Predicated region
    $region26: #{tts_adapter_layer.1} parent=1 // pred_check
      _
    $region27: #{tts_adapter_layer.1} parent=1 // pred_check_branch
      %50 = sbr.rel (0) target = $region29
    $region28: #{tts_adapter_layer.1} parent=1 // pred_region
      _
    $region29: #{tts_adapter_layer.1} parent=1 // pred_fallthru
      _
    // Predicated region
    $region30: #{tts_adapter_layer.1} parent=1 // pred_check
      _
    $region31: #{tts_adapter_layer.1} parent=1 // pred_check_branch
      %52 = sbr.rel (0) target = $region33
    $region32: #{tts_adapter_layer.1} parent=1 // pred_region
      %s54 = ssub.s32 2048, 2048
      %55 = vsyncadd [#allocation6], %s54
      %s56 = sshll.u32 [#allocation7], 4
      %s57 = int_to_ptr.vmem [resolvable:$true] %s56
      %62 = dma.hbm_to_vmem [thread:$0]  %s7, 2048, %s57, [#allocation6], 128, 128, 8
    $region33: #{tts_adapter_layer.1} parent=1 // pred_fallthru
      _
    // Predicated region
    $region34: #{tts_adapter_layer.1} parent=1 // pred_check
      _
    $region35: #{tts_adapter_layer.1} parent=1 // pred_check_branch
      %64 = sbr.rel (0) target = $region37
    $region36: #{tts_adapter_layer.1} parent=1 // pred_region
      _
    $region37: #{tts_adapter_layer.1} parent=1 // pred_fallthru
      _
    // Predicated region
    $region38: #{tts_adapter_layer.1} parent=1 // pred_check
      _
    $region39: #{tts_adapter_layer.1} parent=1 // pred_check_branch
      %66 = sbr.rel (0) target = $region41
    $region40: #{tts_adapter_layer.1} parent=1 // pred_region
      %67 = dma.done [#allocation3], 1024
    $region41: #{tts_adapter_layer.1} parent=1 // pred_fallthru
      _
    // Predicated region
    $region42: #{tts_adapter_layer.1} parent=1 // pred_check
      _
    $region43: #{tts_adapter_layer.1} parent=1 // pred_check_branch
      %69 = sbr.rel (0) target = $region45
    $region44: #{tts_adapter_layer.1} parent=1 // pred_region
      %70 = dma.done [#allocation6], 2048
    $region45: #{tts_adapter_layer.1} parent=1 // pred_fallthru
      _
    // Predicated region
    $region46: #{tts_adapter_layer.1} parent=1 // pred_check
      _
    $region47: #{tts_adapter_layer.1} parent=1 // pred_check_branch
      %72 = sbr.rel (0) target = $region49
    $region48: #{tts_adapter_layer.1} parent=1 // pred_region
      %73 = dma.done [#allocation6], 2048
    $region49: #{tts_adapter_layer.1} parent=1 // pred_fallthru
      _
    %v75 = vld [vmem:[%s0] sm:$0xff]
    %v76 = vld [vmem:[%s0 + $0x8] sm:$0xff]
    %v77 = vld [vmem:[%s0 + $0x10] sm:$0xff]
    %v78 = vld [vmem:[%s0 + $0x18] sm:$0xff]
    %v79 = vld [vmem:[%s0 + $0x20] sm:$0xff]
    %v80 = vld [vmem:[%s0 + $0x28] sm:$0xff]
    %v81 = vld [vmem:[%s0 + $0x30] sm:$0xff]
    %v82 = vld [vmem:[%s0 + $0x38] sm:$0xff]
    %v83 = vld [vmem:[%s0 + $0x40] sm:$0xff]
    %v84 = vld [vmem:[%s0 + $0x48] sm:$0xff]
    %v85 = vld [vmem:[%s0 + $0x50] sm:$0xff]
    %v86 = vld [vmem:[%s0 + $0x58] sm:$0xff]
    %v87 = vld [vmem:[%s0 + $0x60] sm:$0xff]
    %v88 = vld [vmem:[%s0 + $0x68] sm:$0xff]
    %v89 = vld [vmem:[%s0 + $0x70] sm:$0xff]
    %v90 = vld [vmem:[%s0 + $0x78] sm:$0xff]
    %v91 = vpack.c.bf16 %v76, %v75
    %v92 = vpack.c.bf16 %v78, %v77
    %v93 = vpack.c.bf16 %v80, %v79
    %v94 = vpack.c.bf16 %v82, %v81
    %v95 = vpack.c.bf16 %v84, %v83
    %v96 = vpack.c.bf16 %v86, %v85
    %v97 = vpack.c.bf16 %v88, %v87
    %v98 = vpack.c.bf16 %v90, %v89
    %v99 = vld [vmem:[%s1] sm:$0xff]
    %v100 = vld [vmem:[%s1 + $0x8] sm:$0xf]
    %v101 = vld [vmem:[%s1 + $0xc] sm:$0xff]
    %v102 = vld [vmem:[%s1 + $0x14] sm:$0xf]
    %v103 = vld [vmem:[%s1 + $0x18] sm:$0xff]
    %v104 = vld [vmem:[%s1 + $0x20] sm:$0xf]
    %v105 = vld [vmem:[%s1 + $0x24] sm:$0xff]
    %v106 = vld [vmem:[%s1 + $0x2c] sm:$0xf]
    %v107 = vld [vmem:[%s1 + $0x30] sm:$0xff]
    %v108 = vld [vmem:[%s1 + $0x38] sm:$0xf]
    %v109 = vld [vmem:[%s1 + $0x3c] sm:$0xff]
    %v110 = vld [vmem:[%s1 + $0x44] sm:$0xf]
    %v111 = vld [vmem:[%s1 + $0x48] sm:$0xff]
    %v112 = vld [vmem:[%s1 + $0x50] sm:$0xf]
    %v113 = vld [vmem:[%s1 + $0x54] sm:$0xff]
    %v114 = vld [vmem:[%s1 + $0x5c] sm:$0xf]
    %v115 = vld [vmem:[%s1 + $0x60] sm:$0xff]
    %v116 = vld [vmem:[%s1 + $0x68] sm:$0xf]
    %v117 = vld [vmem:[%s1 + $0x6c] sm:$0xff]
    %v118 = vld [vmem:[%s1 + $0x74] sm:$0xf]
    %v119 = vld [vmem:[%s1 + $0x78] sm:$0xff]
    %v120 = vld [vmem:[%s1 + $0x80] sm:$0xf]
    %v121 = vld [vmem:[%s1 + $0x84] sm:$0xff]
    %v122 = vld [vmem:[%s1 + $0x8c] sm:$0xf]
    %v123 = vld [vmem:[%s1 + $0x90] sm:$0xff]
    %v124 = vld [vmem:[%s1 + $0x98] sm:$0xf]
    %v125 = vld [vmem:[%s1 + $0x9c] sm:$0xff]
    %v126 = vld [vmem:[%s1 + $0xa4] sm:$0xf]
    %v127 = vld [vmem:[%s1 + $0xa8] sm:$0xff]
    %v128 = vld [vmem:[%s1 + $0xb0] sm:$0xf]
    %v129 = vld [vmem:[%s1 + $0xb4] sm:$0xff]
    %v130 = vld [vmem:[%s1 + $0xbc] sm:$0xf]
    %v163 = vunpack.c.l.b16 %v99
    %v164 = vunpack.c.h.b16 %v99
    %v165 = vunpack.c.l.b16 %v100
    %v166 = vunpack.c.l.b16 %v101
    %v167 = vunpack.c.h.b16 %v101
    %v168 = vunpack.c.l.b16 %v102
    %v169 = vunpack.c.l.b16 %v103
    %v170 = vunpack.c.h.b16 %v103
    %v171 = vunpack.c.l.b16 %v104
    %v172 = vunpack.c.l.b16 %v105
    %v173 = vunpack.c.h.b16 %v105
    %v174 = vunpack.c.l.b16 %v106
    %v175 = vunpack.c.l.b16 %v107
    %v176 = vunpack.c.h.b16 %v107
    %v177 = vunpack.c.l.b16 %v108
    %v178 = vunpack.c.l.b16 %v109
    %v179 = vunpack.c.h.b16 %v109
    %v180 = vunpack.c.l.b16 %v110
    %v181 = vunpack.c.l.b16 %v111
    %v182 = vunpack.c.h.b16 %v111
    %v183 = vunpack.c.l.b16 %v112
    %v184 = vunpack.c.l.b16 %v113
    %v185 = vunpack.c.h.b16 %v113
    %v186 = vunpack.c.l.b16 %v114
    %v187 = vunpack.c.l.b16 %v115
    %v188 = vunpack.c.h.b16 %v115
    %v189 = vunpack.c.l.b16 %v116
    %v190 = vunpack.c.l.b16 %v117
    %v191 = vunpack.c.h.b16 %v117
    %v192 = vunpack.c.l.b16 %v118
    %v193 = vunpack.c.l.b16 %v119
    %v194 = vunpack.c.h.b16 %v119
    %v195 = vunpack.c.l.b16 %v120
    %v196 = vunpack.c.l.b16 %v121
    %v197 = vunpack.c.h.b16 %v121
    %v198 = vunpack.c.l.b16 %v122
    %v199 = vunpack.c.l.b16 %v123
    %v200 = vunpack.c.h.b16 %v123
    %v201 = vunpack.c.l.b16 %v124
    %v202 = vunpack.c.l.b16 %v125
    %v203 = vunpack.c.h.b16 %v125
    %v204 = vunpack.c.l.b16 %v126
    %v205 = vunpack.c.l.b16 %v127
    %v206 = vunpack.c.h.b16 %v127
    %v207 = vunpack.c.l.b16 %v128
    %v208 = vunpack.c.l.b16 %v129
    %v209 = vunpack.c.h.b16 %v129
    %v210 = vunpack.c.l.b16 %v130
    %v211 = vpack.c.b16 %v166, %v163
    %v212 = vpack.c.b16 %v167, %v164
    %v213 = vpack.c.b16 %v168, %v165
    %v214 = vpack.c.b16 %v172, %v169
    %v215 = vpack.c.b16 %v173, %v170
    %v216 = vpack.c.b16 %v174, %v171
    %v217 = vpack.c.b16 %v178, %v175
    %v218 = vpack.c.b16 %v179, %v176
    %v219 = vpack.c.b16 %v180, %v177
    %v220 = vpack.c.b16 %v184, %v181
    %v221 = vpack.c.b16 %v185, %v182
    %v222 = vpack.c.b16 %v186, %v183
    %v223 = vpack.c.b16 %v190, %v187
    %v224 = vpack.c.b16 %v191, %v188
    %v225 = vpack.c.b16 %v192, %v189
    %v226 = vpack.c.b16 %v196, %v193
    %v227 = vpack.c.b16 %v197, %v194
    %v228 = vpack.c.b16 %v198, %v195
    %v229 = vpack.c.b16 %v202, %v199
    %v230 = vpack.c.b16 %v203, %v200
    %v231 = vpack.c.b16 %v204, %v201
    %v232 = vpack.c.b16 %v208, %v205
    %v233 = vpack.c.b16 %v209, %v206
    %v234 = vpack.c.b16 %v210, %v207
    %259 = vmatprep.subr.bf16.mxu0 %v212
    %260 = vmatpush1.bf16.msra.mxu0 %v211
    %261 = vmatprep.subr.bf16.mxu0 %v215
    %262 = vmatpush1.bf16.msra.mxu0 %v214
    %263 = vmatprep.subr.bf16.mxu0 %v218
    %264 = vmatpush1.bf16.msra.mxu0 %v217
    %265 = vmatprep.subr.bf16.mxu0 %v221
    %266 = vmatpush1.bf16.msra.mxu0 %v220
    %267 = vmatprep.subr.bf16.mxu0 %v224
    %268 = vmatpush1.bf16.msra.mxu0 %v223
    %269 = vmatprep.subr.bf16.mxu0 %v227
    %270 = vmatpush1.bf16.msra.mxu0 %v226
    %271 = vmatprep.subr.bf16.mxu0 %v230
    %272 = vmatpush1.bf16.msra.mxu0 %v229
    %273 = vmatprep.subr.bf16.mxu0 %v233
    %274 = vmatpush1.bf16.msra.mxu0 %v232
    %275 = vmatprep.subr.bf16.mxu0 0
    %276 = vmatpush1.bf16.msra.mxu0 0
    %277 = vmatprep.subr.bf16.mxu0 0
    %278 = vmatpush1.bf16.msra.mxu0 0
    %279 = vmatprep.subr.bf16.mxu0 0
    %280 = vmatpush1.bf16.msra.mxu0 0
    %281 = vmatprep.subr.bf16.mxu0 0
    %282 = vmatpush1.bf16.msra.mxu0 0
    %283 = vmatprep.subr.bf16.mxu0 0
    %284 = vmatpush1.bf16.msra.mxu0 0
    %285 = vmatprep.subr.bf16.mxu0 0
    %286 = vmatpush1.bf16.msra.mxu0 0
    %287 = vmatprep.subr.bf16.mxu0 0
    %288 = vmatpush1.bf16.msra.mxu0 0
    %289 = vmatprep.subr.bf16.mxu0 0
    %290 = vmatpush1.bf16.msra.mxu0 0
    %291 = vmatprep.mubr.bf16.mxu0 0
    %292 = vmatmul.mubr.bf16.gmra.mrb[0].mxu0 %v91
    %v293 = vpop.f32.mrb[0].mxu0
    %v294 = vadd.f32 0.0, %v293
    %v295 = vpop.f32.mrb[0].mxu0
    %v296 = vadd.f32 0.0, %v295
    %v297 = vpop.f32.mrb[0].mxu0
    %v298 = vadd.f32 0.0, %v297
    %v299 = vpop.f32.mrb[0].mxu0
    %v300 = vadd.f32 0.0, %v299
    %301 = vmatprep.mubr.bf16.mxu0 0
    %302 = vmatmul.mubr.bf16.gmra.mrb[0].mxu0 %v92
    %v303 = vpop.f32.mrb[0].mxu0
    %v304 = vadd.f32 0.0, %v303
    %v305 = vpop.f32.mrb[0].mxu0
    %v306 = vadd.f32 0.0, %v305
    %v307 = vpop.f32.mrb[0].mxu0
    %v308 = vadd.f32 0.0, %v307
    %v309 = vpop.f32.mrb[0].mxu0
    %v310 = vadd.f32 0.0, %v309
    %311 = vmatprep.mubr.bf16.mxu0 0
    %312 = vmatmul.mubr.bf16.gmra.mrb[0].mxu0 %v93
    %v313 = vpop.f32.mrb[0].mxu0
    %v314 = vadd.f32 0.0, %v313
    %v315 = vpop.f32.mrb[0].mxu0
    %v316 = vadd.f32 0.0, %v315
    %v317 = vpop.f32.mrb[0].mxu0
    %v318 = vadd.f32 0.0, %v317
    %v319 = vpop.f32.mrb[0].mxu0
    %v320 = vadd.f32 0.0, %v319
    %321 = vmatprep.mubr.bf16.mxu0 0
    %322 = vmatmul.mubr.bf16.gmra.mrb[0].mxu0 %v94
    %v323 = vpop.f32.mrb[0].mxu0
    %v324 = vadd.f32 0.0, %v323
    %v325 = vpop.f32.mrb[0].mxu0
    %v326 = vadd.f32 0.0, %v325
    %v327 = vpop.f32.mrb[0].mxu0
    %v328 = vadd.f32 0.0, %v327
    %v329 = vpop.f32.mrb[0].mxu0
    %v330 = vadd.f32 0.0, %v329
    %331 = vmatprep.mubr.bf16.mxu0 0
    %332 = vmatmul.mubr.bf16.gmra.mrb[0].mxu0 %v95
    %v333 = vpop.f32.mrb[0].mxu0
    %v334 = vadd.f32 0.0, %v333
    %v335 = vpop.f32.mrb[0].mxu0
    %v336 = vadd.f32 0.0, %v335
    %v337 = vpop.f32.mrb[0].mxu0
    %v338 = vadd.f32 0.0, %v337
    %v339 = vpop.f32.mrb[0].mxu0
    %v340 = vadd.f32 0.0, %v339
    %341 = vmatprep.mubr.bf16.mxu0 0
    %342 = vmatmul.mubr.bf16.gmra.mrb[0].mxu0 %v96
    %v343 = vpop.f32.mrb[0].mxu0
    %v344 = vadd.f32 0.0, %v343
    %v345 = vpop.f32.mrb[0].mxu0
    %v346 = vadd.f32 0.0, %v345
    %v347 = vpop.f32.mrb[0].mxu0
    %v348 = vadd.f32 0.0, %v347
    %v349 = vpop.f32.mrb[0].mxu0
    %v350 = vadd.f32 0.0, %v349
    %351 = vmatprep.mubr.bf16.mxu0 0
    %352 = vmatmul.mubr.bf16.gmra.mrb[0].mxu0 %v97
    %v353 = vpop.f32.mrb[0].mxu0
    %v354 = vadd.f32 0.0, %v353
    %v355 = vpop.f32.mrb[0].mxu0
    %v356 = vadd.f32 0.0, %v355
    %v357 = vpop.f32.mrb[0].mxu0
    %v358 = vadd.f32 0.0, %v357
    %v359 = vpop.f32.mrb[0].mxu0
    %v360 = vadd.f32 0.0, %v359
    %361 = vmatprep.mubr.bf16.mxu0 0
    %362 = vmatmul.mubr.bf16.gmra.mrb[0].mxu0 %v98
    %v363 = vpop.f32.mrb[0].mxu0
    %v364 = vadd.f32 0.0, %v363
    %v365 = vpop.f32.mrb[0].mxu0
    %v366 = vadd.f32 0.0, %v365
    %v367 = vpop.f32.mrb[0].mxu0
    %v368 = vadd.f32 0.0, %v367
    %v369 = vpop.f32.mrb[0].mxu0
    %v370 = vadd.f32 0.0, %v369
    %371 = vdwg.mxu0
    %372 = vmatprep.subr.bf16.mxu0 0
    %373 = vmatpush1.bf16.msra.mxu0 %v213
    %374 = vmatprep.subr.bf16.mxu0 0
    %375 = vmatpush1.bf16.msra.mxu0 %v216
    %376 = vmatprep.subr.bf16.mxu0 0
    %377 = vmatpush1.bf16.msra.mxu0 %v219
    %378 = vmatprep.subr.bf16.mxu0 0
    %379 = vmatpush1.bf16.msra.mxu0 %v222
    %380 = vmatprep.subr.bf16.mxu0 0
    %381 = vmatpush1.bf16.msra.mxu0 %v225
    %382 = vmatprep.subr.bf16.mxu0 0
    %383 = vmatpush1.bf16.msra.mxu0 %v228
    %384 = vmatprep.subr.bf16.mxu0 0
    %385 = vmatpush1.bf16.msra.mxu0 %v231
    %386 = vmatprep.subr.bf16.mxu0 0
    %387 = vmatpush1.bf16.msra.mxu0 %v234
    %388 = vmatprep.subr.bf16.mxu0 0
    %389 = vmatpush1.bf16.msra.mxu0 0
    %390 = vmatprep.subr.bf16.mxu0 0
    %391 = vmatpush1.bf16.msra.mxu0 0
    %392 = vmatprep.subr.bf16.mxu0 0
    %393 = vmatpush1.bf16.msra.mxu0 0
    %394 = vmatprep.subr.bf16.mxu0 0
    %395 = vmatpush1.bf16.msra.mxu0 0
    %396 = vmatprep.subr.bf16.mxu0 0
    %397 = vmatpush1.bf16.msra.mxu0 0
    %398 = vmatprep.subr.bf16.mxu0 0
    %399 = vmatpush1.bf16.msra.mxu0 0
    %400 = vmatprep.subr.bf16.mxu0 0
    %401 = vmatpush1.bf16.msra.mxu0 0
    %402 = vmatprep.subr.bf16.mxu0 0
    %403 = vmatpush1.bf16.msra.mxu0 0
    %404 = vmatprep.mubr.bf16.mxu0 0
    %405 = vmatmul.mubr.bf16.gmra.mrb[0].mxu0 %v91
    %v406 = vpop.f32.mrb[0].mxu0
    %v407 = vadd.f32 0.0, %v406
    %v408 = vpop.f32.mrb[0].mxu0
    %v409 = vpop.f32.mrb[0].mxu0
    %v410 = vadd.f32 0.0, %v409
    %v411 = vpop.f32.mrb[0].mxu0
    %412 = vmatprep.mubr.bf16.mxu0 0
    %413 = vmatmul.mubr.bf16.gmra.mrb[0].mxu0 %v92
    %v414 = vpop.f32.mrb[0].mxu0
    %v415 = vadd.f32 0.0, %v414
    %v416 = vpop.f32.mrb[0].mxu0
    %v417 = vpop.f32.mrb[0].mxu0
    %v418 = vadd.f32 0.0, %v417
    %v419 = vpop.f32.mrb[0].mxu0
    %420 = vmatprep.mubr.bf16.mxu0 0
    %421 = vmatmul.mubr.bf16.gmra.mrb[0].mxu0 %v93
    %v422 = vpop.f32.mrb[0].mxu0
    %v423 = vadd.f32 0.0, %v422
    %v424 = vpop.f32.mrb[0].mxu0
    %v425 = vpop.f32.mrb[0].mxu0
    %v426 = vadd.f32 0.0, %v425
    %v427 = vpop.f32.mrb[0].mxu0
    %428 = vmatprep.mubr.bf16.mxu0 0
    %429 = vmatmul.mubr.bf16.gmra.mrb[0].mxu0 %v94
    %v430 = vpop.f32.mrb[0].mxu0
    %v431 = vadd.f32 0.0, %v430
    %v432 = vpop.f32.mrb[0].mxu0
    %v433 = vpop.f32.mrb[0].mxu0
    %v434 = vadd.f32 0.0, %v433
    %v435 = vpop.f32.mrb[0].mxu0
    %436 = vmatprep.mubr.bf16.mxu0 0
    %437 = vmatmul.mubr.bf16.gmra.mrb[0].mxu0 %v95
    %v438 = vpop.f32.mrb[0].mxu0
    %v439 = vadd.f32 0.0, %v438
    %v440 = vpop.f32.mrb[0].mxu0
    %v441 = vpop.f32.mrb[0].mxu0
    %v442 = vadd.f32 0.0, %v441
    %v443 = vpop.f32.mrb[0].mxu0
    %444 = vmatprep.mubr.bf16.mxu0 0
    %445 = vmatmul.mubr.bf16.gmra.mrb[0].mxu0 %v96
    %v446 = vpop.f32.mrb[0].mxu0
    %v447 = vadd.f32 0.0, %v446
    %v448 = vpop.f32.mrb[0].mxu0
    %v449 = vpop.f32.mrb[0].mxu0
    %v450 = vadd.f32 0.0, %v449
    %v451 = vpop.f32.mrb[0].mxu0
    %452 = vmatprep.mubr.bf16.mxu0 0
    %453 = vmatmul.mubr.bf16.gmra.mrb[0].mxu0 %v97
    %v454 = vpop.f32.mrb[0].mxu0
    %v455 = vadd.f32 0.0, %v454
    %v456 = vpop.f32.mrb[0].mxu0
    %v457 = vpop.f32.mrb[0].mxu0
    %v458 = vadd.f32 0.0, %v457
    %v459 = vpop.f32.mrb[0].mxu0
    %460 = vmatprep.mubr.bf16.mxu0 0
    %461 = vmatmul.mubr.bf16.gmra.mrb[0].mxu0 %v98
    %v462 = vpop.f32.mrb[0].mxu0
    %v463 = vadd.f32 0.0, %v462
    %v464 = vpop.f32.mrb[0].mxu0
    %v465 = vpop.f32.mrb[0].mxu0
    %v466 = vadd.f32 0.0, %v465
    %v467 = vpop.f32.mrb[0].mxu0
    %468 = vdwg.mxu0
    %v469 = vld [vmem:[#allocation7] sm:$0xff]
    %v470 = vld [vmem:[#allocation7 + $0x8] sm:$0xff]
    %v471 = vld [vmem:[#allocation7 + $0x10] sm:$0xff]
    %v472 = vld [vmem:[#allocation7 + $0x18] sm:$0xff]
    %v473 = vld [vmem:[#allocation7 + $0x20] sm:$0xff]
    %v474 = vld [vmem:[#allocation7 + $0x28] sm:$0xff]
    %v475 = vld [vmem:[#allocation7 + $0x30] sm:$0xff]
    %v476 = vld [vmem:[#allocation7 + $0x38] sm:$0xff]
    %s477 = scalar_lea.vmem [#allocation7], 64
    %v478 = vld [vmem:[%s477] sm:$0xff]
    %v479 = vld [vmem:[%s477 + $0x8] sm:$0xff]
    %v480 = vld [vmem:[%s477 + $0x10] sm:$0xff]
    %v481 = vld [vmem:[%s477 + $0x18] sm:$0xff]
    %v482 = vld [vmem:[%s477 + $0x20] sm:$0xff]
    %v483 = vld [vmem:[%s477 + $0x28] sm:$0xff]
    %v484 = vld [vmem:[%s477 + $0x30] sm:$0xff]
    %v485 = vld [vmem:[%s477 + $0x38] sm:$0xff]
    %v486 = vld [vmem:[%s8] sm:$0xff]
    %v487 = vld [vmem:[%s8 + $0x8] sm:$0xff]
    %v488 = vld [vmem:[%s8 + $0x10] sm:$0xff]
    %v489 = vld [vmem:[%s8 + $0x18] sm:$0xff]
    %v490 = vld [vmem:[%s8 + $0x20] sm:$0xff]
    %v491 = vld [vmem:[%s8 + $0x28] sm:$0xff]
    %v492 = vld [vmem:[%s8 + $0x30] sm:$0xff]
    %v493 = vld [vmem:[%s8 + $0x38] sm:$0xff]
    %s494 = scalar_lea.vmem %s8, 64
    %v495 = vld [vmem:[%s494] sm:$0xff]
    %v496 = vld [vmem:[%s494 + $0x8] sm:$0xff]
    %v497 = vld [vmem:[%s494 + $0x10] sm:$0xff]
    %v498 = vld [vmem:[%s494 + $0x18] sm:$0xff]
    %v499 = vld [vmem:[%s494 + $0x20] sm:$0xff]
    %v500 = vld [vmem:[%s494 + $0x28] sm:$0xff]
    %v501 = vld [vmem:[%s494 + $0x30] sm:$0xff]
    %v502 = vld [vmem:[%s494 + $0x38] sm:$0xff]
    %v503 = vlaneseq
    %v504 = vshrl.u32 %v503, 7
    %v505 = vadd.s32 %v504, 8
    %v506 = vadd.s32 %v504, 16
    %v507 = vadd.s32 %v504, 24
    %v508 = vadd.s32 %v504, 32
    %v509 = vadd.s32 %v504, 40
    %v510 = vadd.s32 %v504, 48
    %v511 = vadd.s32 %v504, 56
    %v512 = vadd.s32 %v504, 64
    %v513 = vadd.s32 %v504, 72
    %v514 = vadd.s32 %v504, 80
    %v515 = vadd.s32 %v504, 88
    %v516 = vadd.s32 %v504, 96
    %v517 = vadd.s32 %v504, 104
    %v518 = vadd.s32 %v504, 112
    %v519 = vadd.s32 %v504, 120
    %v520 = vadd.s32 %v504, 128
    %v521 = vadd.s32 %v504, 136
    %v522 = vadd.s32 %v504, 144
    %v523 = vadd.s32 %v504, 152
    %v524 = vadd.s32 %v504, 160
    %v525 = vadd.s32 %v504, 168
    %v526 = vadd.s32 %v504, 176
    %v527 = vadd.s32 %v504, 184
    %v528 = vadd.s32 %v504, 192
    %v529 = vadd.s32 %v504, 200
    %v530 = vadd.s32 %v504, 208
    %v531 = vadd.s32 %v504, 216
    %v532 = vadd.s32 %v504, 224
    %v533 = vadd.s32 %v504, 232
    %v534 = vadd.s32 %v504, 240
    %v535 = vadd.s32 %v504, 248
    %vm536 = vcmp.lt.s32.totalorder %v504, 0
    %v537 = vsub.s32 0, %v504
    %v538 = vsel %vm536, %v537, %v504
    %v539 = vshrl.u32 %v538, 6
    %v540 = vand.u32 %v538, 63
    %v541 = vsub.s32 0, %v540
    %v542 = vsel %vm536, %v541, %v540
    %vm543 = vcmp.lt.s32.totalorder %v505, 0
    %v544 = vsub.s32 0, %v505
    %v545 = vsel %vm543, %v544, %v505
    %v546 = vshrl.u32 %v545, 6
    %v547 = vand.u32 %v545, 63
    %v548 = vsub.s32 0, %v547
    %v549 = vsel %vm543, %v548, %v547
    %vm550 = vcmp.lt.s32.totalorder %v506, 0
    %v551 = vsub.s32 0, %v506
    %v552 = vsel %vm550, %v551, %v506
    %v553 = vshrl.u32 %v552, 6
    %v554 = vand.u32 %v552, 63
    %v555 = vsub.s32 0, %v554
    %v556 = vsel %vm550, %v555, %v554
    %vm557 = vcmp.lt.s32.totalorder %v507, 0
    %v558 = vsub.s32 0, %v507
    %v559 = vsel %vm557, %v558, %v507
    %v560 = vshrl.u32 %v559, 6
    %v561 = vand.u32 %v559, 63
    %v562 = vsub.s32 0, %v561
    %v563 = vsel %vm557, %v562, %v561
    %vm564 = vcmp.lt.s32.totalorder %v508, 0
    %v565 = vsub.s32 0, %v508
    %v566 = vsel %vm564, %v565, %v508
    %v567 = vshrl.u32 %v566, 6
    %v568 = vand.u32 %v566, 63
    %v569 = vsub.s32 0, %v568
    %v570 = vsel %vm564, %v569, %v568
    %vm571 = vcmp.lt.s32.totalorder %v509, 0
    %v572 = vsub.s32 0, %v509
    %v573 = vsel %vm571, %v572, %v509
    %v574 = vshrl.u32 %v573, 6
    %v575 = vand.u32 %v573, 63
    %v576 = vsub.s32 0, %v575
    %v577 = vsel %vm571, %v576, %v575
    %vm578 = vcmp.lt.s32.totalorder %v510, 0
    %v579 = vsub.s32 0, %v510
    %v580 = vsel %vm578, %v579, %v510
    %v581 = vshrl.u32 %v580, 6
    %v582 = vand.u32 %v580, 63
    %v583 = vsub.s32 0, %v582
    %v584 = vsel %vm578, %v583, %v582
    %vm585 = vcmp.lt.s32.totalorder %v511, 0
    %v586 = vsub.s32 0, %v511
    %v587 = vsel %vm585, %v586, %v511
    %v588 = vshrl.u32 %v587, 6
    %v589 = vand.u32 %v587, 63
    %v590 = vsub.s32 0, %v589
    %v591 = vsel %vm585, %v590, %v589
    %vm592 = vcmp.lt.s32.totalorder %v512, 0
    %v593 = vsub.s32 0, %v512
    %v594 = vsel %vm592, %v593, %v512
    %v595 = vshrl.u32 %v594, 6
    %v596 = vand.u32 %v594, 63
    %v597 = vsub.s32 0, %v596
    %v598 = vsel %vm592, %v597, %v596
    %vm599 = vcmp.lt.s32.totalorder %v513, 0
    %v600 = vsub.s32 0, %v513
    %v601 = vsel %vm599, %v600, %v513
    %v602 = vshrl.u32 %v601, 6
    %v603 = vand.u32 %v601, 63
    %v604 = vsub.s32 0, %v603
    %v605 = vsel %vm599, %v604, %v603
    %vm606 = vcmp.lt.s32.totalorder %v514, 0
    %v607 = vsub.s32 0, %v514
    %v608 = vsel %vm606, %v607, %v514
    %v609 = vshrl.u32 %v608, 6
    %v610 = vand.u32 %v608, 63
    %v611 = vsub.s32 0, %v610
    %v612 = vsel %vm606, %v611, %v610
    %vm613 = vcmp.lt.s32.totalorder %v515, 0
    %v614 = vsub.s32 0, %v515
    %v615 = vsel %vm613, %v614, %v515
    %v616 = vshrl.u32 %v615, 6
    %v617 = vand.u32 %v615, 63
    %v618 = vsub.s32 0, %v617
    %v619 = vsel %vm613, %v618, %v617
    %vm620 = vcmp.lt.s32.totalorder %v516, 0
    %v621 = vsub.s32 0, %v516
    %v622 = vsel %vm620, %v621, %v516
    %v623 = vshrl.u32 %v622, 6
    %v624 = vand.u32 %v622, 63
    %v625 = vsub.s32 0, %v624
    %v626 = vsel %vm620, %v625, %v624
    %vm627 = vcmp.lt.s32.totalorder %v517, 0
    %v628 = vsub.s32 0, %v517
    %v629 = vsel %vm627, %v628, %v517
    %v630 = vshrl.u32 %v629, 6
    %v631 = vand.u32 %v629, 63
    %v632 = vsub.s32 0, %v631
    %v633 = vsel %vm627, %v632, %v631
    %vm634 = vcmp.lt.s32.totalorder %v518, 0
    %v635 = vsub.s32 0, %v518
    %v636 = vsel %vm634, %v635, %v518
    %v637 = vshrl.u32 %v636, 6
    %v638 = vand.u32 %v636, 63
    %v639 = vsub.s32 0, %v638
    %v640 = vsel %vm634, %v639, %v638
    %vm641 = vcmp.lt.s32.totalorder %v519, 0
    %v642 = vsub.s32 0, %v519
    %v643 = vsel %vm641, %v642, %v519
    %v644 = vshrl.u32 %v643, 6
    %v645 = vand.u32 %v643, 63
    %v646 = vsub.s32 0, %v645
    %v647 = vsel %vm641, %v646, %v645
    %vm648 = vcmp.lt.s32.totalorder %v520, 0
    %v649 = vsub.s32 0, %v520
    %v650 = vsel %vm648, %v649, %v520
    %v651 = vshrl.u32 %v650, 6
    %v652 = vand.u32 %v650, 63
    %v653 = vsub.s32 0, %v652
    %v654 = vsel %vm648, %v653, %v652
    %vm655 = vcmp.lt.s32.totalorder %v521, 0
    %v656 = vsub.s32 0, %v521
    %v657 = vsel %vm655, %v656, %v521
    %v658 = vshrl.u32 %v657, 6
    %v659 = vand.u32 %v657, 63
    %v660 = vsub.s32 0, %v659
    %v661 = vsel %vm655, %v660, %v659
    %vm662 = vcmp.lt.s32.totalorder %v522, 0
    %v663 = vsub.s32 0, %v522
    %v664 = vsel %vm662, %v663, %v522
    %v665 = vshrl.u32 %v664, 6
    %v666 = vand.u32 %v664, 63
    %v667 = vsub.s32 0, %v666
    %v668 = vsel %vm662, %v667, %v666
    %vm669 = vcmp.lt.s32.totalorder %v523, 0
    %v670 = vsub.s32 0, %v523
    %v671 = vsel %vm669, %v670, %v523
    %v672 = vshrl.u32 %v671, 6
    %v673 = vand.u32 %v671, 63
    %v674 = vsub.s32 0, %v673
    %v675 = vsel %vm669, %v674, %v673
    %vm676 = vcmp.lt.s32.totalorder %v524, 0
    %v677 = vsub.s32 0, %v524
    %v678 = vsel %vm676, %v677, %v524
    %v679 = vshrl.u32 %v678, 6
    %v680 = vand.u32 %v678, 63
    %v681 = vsub.s32 0, %v680
    %v682 = vsel %vm676, %v681, %v680
    %vm683 = vcmp.lt.s32.totalorder %v525, 0
    %v684 = vsub.s32 0, %v525
    %v685 = vsel %vm683, %v684, %v525
    %v686 = vshrl.u32 %v685, 6
    %v687 = vand.u32 %v685, 63
    %v688 = vsub.s32 0, %v687
    %v689 = vsel %vm683, %v688, %v687
    %vm690 = vcmp.lt.s32.totalorder %v526, 0
    %v691 = vsub.s32 0, %v526
    %v692 = vsel %vm690, %v691, %v526
    %v693 = vshrl.u32 %v692, 6
    %v694 = vand.u32 %v692, 63
    %v695 = vsub.s32 0, %v694
    %v696 = vsel %vm690, %v695, %v694
    %vm697 = vcmp.lt.s32.totalorder %v527, 0
    %v698 = vsub.s32 0, %v527
    %v699 = vsel %vm697, %v698, %v527
    %v700 = vshrl.u32 %v699, 6
    %v701 = vand.u32 %v699, 63
    %v702 = vsub.s32 0, %v701
    %v703 = vsel %vm697, %v702, %v701
    %vm704 = vcmp.lt.s32.totalorder %v528, 0
    %v705 = vsub.s32 0, %v528
    %v706 = vsel %vm704, %v705, %v528
    %v707 = vshrl.u32 %v706, 6
    %v708 = vand.u32 %v706, 63
    %v709 = vsub.s32 0, %v708
    %v710 = vsel %vm704, %v709, %v708
    %vm711 = vcmp.lt.s32.totalorder %v529, 0
    %v712 = vsub.s32 0, %v529
    %v713 = vsel %vm711, %v712, %v529
    %v714 = vshrl.u32 %v713, 6
    %v715 = vand.u32 %v713, 63
    %v716 = vsub.s32 0, %v715
    %v717 = vsel %vm711, %v716, %v715
    %vm718 = vcmp.lt.s32.totalorder %v530, 0
    %v719 = vsub.s32 0, %v530
    %v720 = vsel %vm718, %v719, %v530
    %v721 = vshrl.u32 %v720, 6
    %v722 = vand.u32 %v720, 63
    %v723 = vsub.s32 0, %v722
    %v724 = vsel %vm718, %v723, %v722
    %vm725 = vcmp.lt.s32.totalorder %v531, 0
    %v726 = vsub.s32 0, %v531
    %v727 = vsel %vm725, %v726, %v531
    %v728 = vshrl.u32 %v727, 6
    %v729 = vand.u32 %v727, 63
    %v730 = vsub.s32 0, %v729
    %v731 = vsel %vm725, %v730, %v729
    %vm732 = vcmp.lt.s32.totalorder %v532, 0
    %v733 = vsub.s32 0, %v532
    %v734 = vsel %vm732, %v733, %v532
    %v735 = vshrl.u32 %v734, 6
    %v736 = vand.u32 %v734, 63
    %v737 = vsub.s32 0, %v736
    %v738 = vsel %vm732, %v737, %v736
    %vm739 = vcmp.lt.s32.totalorder %v533, 0
    %v740 = vsub.s32 0, %v533
    %v741 = vsel %vm739, %v740, %v533
    %v742 = vshrl.u32 %v741, 6
    %v743 = vand.u32 %v741, 63
    %v744 = vsub.s32 0, %v743
    %v745 = vsel %vm739, %v744, %v743
    %vm746 = vcmp.lt.s32.totalorder %v534, 0
    %v747 = vsub.s32 0, %v534
    %v748 = vsel %vm746, %v747, %v534
    %v749 = vshrl.u32 %v748, 6
    %v750 = vand.u32 %v748, 63
    %v751 = vsub.s32 0, %v750
    %v752 = vsel %vm746, %v751, %v750
    %vm753 = vcmp.lt.s32.totalorder %v535, 0
    %v754 = vsub.s32 0, %v535
    %v755 = vsel %vm753, %v754, %v535
    %v756 = vshrl.u32 %v755, 6
    %v757 = vand.u32 %v755, 63
    %v758 = vsub.s32 0, %v757
    %v759 = vsel %vm753, %v758, %v757
    %vm760 = vcmp.ne.s32.totalorder %v542, 0
    %vm761 = vcmp.ne.s32.totalorder %v549, 0
    %vm762 = vcmp.ne.s32.totalorder %v556, 0
    %vm763 = vcmp.ne.s32.totalorder %v563, 0
    %vm764 = vcmp.ne.s32.totalorder %v570, 0
    %vm765 = vcmp.ne.s32.totalorder %v577, 0
    %vm766 = vcmp.ne.s32.totalorder %v584, 0
    %vm767 = vcmp.ne.s32.totalorder %v591, 0
    %vm768 = vcmp.ne.s32.totalorder %v598, 0
    %vm769 = vcmp.ne.s32.totalorder %v605, 0
    %vm770 = vcmp.ne.s32.totalorder %v612, 0
    %vm771 = vcmp.ne.s32.totalorder %v619, 0
    %vm772 = vcmp.ne.s32.totalorder %v626, 0
    %vm773 = vcmp.ne.s32.totalorder %v633, 0
    %vm774 = vcmp.ne.s32.totalorder %v640, 0
    %vm775 = vcmp.ne.s32.totalorder %v647, 0
    %vm776 = vcmp.ne.s32.totalorder %v654, 0
    %vm777 = vcmp.ne.s32.totalorder %v661, 0
    %vm778 = vcmp.ne.s32.totalorder %v668, 0
    %vm779 = vcmp.ne.s32.totalorder %v675, 0
    %vm780 = vcmp.ne.s32.totalorder %v682, 0
    %vm781 = vcmp.ne.s32.totalorder %v689, 0
    %vm782 = vcmp.ne.s32.totalorder %v696, 0
    %vm783 = vcmp.ne.s32.totalorder %v703, 0
    %vm784 = vcmp.ne.s32.totalorder %v710, 0
    %vm785 = vcmp.ne.s32.totalorder %v717, 0
    %vm786 = vcmp.ne.s32.totalorder %v724, 0
    %vm787 = vcmp.ne.s32.totalorder %v731, 0
    %vm788 = vcmp.ne.s32.totalorder %v738, 0
    %vm789 = vcmp.ne.s32.totalorder %v745, 0
    %vm790 = vcmp.ne.s32.totalorder %v752, 0
    %vm791 = vcmp.ne.s32.totalorder %v759, 0
    %vm792 = vcmp.lt.s32.totalorder %v542, 0
    %vm793 = vcmp.lt.s32.totalorder %v549, 0
    %vm794 = vcmp.lt.s32.totalorder %v556, 0
    %vm795 = vcmp.lt.s32.totalorder %v563, 0
    %vm796 = vcmp.lt.s32.totalorder %v570, 0
    %vm797 = vcmp.lt.s32.totalorder %v577, 0
    %vm798 = vcmp.lt.s32.totalorder %v584, 0
    %vm799 = vcmp.lt.s32.totalorder %v591, 0
    %vm800 = vcmp.lt.s32.totalorder %v598, 0
    %vm801 = vcmp.lt.s32.totalorder %v605, 0
    %vm802 = vcmp.lt.s32.totalorder %v612, 0
    %vm803 = vcmp.lt.s32.totalorder %v619, 0
    %vm804 = vcmp.lt.s32.totalorder %v626, 0
    %vm805 = vcmp.lt.s32.totalorder %v633, 0
    %vm806 = vcmp.lt.s32.totalorder %v640, 0
    %vm807 = vcmp.lt.s32.totalorder %v647, 0
    %vm808 = vcmp.lt.s32.totalorder %v654, 0
    %vm809 = vcmp.lt.s32.totalorder %v661, 0
    %vm810 = vcmp.lt.s32.totalorder %v668, 0
    %vm811 = vcmp.lt.s32.totalorder %v675, 0
    %vm812 = vcmp.lt.s32.totalorder %v682, 0
    %vm813 = vcmp.lt.s32.totalorder %v689, 0
    %vm814 = vcmp.lt.s32.totalorder %v696, 0
    %vm815 = vcmp.lt.s32.totalorder %v703, 0
    %vm816 = vcmp.lt.s32.totalorder %v710, 0
    %vm817 = vcmp.lt.s32.totalorder %v717, 0
    %vm818 = vcmp.lt.s32.totalorder %v724, 0
    %vm819 = vcmp.lt.s32.totalorder %v731, 0
    %vm820 = vcmp.lt.s32.totalorder %v738, 0
    %vm821 = vcmp.lt.s32.totalorder %v745, 0
    %vm822 = vcmp.lt.s32.totalorder %v752, 0
    %vm823 = vcmp.lt.s32.totalorder %v759, 0
    %vm824 = vmand %vm792, %vm760
    %vm825 = vmand %vm793, %vm761
    %vm826 = vmand %vm794, %vm762
    %vm827 = vmand %vm795, %vm763
    %vm828 = vmand %vm796, %vm764
    %vm829 = vmand %vm797, %vm765
    %vm830 = vmand %vm798, %vm766
    %vm831 = vmand %vm799, %vm767
    %vm832 = vmand %vm800, %vm768
    %vm833 = vmand %vm801, %vm769
    %vm834 = vmand %vm802, %vm770
    %vm835 = vmand %vm803, %vm771
    %vm836 = vmand %vm804, %vm772
    %vm837 = vmand %vm805, %vm773
    %vm838 = vmand %vm806, %vm774
    %vm839 = vmand %vm807, %vm775
    %vm840 = vmand %vm808, %vm776
    %vm841 = vmand %vm809, %vm777
    %vm842 = vmand %vm810, %vm778
    %vm843 = vmand %vm811, %vm779
    %vm844 = vmand %vm812, %vm780
    %vm845 = vmand %vm813, %vm781
    %vm846 = vmand %vm814, %vm782
    %vm847 = vmand %vm815, %vm783
    %vm848 = vmand %vm816, %vm784
    %vm849 = vmand %vm817, %vm785
    %vm850 = vmand %vm818, %vm786
    %vm851 = vmand %vm819, %vm787
    %vm852 = vmand %vm820, %vm788
    %vm853 = vmand %vm821, %vm789
    %vm854 = vmand %vm822, %vm790
    %vm855 = vmand %vm823, %vm791
    %v856 = vadd.s32 %v542, 64
    %v857 = vadd.s32 %v549, 64
    %v858 = vadd.s32 %v556, 64
    %v859 = vadd.s32 %v563, 64
    %v860 = vadd.s32 %v570, 64
    %v861 = vadd.s32 %v577, 64
    %v862 = vadd.s32 %v584, 64
    %v863 = vadd.s32 %v591, 64
    %v864 = vadd.s32 %v598, 64
    %v865 = vadd.s32 %v605, 64
    %v866 = vadd.s32 %v612, 64
    %v867 = vadd.s32 %v619, 64
    %v868 = vadd.s32 %v626, 64
    %v869 = vadd.s32 %v633, 64
    %v870 = vadd.s32 %v640, 64
    %v871 = vadd.s32 %v647, 64
    %v872 = vadd.s32 %v654, 64
    %v873 = vadd.s32 %v661, 64
    %v874 = vadd.s32 %v668, 64
    %v875 = vadd.s32 %v675, 64
    %v876 = vadd.s32 %v682, 64
    %v877 = vadd.s32 %v689, 64
    %v878 = vadd.s32 %v696, 64
    %v879 = vadd.s32 %v703, 64
    %v880 = vadd.s32 %v710, 64
    %v881 = vadd.s32 %v717, 64
    %v882 = vadd.s32 %v724, 64
    %v883 = vadd.s32 %v731, 64
    %v884 = vadd.s32 %v738, 64
    %v885 = vadd.s32 %v745, 64
    %v886 = vadd.s32 %v752, 64
    %v887 = vadd.s32 %v759, 64
    %v888 = vsel %vm824, %v856, %v542
    %v889 = vsel %vm825, %v857, %v549
    %v890 = vsel %vm826, %v858, %v556
    %v891 = vsel %vm827, %v859, %v563
    %v892 = vsel %vm828, %v860, %v570
    %v893 = vsel %vm829, %v861, %v577
    %v894 = vsel %vm830, %v862, %v584
    %v895 = vsel %vm831, %v863, %v591
    %v896 = vsel %vm832, %v864, %v598
    %v897 = vsel %vm833, %v865, %v605
    %v898 = vsel %vm834, %v866, %v612
    %v899 = vsel %vm835, %v867, %v619
    %v900 = vsel %vm836, %v868, %v626
    %v901 = vsel %vm837, %v869, %v633
    %v902 = vsel %vm838, %v870, %v640
    %v903 = vsel %vm839, %v871, %v647
    %v904 = vsel %vm840, %v872, %v654
    %v905 = vsel %vm841, %v873, %v661
    %v906 = vsel %vm842, %v874, %v668
    %v907 = vsel %vm843, %v875, %v675
    %v908 = vsel %vm844, %v876, %v682
    %v909 = vsel %vm845, %v877, %v689
    %v910 = vsel %vm846, %v878, %v696
    %v911 = vsel %vm847, %v879, %v703
    %v912 = vsel %vm848, %v880, %v710
    %v913 = vsel %vm849, %v881, %v717
    %v914 = vsel %vm850, %v882, %v724
    %v915 = vsel %vm851, %v883, %v731
    %v916 = vsel %vm852, %v884, %v738
    %v917 = vsel %vm853, %v885, %v745
    %v918 = vsel %vm854, %v886, %v752
    %v919 = vsel %vm855, %v887, %v759
    %v920 = vlaneseq
    %v921 = vand.u32 %v920, 127
    %vm922 = vcmp.le.s32.totalorder %v921, %v888
    %vm923 = vcmp.le.s32.totalorder %v921, %v889
    %vm924 = vcmp.le.s32.totalorder %v921, %v890
    %vm925 = vcmp.le.s32.totalorder %v921, %v891
    %vm926 = vcmp.le.s32.totalorder %v921, %v892
    %vm927 = vcmp.le.s32.totalorder %v921, %v893
    %vm928 = vcmp.le.s32.totalorder %v921, %v894
    %vm929 = vcmp.le.s32.totalorder %v921, %v895
    %vm930 = vcmp.le.s32.totalorder %v921, %v896
    %vm931 = vcmp.le.s32.totalorder %v921, %v897
    %vm932 = vcmp.le.s32.totalorder %v921, %v898
    %vm933 = vcmp.le.s32.totalorder %v921, %v899
    %vm934 = vcmp.le.s32.totalorder %v921, %v900
    %vm935 = vcmp.le.s32.totalorder %v921, %v901
    %vm936 = vcmp.le.s32.totalorder %v921, %v902
    %vm937 = vcmp.le.s32.totalorder %v921, %v903
    %vm938 = vcmp.le.s32.totalorder %v921, %v904
    %vm939 = vcmp.le.s32.totalorder %v921, %v905
    %vm940 = vcmp.le.s32.totalorder %v921, %v906
    %vm941 = vcmp.le.s32.totalorder %v921, %v907
    %vm942 = vcmp.le.s32.totalorder %v921, %v908
    %vm943 = vcmp.le.s32.totalorder %v921, %v909
    %vm944 = vcmp.le.s32.totalorder %v921, %v910
    %vm945 = vcmp.le.s32.totalorder %v921, %v911
    %vm946 = vcmp.le.s32.totalorder %v921, %v912
    %vm947 = vcmp.le.s32.totalorder %v921, %v913
    %vm948 = vcmp.le.s32.totalorder %v921, %v914
    %vm949 = vcmp.le.s32.totalorder %v921, %v915
    %vm950 = vcmp.le.s32.totalorder %v921, %v916
    %vm951 = vcmp.le.s32.totalorder %v921, %v917
    %vm952 = vcmp.le.s32.totalorder %v921, %v918
    %vm953 = vcmp.le.s32.totalorder %v921, %v919
    %v954 = vsel %vm922, 0.0, -1e+30
    %v955 = vsel %vm923, 0.0, -1e+30
    %v956 = vsel %vm924, 0.0, -1e+30
    %v957 = vsel %vm925, 0.0, -1e+30
    %v958 = vsel %vm926, 0.0, -1e+30
    %v959 = vsel %vm927, 0.0, -1e+30
    %v960 = vsel %vm928, 0.0, -1e+30
    %v961 = vsel %vm929, 0.0, -1e+30
    %v962 = vsel %vm930, 0.0, -1e+30
    %v963 = vsel %vm931, 0.0, -1e+30
    %v964 = vsel %vm932, 0.0, -1e+30
    %v965 = vsel %vm933, 0.0, -1e+30
    %v966 = vsel %vm934, 0.0, -1e+30
    %v967 = vsel %vm935, 0.0, -1e+30
    %v968 = vsel %vm936, 0.0, -1e+30
    %v969 = vsel %vm937, 0.0, -1e+30
    %v970 = vsel %vm938, 0.0, -1e+30
    %v971 = vsel %vm939, 0.0, -1e+30
    %v972 = vsel %vm940, 0.0, -1e+30
    %v973 = vsel %vm941, 0.0, -1e+30
    %v974 = vsel %vm942, 0.0, -1e+30
    %v975 = vsel %vm943, 0.0, -1e+30
    %v976 = vsel %vm944, 0.0, -1e+30
    %v977 = vsel %vm945, 0.0, -1e+30
    %v978 = vsel %vm946, 0.0, -1e+30
    %v979 = vsel %vm947, 0.0, -1e+30
    %v980 = vsel %vm948, 0.0, -1e+30
    %v981 = vsel %vm949, 0.0, -1e+30
    %v982 = vsel %vm950, 0.0, -1e+30
    %v983 = vsel %vm951, 0.0, -1e+30
    %v984 = vsel %vm952, 0.0, -1e+30
    %v985 = vsel %vm953, 0.0, -1e+30
    %v986 = vpack.c.bf16 %v410, %v407
    %v987 = vpack.c.bf16 %v418, %v415
    %v988 = vpack.c.bf16 %v426, %v423
    %v989 = vpack.c.bf16 %v434, %v431
    %v990 = vmul.f32 %v294, %v469
    %v991 = vmul.f32 %v298, %v470
    %v992 = vmul.f32 %v304, %v471
    %v993 = vmul.f32 %v308, %v472
    %v994 = vmul.f32 %v314, %v473
    %v995 = vmul.f32 %v318, %v474
    %v996 = vmul.f32 %v324, %v475
    %v997 = vmul.f32 %v328, %v476
    %v998 = vmul.f32 %v296, %v478
    %v999 = vmul.f32 %v300, %v479
    %v1000 = vmul.f32 %v306, %v480
    %v1001 = vmul.f32 %v310, %v481
    %v1002 = vmul.f32 %v316, %v482
    %v1003 = vmul.f32 %v320, %v483
    %v1004 = vmul.f32 %v326, %v484
    %v1005 = vmul.f32 %v330, %v485
    %v1006 = vadd.f32 %v990, %v998
    %v1007 = vadd.f32 %v991, %v999
    %v1008 = vadd.f32 %v992, %v1000
    %v1009 = vadd.f32 %v993, %v1001
    %v1010 = vadd.f32 %v994, %v1002
    %v1011 = vadd.f32 %v995, %v1003
    %v1012 = vadd.f32 %v996, %v1004
    %v1013 = vadd.f32 %v997, %v1005
    %v1014 = vmul.f32 %v407, %v486
    %v1015 = vmul.f32 %v410, %v487
    %v1016 = vmul.f32 %v415, %v488
    %v1017 = vmul.f32 %v418, %v489
    %v1018 = vmul.f32 %v423, %v490
    %v1019 = vmul.f32 %v426, %v491
    %v1020 = vmul.f32 %v431, %v492
    %v1021 = vmul.f32 %v434, %v493
    %1030 = vrot.lane.b32.xlu0 %v495, 32
    %v1031 = vpop.permute.xlu0 %1030
    %1032 = vrot.lane.b32.xlu0 %v496, 32
    %v1033 = vpop.permute.xlu0 %1032
    %1034 = vrot.lane.b32.xlu0 %v497, 32
    %v1035 = vpop.permute.xlu0 %1034
    %1036 = vrot.lane.b32.xlu0 %v498, 32
    %v1037 = vpop.permute.xlu0 %1036
    %1038 = vrot.lane.b32.xlu0 %v499, 32
    %v1039 = vpop.permute.xlu0 %1038
    %1040 = vrot.lane.b32.xlu0 %v500, 32
    %v1041 = vpop.permute.xlu0 %1040
    %1042 = vrot.lane.b32.xlu0 %v501, 32
    %v1043 = vpop.permute.xlu0 %1042
    %1044 = vrot.lane.b32.xlu0 %v502, 32
    %v1045 = vpop.permute.xlu0 %1044
    %v1054 = vmul.f32 %v407, %v1031
    %v1055 = vmul.f32 %v410, %v1033
    %v1056 = vmul.f32 %v415, %v1035
    %v1057 = vmul.f32 %v418, %v1037
    %v1058 = vmul.f32 %v423, %v1039
    %v1059 = vmul.f32 %v426, %v1041
    %v1060 = vmul.f32 %v431, %v1043
    %v1061 = vmul.f32 %v434, %v1045
    %1070 = vrot.lane.b32.xlu0 %v1054, 96
    %v1071 = vpop.permute.xlu0 %1070
    %1072 = vrot.lane.b32.xlu0 %v1055, 96
    %v1073 = vpop.permute.xlu0 %1072
    %1074 = vrot.lane.b32.xlu0 %v1056, 96
    %v1075 = vpop.permute.xlu0 %1074
    %1076 = vrot.lane.b32.xlu0 %v1057, 96
    %v1077 = vpop.permute.xlu0 %1076
    %1078 = vrot.lane.b32.xlu0 %v1058, 96
    %v1079 = vpop.permute.xlu0 %1078
    %1080 = vrot.lane.b32.xlu0 %v1059, 96
    %v1081 = vpop.permute.xlu0 %1080
    %1082 = vrot.lane.b32.xlu0 %v1060, 96
    %v1083 = vpop.permute.xlu0 %1082
    %1084 = vrot.lane.b32.xlu0 %v1061, 96
    %v1085 = vpop.permute.xlu0 %1084
    %v1094 = vadd.f32 %v1014, %v1071
    %v1095 = vadd.f32 %v1015, %v1073
    %v1096 = vadd.f32 %v1016, %v1075
    %v1097 = vadd.f32 %v1017, %v1077
    %v1098 = vadd.f32 %v1018, %v1079
    %v1099 = vadd.f32 %v1019, %v1081
    %v1100 = vadd.f32 %v1020, %v1083
    %v1101 = vadd.f32 %v1021, %v1085
    %v1102 = vpack.c.bf16 %v1095, %v1094
    %v1103 = vpack.c.bf16 %v1097, %v1096
    %v1104 = vpack.c.bf16 %v1099, %v1098
    %v1105 = vpack.c.bf16 %v1101, %v1100
    %1114 = vrot.lane.b32.xlu0 %v1006, 96
    %v1115 = vpop.permute.xlu0 %1114
    %1116 = vrot.lane.b32.xlu0 %v1007, 96
    %v1117 = vpop.permute.xlu0 %1116
    %1118 = vrot.lane.b32.xlu0 %v1008, 96
    %v1119 = vpop.permute.xlu0 %1118
    %1120 = vrot.lane.b32.xlu0 %v1009, 96
    %v1121 = vpop.permute.xlu0 %1120
    %1122 = vrot.lane.b32.xlu0 %v1010, 96
    %v1123 = vpop.permute.xlu0 %1122
    %1124 = vrot.lane.b32.xlu0 %v1011, 96
    %v1125 = vpop.permute.xlu0 %1124
    %1126 = vrot.lane.b32.xlu0 %v1012, 96
    %v1127 = vpop.permute.xlu0 %1126
    %1128 = vrot.lane.b32.xlu0 %v1013, 96
    %v1129 = vpop.permute.xlu0 %1128
    %1138 = vrot.lane.b32.xlu0 %v1006, 64
    %v1139 = vpop.permute.xlu0 %1138
    %1140 = vrot.lane.b32.xlu0 %v1007, 64
    %v1141 = vpop.permute.xlu0 %1140
    %1142 = vrot.lane.b32.xlu0 %v1008, 64
    %v1143 = vpop.permute.xlu0 %1142
    %1144 = vrot.lane.b32.xlu0 %v1009, 64
    %v1145 = vpop.permute.xlu0 %1144
    %1146 = vrot.lane.b32.xlu0 %v1010, 64
    %v1147 = vpop.permute.xlu0 %1146
    %1148 = vrot.lane.b32.xlu0 %v1011, 64
    %v1149 = vpop.permute.xlu0 %1148
    %1150 = vrot.lane.b32.xlu0 %v1012, 64
    %v1151 = vpop.permute.xlu0 %1150
    %1152 = vrot.lane.b32.xlu0 %v1013, 64
    %v1153 = vpop.permute.xlu0 %1152
    %1162 = vrot.lane.b32.xlu0 %v1006, 32
    %v1163 = vpop.permute.xlu0 %1162
    %1164 = vrot.lane.b32.xlu0 %v1007, 32
    %v1165 = vpop.permute.xlu0 %1164
    %1166 = vrot.lane.b32.xlu0 %v1008, 32
    %v1167 = vpop.permute.xlu0 %1166
    %1168 = vrot.lane.b32.xlu0 %v1009, 32
    %v1169 = vpop.permute.xlu0 %1168
    %1170 = vrot.lane.b32.xlu0 %v1010, 32
    %v1171 = vpop.permute.xlu0 %1170
    %1172 = vrot.lane.b32.xlu0 %v1011, 32
    %v1173 = vpop.permute.xlu0 %1172
    %1174 = vrot.lane.b32.xlu0 %v1012, 32
    %v1175 = vpop.permute.xlu0 %1174
    %1176 = vrot.lane.b32.xlu0 %v1013, 32
    %v1177 = vpop.permute.xlu0 %1176
    %v1186 = vpack.c.bf16 %v1007, %v1006
    %v1187 = vpack.c.bf16 %v1009, %v1008
    %v1188 = vpack.c.bf16 %v1011, %v1010
    %v1189 = vpack.c.bf16 %v1013, %v1012
    %v1190 = vpack.c.bf16 %v1117, %v1115
    %v1191 = vpack.c.bf16 %v1121, %v1119
    %v1192 = vpack.c.bf16 %v1125, %v1123
    %v1193 = vpack.c.bf16 %v1129, %v1127
    %v1194 = vpack.c.bf16 %v1141, %v1139
    %v1195 = vpack.c.bf16 %v1145, %v1143
    %v1196 = vpack.c.bf16 %v1149, %v1147
    %v1197 = vpack.c.bf16 %v1153, %v1151
    %v1198 = vpack.c.bf16 %v1165, %v1163
    %v1199 = vpack.c.bf16 %v1169, %v1167
    %v1200 = vpack.c.bf16 %v1173, %v1171
    %v1201 = vpack.c.bf16 %v1177, %v1175
    %vm1202 = vcmask 261120
    %v1204 = vsel %vm1202, %v1186, 0
    %v1207 = vsel %vm1202, %v1187, 0
    %v1210 = vsel %vm1202, %v1188, 0
    %v1213 = vsel %vm1202, %v1189, 0
    %v1216 = vsel %vm1202, %v1190, 0
    %v1219 = vsel %vm1202, %v1191, 0
    %v1222 = vsel %vm1202, %v1192, 0
    %v1225 = vsel %vm1202, %v1193, 0
    %v1228 = vsel %vm1202, %v1194, 0
    %v1231 = vsel %vm1202, %v1195, 0
    %v1234 = vsel %vm1202, %v1196, 0
    %v1237 = vsel %vm1202, %v1197, 0
    %v1240 = vsel %vm1202, %v1198, 0
    %v1243 = vsel %vm1202, %v1199, 0
    %v1246 = vsel %vm1202, %v1200, 0
    %v1249 = vsel %vm1202, %v1201, 0
    %v1252 = vsel %vm1202, %v1102, 0
    %v1255 = vsel %vm1202, %v1103, 0
    %v1258 = vsel %vm1202, %v1104, 0
    %v1261 = vsel %vm1202, %v1105, 0
    %1263 = vmatprep.subr.bf16.mxu0 0
    %1264 = vmatpush1.bf16.xpose.msra.mxu0 %v1252
    %1265 = vmatprep.subr.bf16.mxu0 0
    %1266 = vmatpush1.bf16.xpose.msra.mxu0 %v1255
    %1267 = vmatprep.subr.bf16.mxu0 0
    %1268 = vmatpush1.bf16.xpose.msra.mxu0 %v1258
    %1269 = vmatprep.subr.bf16.mxu0 0
    %1270 = vmatpush1.bf16.xpose.msra.mxu0 %v1261
    %1271 = vmatprep.subr.bf16.mxu0 0
    %1272 = vmatpush1.bf16.xpose.msra.mxu0 0
    %1273 = vmatprep.subr.bf16.mxu0 0
    %1274 = vmatpush1.bf16.xpose.msra.mxu0 0
    %1275 = vmatprep.subr.bf16.mxu0 0
    %1276 = vmatpush1.bf16.xpose.msra.mxu0 0
    %1277 = vmatprep.subr.bf16.mxu0 0
    %1278 = vmatpush1.bf16.xpose.msra.mxu0 0
    %1279 = vmatprep.subr.bf16.mxu0 0
    %1280 = vmatpush1.bf16.xpose.msra.mxu0 0
    %1281 = vmatprep.subr.bf16.mxu0 0
    %1282 = vmatpush1.bf16.xpose.msra.mxu0 0
    %1283 = vmatprep.subr.bf16.mxu0 0
    %1284 = vmatpush1.bf16.xpose.msra.mxu0 0
    %1285 = vmatprep.subr.bf16.mxu0 0
    %1286 = vmatpush1.bf16.xpose.msra.mxu0 0
    %1287 = vmatprep.subr.bf16.mxu0 0
    %1288 = vmatpush1.bf16.xpose.msra.mxu0 0
    %1289 = vmatprep.subr.bf16.mxu0 0
    %1290 = vmatpush1.bf16.xpose.msra.mxu0 0
    %1291 = vmatprep.subr.bf16.mxu0 0
    %1292 = vmatpush1.bf16.xpose.msra.mxu0 0
    %1293 = vmatprep.subr.bf16.mxu0 0
    %1294 = vmatpush1.bf16.xpose.msra.mxu0 0
    %1295 = vmatprep.mubr.bf16.mxu0 0
    %1296 = vmatmul.mubr.bf16.gmra.mrb[0].mxu0 %v1204
    %v1297 = vpop.f32.mrb[0].mxu0
    %v1298 = vadd.f32 %v954, %v1297
    %v1299 = vpop.f32.mrb[0].mxu0
    %v1300 = vpop.f32.mrb[0].mxu0
    %v1301 = vadd.f32 %v955, %v1300
    %v1302 = vpop.f32.mrb[0].mxu0
    %1303 = vmatprep.mubr.bf16.mxu0 0
    %1304 = vmatmul.mubr.bf16.gmra.mrb[0].mxu0 %v1207
    %v1305 = vpop.f32.mrb[0].mxu0
    %v1306 = vadd.f32 %v956, %v1305
    %v1307 = vpop.f32.mrb[0].mxu0
    %v1308 = vpop.f32.mrb[0].mxu0
    %v1309 = vadd.f32 %v957, %v1308
    %v1310 = vpop.f32.mrb[0].mxu0
    %1311 = vmatprep.mubr.bf16.mxu0 0
    %1312 = vmatmul.mubr.bf16.gmra.mrb[0].mxu0 %v1210
    %v1313 = vpop.f32.mrb[0].mxu0
    %v1314 = vadd.f32 %v958, %v1313
    %v1315 = vpop.f32.mrb[0].mxu0
    %v1316 = vpop.f32.mrb[0].mxu0
    %v1317 = vadd.f32 %v959, %v1316
    %v1318 = vpop.f32.mrb[0].mxu0
    %1319 = vmatprep.mubr.bf16.mxu0 0
    %1320 = vmatmul.mubr.bf16.gmra.mrb[0].mxu0 %v1213
    %v1321 = vpop.f32.mrb[0].mxu0
    %v1322 = vadd.f32 %v960, %v1321
    %v1323 = vpop.f32.mrb[0].mxu0
    %v1324 = vpop.f32.mrb[0].mxu0
    %v1325 = vadd.f32 %v961, %v1324
    %v1326 = vpop.f32.mrb[0].mxu0
    %1327 = vmatprep.mubr.bf16.mxu0 0
    %1328 = vmatmul.mubr.bf16.gmra.mrb[0].mxu0 %v1216
    %v1329 = vpop.f32.mrb[0].mxu0
    %v1330 = vadd.f32 %v962, %v1329
    %v1331 = vpop.f32.mrb[0].mxu0
    %v1332 = vpop.f32.mrb[0].mxu0
    %v1333 = vadd.f32 %v963, %v1332
    %v1334 = vpop.f32.mrb[0].mxu0
    %1335 = vmatprep.mubr.bf16.mxu0 0
    %1336 = vmatmul.mubr.bf16.gmra.mrb[0].mxu0 %v1219
    %v1337 = vpop.f32.mrb[0].mxu0
    %v1338 = vadd.f32 %v964, %v1337
    %v1339 = vpop.f32.mrb[0].mxu0
    %v1340 = vpop.f32.mrb[0].mxu0
    %v1341 = vadd.f32 %v965, %v1340
    %v1342 = vpop.f32.mrb[0].mxu0
    %1343 = vmatprep.mubr.bf16.mxu0 0
    %1344 = vmatmul.mubr.bf16.gmra.mrb[0].mxu0 %v1222
    %v1345 = vpop.f32.mrb[0].mxu0
    %v1346 = vadd.f32 %v966, %v1345
    %v1347 = vpop.f32.mrb[0].mxu0
    %v1348 = vpop.f32.mrb[0].mxu0
    %v1349 = vadd.f32 %v967, %v1348
    %v1350 = vpop.f32.mrb[0].mxu0
    %1351 = vmatprep.mubr.bf16.mxu0 0
    %1352 = vmatmul.mubr.bf16.gmra.mrb[0].mxu0 %v1225
    %v1353 = vpop.f32.mrb[0].mxu0
    %v1354 = vadd.f32 %v968, %v1353
    %v1355 = vpop.f32.mrb[0].mxu0
    %v1356 = vpop.f32.mrb[0].mxu0
    %v1357 = vadd.f32 %v969, %v1356
    %v1358 = vpop.f32.mrb[0].mxu0
    %1359 = vmatprep.mubr.bf16.mxu0 0
    %1360 = vmatmul.mubr.bf16.gmra.mrb[0].mxu0 %v1228
    %v1361 = vpop.f32.mrb[0].mxu0
    %v1362 = vadd.f32 %v970, %v1361
    %v1363 = vpop.f32.mrb[0].mxu0
    %v1364 = vpop.f32.mrb[0].mxu0
    %v1365 = vadd.f32 %v971, %v1364
    %v1366 = vpop.f32.mrb[0].mxu0
    %1367 = vmatprep.mubr.bf16.mxu0 0
    %1368 = vmatmul.mubr.bf16.gmra.mrb[0].mxu0 %v1231
    %v1369 = vpop.f32.mrb[0].mxu0
    %v1370 = vadd.f32 %v972, %v1369
    %v1371 = vpop.f32.mrb[0].mxu0
    %v1372 = vpop.f32.mrb[0].mxu0
    %v1373 = vadd.f32 %v973, %v1372
    %v1374 = vpop.f32.mrb[0].mxu0
    %1375 = vmatprep.mubr.bf16.mxu0 0
    %1376 = vmatmul.mubr.bf16.gmra.mrb[0].mxu0 %v1234
    %v1377 = vpop.f32.mrb[0].mxu0
    %v1378 = vadd.f32 %v974, %v1377
    %v1379 = vpop.f32.mrb[0].mxu0
    %v1380 = vpop.f32.mrb[0].mxu0
    %v1381 = vadd.f32 %v975, %v1380
    %v1382 = vpop.f32.mrb[0].mxu0
    %1383 = vmatprep.mubr.bf16.mxu0 0
    %1384 = vmatmul.mubr.bf16.gmra.mrb[0].mxu0 %v1237
    %v1385 = vpop.f32.mrb[0].mxu0
    %v1386 = vadd.f32 %v976, %v1385
    %v1387 = vpop.f32.mrb[0].mxu0
    %v1388 = vpop.f32.mrb[0].mxu0
    %v1389 = vadd.f32 %v977, %v1388
    %v1390 = vpop.f32.mrb[0].mxu0
    %1391 = vmatprep.mubr.bf16.mxu0 0
    %1392 = vmatmul.mubr.bf16.gmra.mrb[0].mxu0 %v1240
    %v1393 = vpop.f32.mrb[0].mxu0
    %v1394 = vadd.f32 %v978, %v1393
    %v1395 = vpop.f32.mrb[0].mxu0
    %v1396 = vpop.f32.mrb[0].mxu0
    %v1397 = vadd.f32 %v979, %v1396
    %v1398 = vpop.f32.mrb[0].mxu0
    %1399 = vmatprep.mubr.bf16.mxu0 0
    %1400 = vmatmul.mubr.bf16.gmra.mrb[0].mxu0 %v1243
    %v1401 = vpop.f32.mrb[0].mxu0
    %v1402 = vadd.f32 %v980, %v1401
    %v1403 = vpop.f32.mrb[0].mxu0
    %v1404 = vpop.f32.mrb[0].mxu0
    %v1405 = vadd.f32 %v981, %v1404
    %v1406 = vpop.f32.mrb[0].mxu0
    %1407 = vmatprep.mubr.bf16.mxu0 0
    %1408 = vmatmul.mubr.bf16.gmra.mrb[0].mxu0 %v1246
    %v1409 = vpop.f32.mrb[0].mxu0
    %v1410 = vadd.f32 %v982, %v1409
    %v1411 = vpop.f32.mrb[0].mxu0
    %v1412 = vpop.f32.mrb[0].mxu0
    %v1413 = vadd.f32 %v983, %v1412
    %v1414 = vpop.f32.mrb[0].mxu0
    %1415 = vmatprep.mubr.bf16.mxu0 0
    %1416 = vmatmul.mubr.bf16.gmra.mrb[0].mxu0 %v1249
    %v1417 = vpop.f32.mrb[0].mxu0
    %v1418 = vadd.f32 %v984, %v1417
    %v1419 = vpop.f32.mrb[0].mxu0
    %v1420 = vpop.f32.mrb[0].mxu0
    %v1421 = vadd.f32 %v985, %v1420
    %v1422 = vpop.f32.mrb[0].mxu0
    %1423 = vdwg.mxu0
    %vm1424 = vcmask 523264
    %v1425 = vsel %vm1424, %v1298, -inf
    %1426 = vmax.xlane.f32.xlu0 %v1425
    %v1427 = vpop.xlane.xlu0 %1426
    %v1428 = vsel %vm1424, %v1301, -inf
    %1429 = vmax.xlane.f32.xlu0 %v1428
    %v1430 = vpop.xlane.xlu0 %1429
    %v1431 = vsel %vm1424, %v1306, -inf
    %1432 = vmax.xlane.f32.xlu0 %v1431
    %v1433 = vpop.xlane.xlu0 %1432
    %v1434 = vsel %vm1424, %v1309, -inf
    %1435 = vmax.xlane.f32.xlu0 %v1434
    %v1436 = vpop.xlane.xlu0 %1435
    %v1437 = vsel %vm1424, %v1314, -inf
    %1438 = vmax.xlane.f32.xlu0 %v1437
    %v1439 = vpop.xlane.xlu0 %1438
    %v1440 = vsel %vm1424, %v1317, -inf
    %1441 = vmax.xlane.f32.xlu0 %v1440
    %v1442 = vpop.xlane.xlu0 %1441
    %v1443 = vsel %vm1424, %v1322, -inf
    %1444 = vmax.xlane.f32.xlu0 %v1443
    %v1445 = vpop.xlane.xlu0 %1444
    %v1446 = vsel %vm1424, %v1325, -inf
    %1447 = vmax.xlane.f32.xlu0 %v1446
    %v1448 = vpop.xlane.xlu0 %1447
    %v1449 = vsel %vm1424, %v1330, -inf
    %1450 = vmax.xlane.f32.xlu0 %v1449
    %v1451 = vpop.xlane.xlu0 %1450
    %v1452 = vsel %vm1424, %v1333, -inf
    %1453 = vmax.xlane.f32.xlu0 %v1452
    %v1454 = vpop.xlane.xlu0 %1453
    %v1455 = vsel %vm1424, %v1338, -inf
    %1456 = vmax.xlane.f32.xlu0 %v1455
    %v1457 = vpop.xlane.xlu0 %1456
    %v1458 = vsel %vm1424, %v1341, -inf
    %1459 = vmax.xlane.f32.xlu0 %v1458
    %v1460 = vpop.xlane.xlu0 %1459
    %v1461 = vsel %vm1424, %v1346, -inf
    %1462 = vmax.xlane.f32.xlu0 %v1461
    %v1463 = vpop.xlane.xlu0 %1462
    %v1464 = vsel %vm1424, %v1349, -inf
    %1465 = vmax.xlane.f32.xlu0 %v1464
    %v1466 = vpop.xlane.xlu0 %1465
    %v1467 = vsel %vm1424, %v1354, -inf
    %1468 = vmax.xlane.f32.xlu0 %v1467
    %v1469 = vpop.xlane.xlu0 %1468
    %v1470 = vsel %vm1424, %v1357, -inf
    %1471 = vmax.xlane.f32.xlu0 %v1470
    %v1472 = vpop.xlane.xlu0 %1471
    %v1473 = vsel %vm1424, %v1362, -inf
    %1474 = vmax.xlane.f32.xlu0 %v1473
    %v1475 = vpop.xlane.xlu0 %1474
    %v1476 = vsel %vm1424, %v1365, -inf
    %1477 = vmax.xlane.f32.xlu0 %v1476
    %v1478 = vpop.xlane.xlu0 %1477
    %v1479 = vsel %vm1424, %v1370, -inf
    %1480 = vmax.xlane.f32.xlu0 %v1479
    %v1481 = vpop.xlane.xlu0 %1480
    %v1482 = vsel %vm1424, %v1373, -inf
    %1483 = vmax.xlane.f32.xlu0 %v1482
    %v1484 = vpop.xlane.xlu0 %1483
    %v1485 = vsel %vm1424, %v1378, -inf
    %1486 = vmax.xlane.f32.xlu0 %v1485
    %v1487 = vpop.xlane.xlu0 %1486
    %v1488 = vsel %vm1424, %v1381, -inf
    %1489 = vmax.xlane.f32.xlu0 %v1488
    %v1490 = vpop.xlane.xlu0 %1489
    %v1491 = vsel %vm1424, %v1386, -inf
    %1492 = vmax.xlane.f32.xlu0 %v1491
    %v1493 = vpop.xlane.xlu0 %1492
    %v1494 = vsel %vm1424, %v1389, -inf
    %1495 = vmax.xlane.f32.xlu0 %v1494
    %v1496 = vpop.xlane.xlu0 %1495
    %v1497 = vsel %vm1424, %v1394, -inf
    %1498 = vmax.xlane.f32.xlu0 %v1497
    %v1499 = vpop.xlane.xlu0 %1498
    %v1500 = vsel %vm1424, %v1397, -inf
    %1501 = vmax.xlane.f32.xlu0 %v1500
    %v1502 = vpop.xlane.xlu0 %1501
    %v1503 = vsel %vm1424, %v1402, -inf
    %1504 = vmax.xlane.f32.xlu0 %v1503
    %v1505 = vpop.xlane.xlu0 %1504
    %v1506 = vsel %vm1424, %v1405, -inf
    %1507 = vmax.xlane.f32.xlu0 %v1506
    %v1508 = vpop.xlane.xlu0 %1507
    %v1509 = vsel %vm1424, %v1410, -inf
    %1510 = vmax.xlane.f32.xlu0 %v1509
    %v1511 = vpop.xlane.xlu0 %1510
    %v1512 = vsel %vm1424, %v1413, -inf
    %1513 = vmax.xlane.f32.xlu0 %v1512
    %v1514 = vpop.xlane.xlu0 %1513
    %v1515 = vsel %vm1424, %v1418, -inf
    %1516 = vmax.xlane.f32.xlu0 %v1515
    %v1517 = vpop.xlane.xlu0 %1516
    %v1518 = vsel %vm1424, %v1421, -inf
    %1519 = vmax.xlane.f32.xlu0 %v1518
    %v1520 = vpop.xlane.xlu0 %1519
    %v1521 = vsub.f32 %v1298, %v1427
    %v1522 = vsub.f32 %v1301, %v1430
    %v1523 = vsub.f32 %v1306, %v1433
    %v1524 = vsub.f32 %v1309, %v1436
    %v1525 = vsub.f32 %v1314, %v1439
    %v1526 = vsub.f32 %v1317, %v1442
    %v1527 = vsub.f32 %v1322, %v1445
    %v1528 = vsub.f32 %v1325, %v1448
    %v1529 = vsub.f32 %v1330, %v1451
    %v1530 = vsub.f32 %v1333, %v1454
    %v1531 = vsub.f32 %v1338, %v1457
    %v1532 = vsub.f32 %v1341, %v1460
    %v1533 = vsub.f32 %v1346, %v1463
    %v1534 = vsub.f32 %v1349, %v1466
    %v1535 = vsub.f32 %v1354, %v1469
    %v1536 = vsub.f32 %v1357, %v1472
    %v1537 = vsub.f32 %v1362, %v1475
    %v1538 = vsub.f32 %v1365, %v1478
    %v1539 = vsub.f32 %v1370, %v1481
    %v1540 = vsub.f32 %v1373, %v1484
    %v1541 = vsub.f32 %v1378, %v1487
    %v1542 = vsub.f32 %v1381, %v1490
    %v1543 = vsub.f32 %v1386, %v1493
    %v1544 = vsub.f32 %v1389, %v1496
    %v1545 = vsub.f32 %v1394, %v1499
    %v1546 = vsub.f32 %v1397, %v1502
    %v1547 = vsub.f32 %v1402, %v1505
    %v1548 = vsub.f32 %v1405, %v1508
    %v1549 = vsub.f32 %v1410, %v1511
    %v1550 = vsub.f32 %v1413, %v1514
    %v1551 = vsub.f32 %v1418, %v1517
    %v1552 = vsub.f32 %v1421, %v1520
    %v1553 = vmul.f32 %v1521, 1.442695
    %v1554 = vpow.pop %v1553
    %v1555 = vmul.f32 %v1522, 1.442695
    %v1556 = vpow.pop %v1555
    %v1557 = vmul.f32 %v1523, 1.442695
    %v1558 = vpow.pop %v1557
    %v1559 = vmul.f32 %v1524, 1.442695
    %v1560 = vpow.pop %v1559
    %v1561 = vmul.f32 %v1525, 1.442695
    %v1562 = vpow.pop %v1561
    %v1563 = vmul.f32 %v1526, 1.442695
    %v1564 = vpow.pop %v1563
    %v1565 = vmul.f32 %v1527, 1.442695
    %v1566 = vpow.pop %v1565
    %v1567 = vmul.f32 %v1528, 1.442695
    %v1568 = vpow.pop %v1567
    %v1569 = vmul.f32 %v1529, 1.442695
    %v1570 = vpow.pop %v1569
    %v1571 = vmul.f32 %v1530, 1.442695
    %v1572 = vpow.pop %v1571
    %v1573 = vmul.f32 %v1531, 1.442695
    %v1574 = vpow.pop %v1573
    %v1575 = vmul.f32 %v1532, 1.442695
    %v1576 = vpow.pop %v1575
    %v1577 = vmul.f32 %v1533, 1.442695
    %v1578 = vpow.pop %v1577
    %v1579 = vmul.f32 %v1534, 1.442695
    %v1580 = vpow.pop %v1579
    %v1581 = vmul.f32 %v1535, 1.442695
    %v1582 = vpow.pop %v1581
    %v1583 = vmul.f32 %v1536, 1.442695
    %v1584 = vpow.pop %v1583
    %v1585 = vmul.f32 %v1537, 1.442695
    %v1586 = vpow.pop %v1585
    %v1587 = vmul.f32 %v1538, 1.442695
    %v1588 = vpow.pop %v1587
    %v1589 = vmul.f32 %v1539, 1.442695
    %v1590 = vpow.pop %v1589
    %v1591 = vmul.f32 %v1540, 1.442695
    %v1592 = vpow.pop %v1591
    %v1593 = vmul.f32 %v1541, 1.442695
    %v1594 = vpow.pop %v1593
    %v1595 = vmul.f32 %v1542, 1.442695
    %v1596 = vpow.pop %v1595
    %v1597 = vmul.f32 %v1543, 1.442695
    %v1598 = vpow.pop %v1597
    %v1599 = vmul.f32 %v1544, 1.442695
    %v1600 = vpow.pop %v1599
    %v1601 = vmul.f32 %v1545, 1.442695
    %v1602 = vpow.pop %v1601
    %v1603 = vmul.f32 %v1546, 1.442695
    %v1604 = vpow.pop %v1603
    %v1605 = vmul.f32 %v1547, 1.442695
    %v1606 = vpow.pop %v1605
    %v1607 = vmul.f32 %v1548, 1.442695
    %v1608 = vpow.pop %v1607
    %v1609 = vmul.f32 %v1549, 1.442695
    %v1610 = vpow.pop %v1609
    %v1611 = vmul.f32 %v1550, 1.442695
    %v1612 = vpow.pop %v1611
    %v1613 = vmul.f32 %v1551, 1.442695
    %v1614 = vpow.pop %v1613
    %v1615 = vmul.f32 %v1552, 1.442695
    %v1616 = vpow.pop %v1615
    %v1617 = vsel %vm1424, %v1554, 0.0
    %1618 = vadd.xlane.f32.xlu0 %v1617
    %v1619 = vpop.xlane.xlu0 %1618
    %v1620 = vsel %vm1424, %v1556, 0.0
    %1621 = vadd.xlane.f32.xlu0 %v1620
    %v1622 = vpop.xlane.xlu0 %1621
    %v1623 = vsel %vm1424, %v1558, 0.0
    %1624 = vadd.xlane.f32.xlu0 %v1623
    %v1625 = vpop.xlane.xlu0 %1624
    %v1626 = vsel %vm1424, %v1560, 0.0
    %1627 = vadd.xlane.f32.xlu0 %v1626
    %v1628 = vpop.xlane.xlu0 %1627
    %v1629 = vsel %vm1424, %v1562, 0.0
    %1630 = vadd.xlane.f32.xlu0 %v1629
    %v1631 = vpop.xlane.xlu0 %1630
    %v1632 = vsel %vm1424, %v1564, 0.0
    %1633 = vadd.xlane.f32.xlu0 %v1632
    %v1634 = vpop.xlane.xlu0 %1633
    %v1635 = vsel %vm1424, %v1566, 0.0
    %1636 = vadd.xlane.f32.xlu0 %v1635
    %v1637 = vpop.xlane.xlu0 %1636
    %v1638 = vsel %vm1424, %v1568, 0.0
    %1639 = vadd.xlane.f32.xlu0 %v1638
    %v1640 = vpop.xlane.xlu0 %1639
    %v1641 = vsel %vm1424, %v1570, 0.0
    %1642 = vadd.xlane.f32.xlu0 %v1641
    %v1643 = vpop.xlane.xlu0 %1642
    %v1644 = vsel %vm1424, %v1572, 0.0
    %1645 = vadd.xlane.f32.xlu0 %v1644
    %v1646 = vpop.xlane.xlu0 %1645
    %v1647 = vsel %vm1424, %v1574, 0.0
    %1648 = vadd.xlane.f32.xlu0 %v1647
    %v1649 = vpop.xlane.xlu0 %1648
    %v1650 = vsel %vm1424, %v1576, 0.0
    %1651 = vadd.xlane.f32.xlu0 %v1650
    %v1652 = vpop.xlane.xlu0 %1651
    %v1653 = vsel %vm1424, %v1578, 0.0
    %1654 = vadd.xlane.f32.xlu0 %v1653
    %v1655 = vpop.xlane.xlu0 %1654
    %v1656 = vsel %vm1424, %v1580, 0.0
    %1657 = vadd.xlane.f32.xlu0 %v1656
    %v1658 = vpop.xlane.xlu0 %1657
    %v1659 = vsel %vm1424, %v1582, 0.0
    %1660 = vadd.xlane.f32.xlu0 %v1659
    %v1661 = vpop.xlane.xlu0 %1660
    %v1662 = vsel %vm1424, %v1584, 0.0
    %1663 = vadd.xlane.f32.xlu0 %v1662
    %v1664 = vpop.xlane.xlu0 %1663
    %v1665 = vsel %vm1424, %v1586, 0.0
    %1666 = vadd.xlane.f32.xlu0 %v1665
    %v1667 = vpop.xlane.xlu0 %1666
    %v1668 = vsel %vm1424, %v1588, 0.0
    %1669 = vadd.xlane.f32.xlu0 %v1668
    %v1670 = vpop.xlane.xlu0 %1669
    %v1671 = vsel %vm1424, %v1590, 0.0
    %1672 = vadd.xlane.f32.xlu0 %v1671
    %v1673 = vpop.xlane.xlu0 %1672
    %v1674 = vsel %vm1424, %v1592, 0.0
    %1675 = vadd.xlane.f32.xlu0 %v1674
    %v1676 = vpop.xlane.xlu0 %1675
    %v1677 = vsel %vm1424, %v1594, 0.0
    %1678 = vadd.xlane.f32.xlu0 %v1677
    %v1679 = vpop.xlane.xlu0 %1678
    %v1680 = vsel %vm1424, %v1596, 0.0
    %1681 = vadd.xlane.f32.xlu0 %v1680
    %v1682 = vpop.xlane.xlu0 %1681
    %v1683 = vsel %vm1424, %v1598, 0.0
    %1684 = vadd.xlane.f32.xlu0 %v1683
    %v1685 = vpop.xlane.xlu0 %1684
    %v1686 = vsel %vm1424, %v1600, 0.0
    %1687 = vadd.xlane.f32.xlu0 %v1686
    %v1688 = vpop.xlane.xlu0 %1687
    %v1689 = vsel %vm1424, %v1602, 0.0
    %1690 = vadd.xlane.f32.xlu0 %v1689
    %v1691 = vpop.xlane.xlu0 %1690
    %v1692 = vsel %vm1424, %v1604, 0.0
    %1693 = vadd.xlane.f32.xlu0 %v1692
    %v1694 = vpop.xlane.xlu0 %1693
    %v1695 = vsel %vm1424, %v1606, 0.0
    %1696 = vadd.xlane.f32.xlu0 %v1695
    %v1697 = vpop.xlane.xlu0 %1696
    %v1698 = vsel %vm1424, %v1608, 0.0
    %1699 = vadd.xlane.f32.xlu0 %v1698
    %v1700 = vpop.xlane.xlu0 %1699
    %v1701 = vsel %vm1424, %v1610, 0.0
    %1702 = vadd.xlane.f32.xlu0 %v1701
    %v1703 = vpop.xlane.xlu0 %1702
    %v1704 = vsel %vm1424, %v1612, 0.0
    %1705 = vadd.xlane.f32.xlu0 %v1704
    %v1706 = vpop.xlane.xlu0 %1705
    %v1707 = vsel %vm1424, %v1614, 0.0
    %1708 = vadd.xlane.f32.xlu0 %v1707
    %v1709 = vpop.xlane.xlu0 %1708
    %v1710 = vsel %vm1424, %v1616, 0.0
    %1711 = vadd.xlane.f32.xlu0 %v1710
    %v1712 = vpop.xlane.xlu0 %1711
    %v1713 = vrcp.pop %v1619
    %v1714 = vrcp.pop %v1622
    %v1715 = vrcp.pop %v1625
    %v1716 = vrcp.pop %v1628
    %v1717 = vrcp.pop %v1631
    %v1718 = vrcp.pop %v1634
    %v1719 = vrcp.pop %v1637
    %v1720 = vrcp.pop %v1640
    %v1721 = vrcp.pop %v1643
    %v1722 = vrcp.pop %v1646
    %v1723 = vrcp.pop %v1649
    %v1724 = vrcp.pop %v1652
    %v1725 = vrcp.pop %v1655
    %v1726 = vrcp.pop %v1658
    %v1727 = vrcp.pop %v1661
    %v1728 = vrcp.pop %v1664
    %v1729 = vrcp.pop %v1667
    %v1730 = vrcp.pop %v1670
    %v1731 = vrcp.pop %v1673
    %v1732 = vrcp.pop %v1676
    %v1733 = vrcp.pop %v1679
    %v1734 = vrcp.pop %v1682
    %v1735 = vrcp.pop %v1685
    %v1736 = vrcp.pop %v1688
    %v1737 = vrcp.pop %v1691
    %v1738 = vrcp.pop %v1694
    %v1739 = vrcp.pop %v1697
    %v1740 = vrcp.pop %v1700
    %v1741 = vrcp.pop %v1703
    %v1742 = vrcp.pop %v1706
    %v1743 = vrcp.pop %v1709
    %v1744 = vrcp.pop %v1712
    %v1745 = vmul.f32 %v1554, %v1713
    %v1746 = vmul.f32 %v1556, %v1714
    %v1747 = vmul.f32 %v1558, %v1715
    %v1748 = vmul.f32 %v1560, %v1716
    %v1749 = vmul.f32 %v1562, %v1717
    %v1750 = vmul.f32 %v1564, %v1718
    %v1751 = vmul.f32 %v1566, %v1719
    %v1752 = vmul.f32 %v1568, %v1720
    %v1753 = vmul.f32 %v1570, %v1721
    %v1754 = vmul.f32 %v1572, %v1722
    %v1755 = vmul.f32 %v1574, %v1723
    %v1756 = vmul.f32 %v1576, %v1724
    %v1757 = vmul.f32 %v1578, %v1725
    %v1758 = vmul.f32 %v1580, %v1726
    %v1759 = vmul.f32 %v1582, %v1727
    %v1760 = vmul.f32 %v1584, %v1728
    %v1761 = vmul.f32 %v1586, %v1729
    %v1762 = vmul.f32 %v1588, %v1730
    %v1763 = vmul.f32 %v1590, %v1731
    %v1764 = vmul.f32 %v1592, %v1732
    %v1765 = vmul.f32 %v1594, %v1733
    %v1766 = vmul.f32 %v1596, %v1734
    %v1767 = vmul.f32 %v1598, %v1735
    %v1768 = vmul.f32 %v1600, %v1736
    %v1769 = vmul.f32 %v1602, %v1737
    %v1770 = vmul.f32 %v1604, %v1738
    %v1771 = vmul.f32 %v1606, %v1739
    %v1772 = vmul.f32 %v1608, %v1740
    %v1773 = vmul.f32 %v1610, %v1741
    %v1774 = vmul.f32 %v1612, %v1742
    %v1775 = vmul.f32 %v1614, %v1743
    %v1776 = vmul.f32 %v1616, %v1744
    %v1777 = vpack.c.bf16 %v1746, %v1745
    %v1778 = vpack.c.bf16 %v1748, %v1747
    %v1779 = vpack.c.bf16 %v1750, %v1749
    %v1780 = vpack.c.bf16 %v1752, %v1751
    %v1781 = vpack.c.bf16 %v1754, %v1753
    %v1782 = vpack.c.bf16 %v1756, %v1755
    %v1783 = vpack.c.bf16 %v1758, %v1757
    %v1784 = vpack.c.bf16 %v1760, %v1759
    %v1785 = vpack.c.bf16 %v1762, %v1761
    %v1786 = vpack.c.bf16 %v1764, %v1763
    %v1787 = vpack.c.bf16 %v1766, %v1765
    %v1788 = vpack.c.bf16 %v1768, %v1767
    %v1789 = vpack.c.bf16 %v1770, %v1769
    %v1790 = vpack.c.bf16 %v1772, %v1771
    %v1791 = vpack.c.bf16 %v1774, %v1773
    %v1792 = vpack.c.bf16 %v1776, %v1775
    %1797 = vrot.lane.b32.xlu0 %v986, 64
    %v1798 = vpop.permute.xlu0 %1797
    %1799 = vrot.lane.b32.xlu0 %v987, 64
    %v1800 = vpop.permute.xlu0 %1799
    %1801 = vrot.lane.b32.xlu0 %v988, 64
    %v1802 = vpop.permute.xlu0 %1801
    %1803 = vrot.lane.b32.xlu0 %v989, 64
    %v1804 = vpop.permute.xlu0 %1803
    %v1810 = vsel %vm1424, %v1777, 0
    %v1813 = vsel %vm1424, %v1778, 0
    %v1816 = vsel %vm1424, %v1779, 0
    %v1819 = vsel %vm1424, %v1780, 0
    %v1822 = vsel %vm1424, %v1781, 0
    %v1825 = vsel %vm1424, %v1782, 0
    %v1828 = vsel %vm1424, %v1783, 0
    %v1831 = vsel %vm1424, %v1784, 0
    %v1834 = vsel %vm1424, %v1785, 0
    %v1837 = vsel %vm1424, %v1786, 0
    %v1840 = vsel %vm1424, %v1787, 0
    %v1843 = vsel %vm1424, %v1788, 0
    %v1846 = vsel %vm1424, %v1789, 0
    %v1849 = vsel %vm1424, %v1790, 0
    %v1852 = vsel %vm1424, %v1791, 0
    %v1855 = vsel %vm1424, %v1792, 0
    %1857 = vmatprep.subr.bf16.mxu0 0
    %1858 = vmatpush1.bf16.msra.mxu0 %v1798
    %1859 = vmatprep.subr.bf16.mxu0 0
    %1860 = vmatpush1.bf16.msra.mxu0 %v1800
    %1861 = vmatprep.subr.bf16.mxu0 0
    %1862 = vmatpush1.bf16.msra.mxu0 %v1802
    %1863 = vmatprep.subr.bf16.mxu0 0
    %1864 = vmatpush1.bf16.msra.mxu0 %v1804
    %1865 = vmatprep.subr.bf16.mxu0 0
    %1866 = vmatpush1.bf16.msra.mxu0 0
    %1867 = vmatprep.subr.bf16.mxu0 0
    %1868 = vmatpush1.bf16.msra.mxu0 0
    %1869 = vmatprep.subr.bf16.mxu0 0
    %1870 = vmatpush1.bf16.msra.mxu0 0
    %1871 = vmatprep.subr.bf16.mxu0 0
    %1872 = vmatpush1.bf16.msra.mxu0 0
    %1873 = vmatprep.subr.bf16.mxu0 0
    %1874 = vmatpush1.bf16.msra.mxu0 0
    %1875 = vmatprep.subr.bf16.mxu0 0
    %1876 = vmatpush1.bf16.msra.mxu0 0
    %1877 = vmatprep.subr.bf16.mxu0 0
    %1878 = vmatpush1.bf16.msra.mxu0 0
    %1879 = vmatprep.subr.bf16.mxu0 0
    %1880 = vmatpush1.bf16.msra.mxu0 0
    %1881 = vmatprep.subr.bf16.mxu0 0
    %1882 = vmatpush1.bf16.msra.mxu0 0
    %1883 = vmatprep.subr.bf16.mxu0 0
    %1884 = vmatpush1.bf16.msra.mxu0 0
    %1885 = vmatprep.subr.bf16.mxu0 0
    %1886 = vmatpush1.bf16.msra.mxu0 0
    %1887 = vmatprep.subr.bf16.mxu0 0
    %1888 = vmatpush1.bf16.msra.mxu0 0
    %1889 = vmatprep.mubr.bf16.mxu0 0
    %1890 = vmatmul.mubr.bf16.gmra.mrb[0].mxu0 %v1810
    %v1891 = vpop.f32.mrb[0].mxu0
    %v1892 = vadd.f32 0.0, %v1891
    %v1893 = vpop.f32.mrb[0].mxu0
    %v1894 = vpop.f32.mrb[0].mxu0
    %v1895 = vadd.f32 0.0, %v1894
    %v1896 = vpop.f32.mrb[0].mxu0
    %1897 = vmatprep.mubr.bf16.mxu0 0
    %1898 = vmatmul.mubr.bf16.gmra.mrb[0].mxu0 %v1813
    %v1899 = vpop.f32.mrb[0].mxu0
    %v1900 = vadd.f32 0.0, %v1899
    %v1901 = vpop.f32.mrb[0].mxu0
    %v1902 = vpop.f32.mrb[0].mxu0
    %v1903 = vadd.f32 0.0, %v1902
    %v1904 = vpop.f32.mrb[0].mxu0
    %1905 = vmatprep.mubr.bf16.mxu0 0
    %1906 = vmatmul.mubr.bf16.gmra.mrb[0].mxu0 %v1816
    %v1907 = vpop.f32.mrb[0].mxu0
    %v1908 = vadd.f32 0.0, %v1907
    %v1909 = vpop.f32.mrb[0].mxu0
    %v1910 = vpop.f32.mrb[0].mxu0
    %v1911 = vadd.f32 0.0, %v1910
    %v1912 = vpop.f32.mrb[0].mxu0
    %1913 = vmatprep.mubr.bf16.mxu0 0
    %1914 = vmatmul.mubr.bf16.gmra.mrb[0].mxu0 %v1819
    %v1915 = vpop.f32.mrb[0].mxu0
    %v1916 = vadd.f32 0.0, %v1915
    %v1917 = vpop.f32.mrb[0].mxu0
    %v1918 = vpop.f32.mrb[0].mxu0
    %v1919 = vadd.f32 0.0, %v1918
    %v1920 = vpop.f32.mrb[0].mxu0
    %1921 = vmatprep.mubr.bf16.mxu0 0
    %1922 = vmatmul.mubr.bf16.gmra.mrb[0].mxu0 %v1822
    %v1923 = vpop.f32.mrb[0].mxu0
    %v1924 = vadd.f32 0.0, %v1923
    %v1925 = vpop.f32.mrb[0].mxu0
    %v1926 = vpop.f32.mrb[0].mxu0
    %v1927 = vadd.f32 0.0, %v1926
    %v1928 = vpop.f32.mrb[0].mxu0
    %1929 = vmatprep.mubr.bf16.mxu0 0
    %1930 = vmatmul.mubr.bf16.gmra.mrb[0].mxu0 %v1825
    %v1931 = vpop.f32.mrb[0].mxu0
    %v1932 = vadd.f32 0.0, %v1931
    %v1933 = vpop.f32.mrb[0].mxu0
    %v1934 = vpop.f32.mrb[0].mxu0
    %v1935 = vadd.f32 0.0, %v1934
    %v1936 = vpop.f32.mrb[0].mxu0
    %1937 = vmatprep.mubr.bf16.mxu0 0
    %1938 = vmatmul.mubr.bf16.gmra.mrb[0].mxu0 %v1828
    %v1939 = vpop.f32.mrb[0].mxu0
    %v1940 = vadd.f32 0.0, %v1939
    %v1941 = vpop.f32.mrb[0].mxu0
    %v1942 = vpop.f32.mrb[0].mxu0
    %v1943 = vadd.f32 0.0, %v1942
    %v1944 = vpop.f32.mrb[0].mxu0
    %1945 = vmatprep.mubr.bf16.mxu0 0
    %1946 = vmatmul.mubr.bf16.gmra.mrb[0].mxu0 %v1831
    %v1947 = vpop.f32.mrb[0].mxu0
    %v1948 = vadd.f32 0.0, %v1947
    %v1949 = vpop.f32.mrb[0].mxu0
    %v1950 = vpop.f32.mrb[0].mxu0
    %v1951 = vadd.f32 0.0, %v1950
    %v1952 = vpop.f32.mrb[0].mxu0
    %1953 = vmatprep.mubr.bf16.mxu0 0
    %1954 = vmatmul.mubr.bf16.gmra.mrb[0].mxu0 %v1834
    %v1955 = vpop.f32.mrb[0].mxu0
    %v1956 = vadd.f32 0.0, %v1955
    %v1957 = vpop.f32.mrb[0].mxu0
    %v1958 = vpop.f32.mrb[0].mxu0
    %v1959 = vadd.f32 0.0, %v1958
    %v1960 = vpop.f32.mrb[0].mxu0
    %1961 = vmatprep.mubr.bf16.mxu0 0
    %1962 = vmatmul.mubr.bf16.gmra.mrb[0].mxu0 %v1837
    %v1963 = vpop.f32.mrb[0].mxu0
    %v1964 = vadd.f32 0.0, %v1963
    %v1965 = vpop.f32.mrb[0].mxu0
    %v1966 = vpop.f32.mrb[0].mxu0
    %v1967 = vadd.f32 0.0, %v1966
    %v1968 = vpop.f32.mrb[0].mxu0
    %1969 = vmatprep.mubr.bf16.mxu0 0
    %1970 = vmatmul.mubr.bf16.gmra.mrb[0].mxu0 %v1840
    %v1971 = vpop.f32.mrb[0].mxu0
    %v1972 = vadd.f32 0.0, %v1971
    %v1973 = vpop.f32.mrb[0].mxu0
    %v1974 = vpop.f32.mrb[0].mxu0
    %v1975 = vadd.f32 0.0, %v1974
    %v1976 = vpop.f32.mrb[0].mxu0
    %1977 = vmatprep.mubr.bf16.mxu0 0
    %1978 = vmatmul.mubr.bf16.gmra.mrb[0].mxu0 %v1843
    %v1979 = vpop.f32.mrb[0].mxu0
    %v1980 = vadd.f32 0.0, %v1979
    %v1981 = vpop.f32.mrb[0].mxu0
    %v1982 = vpop.f32.mrb[0].mxu0
    %v1983 = vadd.f32 0.0, %v1982
    %v1984 = vpop.f32.mrb[0].mxu0
    %1985 = vmatprep.mubr.bf16.mxu0 0
    %1986 = vmatmul.mubr.bf16.gmra.mrb[0].mxu0 %v1846
    %v1987 = vpop.f32.mrb[0].mxu0
    %v1988 = vadd.f32 0.0, %v1987
    %v1989 = vpop.f32.mrb[0].mxu0
    %v1990 = vpop.f32.mrb[0].mxu0
    %v1991 = vadd.f32 0.0, %v1990
    %v1992 = vpop.f32.mrb[0].mxu0
    %1993 = vmatprep.mubr.bf16.mxu0 0
    %1994 = vmatmul.mubr.bf16.gmra.mrb[0].mxu0 %v1849
    %v1995 = vpop.f32.mrb[0].mxu0
    %v1996 = vadd.f32 0.0, %v1995
    %v1997 = vpop.f32.mrb[0].mxu0
    %v1998 = vpop.f32.mrb[0].mxu0
    %v1999 = vadd.f32 0.0, %v1998
    %v2000 = vpop.f32.mrb[0].mxu0
    %2001 = vmatprep.mubr.bf16.mxu0 0
    %2002 = vmatmul.mubr.bf16.gmra.mrb[0].mxu0 %v1852
    %v2003 = vpop.f32.mrb[0].mxu0
    %v2004 = vadd.f32 0.0, %v2003
    %v2005 = vpop.f32.mrb[0].mxu0
    %v2006 = vpop.f32.mrb[0].mxu0
    %v2007 = vadd.f32 0.0, %v2006
    %v2008 = vpop.f32.mrb[0].mxu0
    %2009 = vmatprep.mubr.bf16.mxu0 0
    %2010 = vmatmul.mubr.bf16.gmra.mrb[0].mxu0 %v1855
    %v2011 = vpop.f32.mrb[0].mxu0
    %v2012 = vadd.f32 0.0, %v2011
    %v2013 = vpop.f32.mrb[0].mxu0
    %v2014 = vpop.f32.mrb[0].mxu0
    %v2015 = vadd.f32 0.0, %v2014
    %v2016 = vpop.f32.mrb[0].mxu0
    %2017 = vdwg.mxu0
    %v2018 = vpack.c.bf16 %v1895, %v1892
    %v2019 = vpack.c.bf16 %v1903, %v1900
    %v2020 = vpack.c.bf16 %v1911, %v1908
    %v2021 = vpack.c.bf16 %v1919, %v1916
    %v2022 = vld [vmem:[#allocation2] sm:$0xf]
    %v2023 = vld [vmem:[#allocation2 + $0x4] sm:$0xf]
    %v2024 = vld [vmem:[#allocation2 + $0x8] sm:$0xf]
    %v2025 = vld [vmem:[#allocation2 + $0xc] sm:$0xf]
    %v2026 = vpack.c.bf16 %v1927, %v1924
    %v2027 = vpack.c.bf16 %v1935, %v1932
    %v2028 = vpack.c.bf16 %v1943, %v1940
    %v2029 = vpack.c.bf16 %v1951, %v1948
    %v2030 = vld [vmem:[#allocation2 + $0x10] sm:$0xf]
    %v2031 = vld [vmem:[#allocation2 + $0x14] sm:$0xf]
    %v2032 = vld [vmem:[#allocation2 + $0x18] sm:$0xf]
    %v2033 = vld [vmem:[#allocation2 + $0x1c] sm:$0xf]
    %v2038 = vunpack.c.l.b16 %v2030
    %v2039 = vunpack.c.l.b16 %v2031
    %v2040 = vunpack.c.l.b16 %v2032
    %v2041 = vunpack.c.l.b16 %v2033
    %v2042 = vpack.c.b16 %v2039, %v2038
    %v2043 = vpack.c.b16 %v2041, %v2040
    %v2047 = vsel %vm1202, %v2026, 0
    %v2050 = vsel %vm1202, %v2027, 0
    %v2053 = vsel %vm1202, %v2028, 0
    %v2056 = vsel %vm1202, %v2029, 0
    %2058 = vmatprep.subr.bf16.mxu0 0
    %2059 = vmatpush1.bf16.msra.mxu0 %v2042
    %2060 = vmatprep.subr.bf16.mxu0 0
    %2061 = vmatpush1.bf16.msra.mxu0 %v2043
    %2062 = vmatprep.subr.bf16.mxu0 0
    %2063 = vmatpush1.bf16.msra.mxu0 0
    %2064 = vmatprep.subr.bf16.mxu0 0
    %2065 = vmatpush1.bf16.msra.mxu0 0
    %2066 = vmatprep.subr.bf16.mxu0 0
    %2067 = vmatpush1.bf16.msra.mxu0 0
    %2068 = vmatprep.subr.bf16.mxu0 0
    %2069 = vmatpush1.bf16.msra.mxu0 0
    %2070 = vmatprep.subr.bf16.mxu0 0
    %2071 = vmatpush1.bf16.msra.mxu0 0
    %2072 = vmatprep.subr.bf16.mxu0 0
    %2073 = vmatpush1.bf16.msra.mxu0 0
    %2074 = vmatprep.subr.bf16.mxu0 0
    %2075 = vmatpush1.bf16.msra.mxu0 0
    %2076 = vmatprep.subr.bf16.mxu0 0
    %2077 = vmatpush1.bf16.msra.mxu0 0
    %2078 = vmatprep.subr.bf16.mxu0 0
    %2079 = vmatpush1.bf16.msra.mxu0 0
    %2080 = vmatprep.subr.bf16.mxu0 0
    %2081 = vmatpush1.bf16.msra.mxu0 0
    %2082 = vmatprep.subr.bf16.mxu0 0
    %2083 = vmatpush1.bf16.msra.mxu0 0
    %2084 = vmatprep.subr.bf16.mxu0 0
    %2085 = vmatpush1.bf16.msra.mxu0 0
    %2086 = vmatprep.subr.bf16.mxu0 0
    %2087 = vmatpush1.bf16.msra.mxu0 0
    %2088 = vmatprep.subr.bf16.mxu0 0
    %2089 = vmatpush1.bf16.msra.mxu0 0
    %2090 = vmatprep.mubr.bf16.mxu0 0
    %2091 = vmatmul.mubr.bf16.gmra.mrb[0].mxu0 %v2047
    %v2092 = vpop.f32.mrb[0].mxu0
    %v2093 = vadd.f32 0.0, %v2092
    %v2094 = vpop.f32.mrb[0].mxu0
    %v2095 = vpop.f32.mrb[0].mxu0
    %v2096 = vadd.f32 0.0, %v2095
    %v2097 = vpop.f32.mrb[0].mxu0
    %2098 = vmatprep.mubr.bf16.mxu0 0
    %2099 = vmatmul.mubr.bf16.gmra.mrb[0].mxu0 %v2050
    %v2100 = vpop.f32.mrb[0].mxu0
    %v2101 = vadd.f32 0.0, %v2100
    %v2102 = vpop.f32.mrb[0].mxu0
    %v2103 = vpop.f32.mrb[0].mxu0
    %v2104 = vadd.f32 0.0, %v2103
    %v2105 = vpop.f32.mrb[0].mxu0
    %2106 = vmatprep.mubr.bf16.mxu0 0
    %2107 = vmatmul.mubr.bf16.gmra.mrb[0].mxu0 %v2053
    %v2108 = vpop.f32.mrb[0].mxu0
    %v2109 = vadd.f32 0.0, %v2108
    %v2110 = vpop.f32.mrb[0].mxu0
    %v2111 = vpop.f32.mrb[0].mxu0
    %v2112 = vadd.f32 0.0, %v2111
    %v2113 = vpop.f32.mrb[0].mxu0
    %2114 = vmatprep.mubr.bf16.mxu0 0
    %2115 = vmatmul.mubr.bf16.gmra.mrb[0].mxu0 %v2056
    %v2116 = vpop.f32.mrb[0].mxu0
    %v2117 = vadd.f32 0.0, %v2116
    %v2118 = vpop.f32.mrb[0].mxu0
    %v2119 = vpop.f32.mrb[0].mxu0
    %v2120 = vadd.f32 0.0, %v2119
    %v2121 = vpop.f32.mrb[0].mxu0
    %2122 = vdwg.mxu0
    %v2127 = vunpack.c.l.b16 %v2022
    %v2128 = vunpack.c.l.b16 %v2023
    %v2129 = vunpack.c.l.b16 %v2024
    %v2130 = vunpack.c.l.b16 %v2025
    %v2131 = vpack.c.b16 %v2128, %v2127
    %v2132 = vpack.c.b16 %v2130, %v2129
    %v2136 = vsel %vm1202, %v2018, 0
    %v2139 = vsel %vm1202, %v2019, 0
    %v2142 = vsel %vm1202, %v2020, 0
    %v2145 = vsel %vm1202, %v2021, 0
    %2147 = vmatprep.subr.bf16.mxu0 0
    %2148 = vmatpush1.bf16.msra.mxu0 %v2131
    %2149 = vmatprep.subr.bf16.mxu0 0
    %2150 = vmatpush1.bf16.msra.mxu0 %v2132
    %2151 = vmatprep.subr.bf16.mxu0 0
    %2152 = vmatpush1.bf16.msra.mxu0 0
    %2153 = vmatprep.subr.bf16.mxu0 0
    %2154 = vmatpush1.bf16.msra.mxu0 0
    %2155 = vmatprep.subr.bf16.mxu0 0
    %2156 = vmatpush1.bf16.msra.mxu0 0
    %2157 = vmatprep.subr.bf16.mxu0 0
    %2158 = vmatpush1.bf16.msra.mxu0 0
    %2159 = vmatprep.subr.bf16.mxu0 0
    %2160 = vmatpush1.bf16.msra.mxu0 0
    %2161 = vmatprep.subr.bf16.mxu0 0
    %2162 = vmatpush1.bf16.msra.mxu0 0
    %2163 = vmatprep.subr.bf16.mxu0 0
    %2164 = vmatpush1.bf16.msra.mxu0 0
    %2165 = vmatprep.subr.bf16.mxu0 0
    %2166 = vmatpush1.bf16.msra.mxu0 0
    %2167 = vmatprep.subr.bf16.mxu0 0
    %2168 = vmatpush1.bf16.msra.mxu0 0
    %2169 = vmatprep.subr.bf16.mxu0 0
    %2170 = vmatpush1.bf16.msra.mxu0 0
    %2171 = vmatprep.subr.bf16.mxu0 0
    %2172 = vmatpush1.bf16.msra.mxu0 0
    %2173 = vmatprep.subr.bf16.mxu0 0
    %2174 = vmatpush1.bf16.msra.mxu0 0
    %2175 = vmatprep.subr.bf16.mxu0 0
    %2176 = vmatpush1.bf16.msra.mxu0 0
    %2177 = vmatprep.subr.bf16.mxu0 0
    %2178 = vmatpush1.bf16.msra.mxu0 0
    %2179 = vmatprep.mubr.bf16.mxu0 0
    %2180 = vmatmul.mubr.bf16.gmra.mrb[0].mxu0 %v2136
    %v2181 = vpop.f32.mrb[0].mxu0
    %v2182 = vadd.f32 %v2093, %v2181
    %v2183 = vpop.f32.mrb[0].mxu0
    %v2184 = vpop.f32.mrb[0].mxu0
    %v2185 = vadd.f32 %v2096, %v2184
    %v2186 = vpop.f32.mrb[0].mxu0
    %2187 = vmatprep.mubr.bf16.mxu0 0
    %2188 = vmatmul.mubr.bf16.gmra.mrb[0].mxu0 %v2139
    %v2189 = vpop.f32.mrb[0].mxu0
    %v2190 = vadd.f32 %v2101, %v2189
    %v2191 = vpop.f32.mrb[0].mxu0
    %v2192 = vpop.f32.mrb[0].mxu0
    %v2193 = vadd.f32 %v2104, %v2192
    %v2194 = vpop.f32.mrb[0].mxu0
    %2195 = vmatprep.mubr.bf16.mxu0 0
    %2196 = vmatmul.mubr.bf16.gmra.mrb[0].mxu0 %v2142
    %v2197 = vpop.f32.mrb[0].mxu0
    %v2198 = vadd.f32 %v2109, %v2197
    %v2199 = vpop.f32.mrb[0].mxu0
    %v2200 = vpop.f32.mrb[0].mxu0
    %v2201 = vadd.f32 %v2112, %v2200
    %v2202 = vpop.f32.mrb[0].mxu0
    %2203 = vmatprep.mubr.bf16.mxu0 0
    %2204 = vmatmul.mubr.bf16.gmra.mrb[0].mxu0 %v2145
    %v2205 = vpop.f32.mrb[0].mxu0
    %v2206 = vadd.f32 %v2117, %v2205
    %v2207 = vpop.f32.mrb[0].mxu0
    %v2208 = vpop.f32.mrb[0].mxu0
    %v2209 = vadd.f32 %v2120, %v2208
    %v2210 = vpop.f32.mrb[0].mxu0
    %2211 = vdwg.mxu0
    %v2212 = vpack.c.bf16 %v1959, %v1956
    %v2213 = vpack.c.bf16 %v1967, %v1964
    %v2214 = vpack.c.bf16 %v1975, %v1972
    %v2215 = vpack.c.bf16 %v1983, %v1980
    %v2216 = vld [vmem:[#allocation2 + $0x20] sm:$0xf]
    %v2217 = vld [vmem:[#allocation2 + $0x24] sm:$0xf]
    %v2218 = vld [vmem:[#allocation2 + $0x28] sm:$0xf]
    %v2219 = vld [vmem:[#allocation2 + $0x2c] sm:$0xf]
    %v2224 = vunpack.c.l.b16 %v2216
    %v2225 = vunpack.c.l.b16 %v2217
    %v2226 = vunpack.c.l.b16 %v2218
    %v2227 = vunpack.c.l.b16 %v2219
    %v2228 = vpack.c.b16 %v2225, %v2224
    %v2229 = vpack.c.b16 %v2227, %v2226
    %v2233 = vsel %vm1202, %v2212, 0
    %v2236 = vsel %vm1202, %v2213, 0
    %v2239 = vsel %vm1202, %v2214, 0
    %v2242 = vsel %vm1202, %v2215, 0
    %2244 = vmatprep.subr.bf16.mxu0 0
    %2245 = vmatpush1.bf16.msra.mxu0 %v2228
    %2246 = vmatprep.subr.bf16.mxu0 0
    %2247 = vmatpush1.bf16.msra.mxu0 %v2229
    %2248 = vmatprep.subr.bf16.mxu0 0
    %2249 = vmatpush1.bf16.msra.mxu0 0
    %2250 = vmatprep.subr.bf16.mxu0 0
    %2251 = vmatpush1.bf16.msra.mxu0 0
    %2252 = vmatprep.subr.bf16.mxu0 0
    %2253 = vmatpush1.bf16.msra.mxu0 0
    %2254 = vmatprep.subr.bf16.mxu0 0
    %2255 = vmatpush1.bf16.msra.mxu0 0
    %2256 = vmatprep.subr.bf16.mxu0 0
    %2257 = vmatpush1.bf16.msra.mxu0 0
    %2258 = vmatprep.subr.bf16.mxu0 0
    %2259 = vmatpush1.bf16.msra.mxu0 0
    %2260 = vmatprep.subr.bf16.mxu0 0
    %2261 = vmatpush1.bf16.msra.mxu0 0
    %2262 = vmatprep.subr.bf16.mxu0 0
    %2263 = vmatpush1.bf16.msra.mxu0 0
    %2264 = vmatprep.subr.bf16.mxu0 0
    %2265 = vmatpush1.bf16.msra.mxu0 0
    %2266 = vmatprep.subr.bf16.mxu0 0
    %2267 = vmatpush1.bf16.msra.mxu0 0
    %2268 = vmatprep.subr.bf16.mxu0 0
    %2269 = vmatpush1.bf16.msra.mxu0 0
    %2270 = vmatprep.subr.bf16.mxu0 0
    %2271 = vmatpush1.bf16.msra.mxu0 0
    %2272 = vmatprep.subr.bf16.mxu0 0
    %2273 = vmatpush1.bf16.msra.mxu0 0
    %2274 = vmatprep.subr.bf16.mxu0 0
    %2275 = vmatpush1.bf16.msra.mxu0 0
    %2276 = vmatprep.mubr.bf16.mxu0 0
    %2277 = vmatmul.mubr.bf16.gmra.mrb[0].mxu0 %v2233
    %v2278 = vpop.f32.mrb[0].mxu0
    %v2279 = vadd.f32 0.0, %v2278
    %v2280 = vpop.f32.mrb[0].mxu0
    %v2281 = vpop.f32.mrb[0].mxu0
    %v2282 = vadd.f32 0.0, %v2281
    %v2283 = vpop.f32.mrb[0].mxu0
    %2284 = vmatprep.mubr.bf16.mxu0 0
    %2285 = vmatmul.mubr.bf16.gmra.mrb[0].mxu0 %v2236
    %v2286 = vpop.f32.mrb[0].mxu0
    %v2287 = vadd.f32 0.0, %v2286
    %v2288 = vpop.f32.mrb[0].mxu0
    %v2289 = vpop.f32.mrb[0].mxu0
    %v2290 = vadd.f32 0.0, %v2289
    %v2291 = vpop.f32.mrb[0].mxu0
    %2292 = vmatprep.mubr.bf16.mxu0 0
    %2293 = vmatmul.mubr.bf16.gmra.mrb[0].mxu0 %v2239
    %v2294 = vpop.f32.mrb[0].mxu0
    %v2295 = vadd.f32 0.0, %v2294
    %v2296 = vpop.f32.mrb[0].mxu0
    %v2297 = vpop.f32.mrb[0].mxu0
    %v2298 = vadd.f32 0.0, %v2297
    %v2299 = vpop.f32.mrb[0].mxu0
    %2300 = vmatprep.mubr.bf16.mxu0 0
    %2301 = vmatmul.mubr.bf16.gmra.mrb[0].mxu0 %v2242
    %v2302 = vpop.f32.mrb[0].mxu0
    %v2303 = vadd.f32 0.0, %v2302
    %v2304 = vpop.f32.mrb[0].mxu0
    %v2305 = vpop.f32.mrb[0].mxu0
    %v2306 = vadd.f32 0.0, %v2305
    %v2307 = vpop.f32.mrb[0].mxu0
    %2308 = vdwg.mxu0
    %v2309 = vadd.f32 %v2182, %v2279
    %v2310 = vadd.f32 %v2185, %v2282
    %v2311 = vadd.f32 %v2190, %v2287
    %v2312 = vadd.f32 %v2193, %v2290
    %v2313 = vadd.f32 %v2198, %v2295
    %v2314 = vadd.f32 %v2201, %v2298
    %v2315 = vadd.f32 %v2206, %v2303
    %v2316 = vadd.f32 %v2209, %v2306
    %v2317 = vpack.c.bf16 %v1991, %v1988
    %v2318 = vpack.c.bf16 %v1999, %v1996
    %v2319 = vpack.c.bf16 %v2007, %v2004
    %v2320 = vpack.c.bf16 %v2015, %v2012
    %v2321 = vld [vmem:[#allocation2 + $0x30] sm:$0xf]
    %v2322 = vld [vmem:[#allocation2 + $0x34] sm:$0xf]
    %v2323 = vld [vmem:[#allocation2 + $0x38] sm:$0xf]
    %v2324 = vld [vmem:[#allocation2 + $0x3c] sm:$0xf]
    %v2329 = vunpack.c.l.b16 %v2321
    %v2330 = vunpack.c.l.b16 %v2322
    %v2331 = vunpack.c.l.b16 %v2323
    %v2332 = vunpack.c.l.b16 %v2324
    %v2333 = vpack.c.b16 %v2330, %v2329
    %v2334 = vpack.c.b16 %v2332, %v2331
    %v2338 = vsel %vm1202, %v2317, 0
    %v2341 = vsel %vm1202, %v2318, 0
    %v2344 = vsel %vm1202, %v2319, 0
    %v2347 = vsel %vm1202, %v2320, 0
    %2349 = vmatprep.subr.bf16.mxu0 0
    %2350 = vmatpush1.bf16.msra.mxu0 %v2333
    %2351 = vmatprep.subr.bf16.mxu0 0
    %2352 = vmatpush1.bf16.msra.mxu0 %v2334
    %2353 = vmatprep.subr.bf16.mxu0 0
    %2354 = vmatpush1.bf16.msra.mxu0 0
    %2355 = vmatprep.subr.bf16.mxu0 0
    %2356 = vmatpush1.bf16.msra.mxu0 0
    %2357 = vmatprep.subr.bf16.mxu0 0
    %2358 = vmatpush1.bf16.msra.mxu0 0
    %2359 = vmatprep.subr.bf16.mxu0 0
    %2360 = vmatpush1.bf16.msra.mxu0 0
    %2361 = vmatprep.subr.bf16.mxu0 0
    %2362 = vmatpush1.bf16.msra.mxu0 0
    %2363 = vmatprep.subr.bf16.mxu0 0
    %2364 = vmatpush1.bf16.msra.mxu0 0
    %2365 = vmatprep.subr.bf16.mxu0 0
    %2366 = vmatpush1.bf16.msra.mxu0 0
    %2367 = vmatprep.subr.bf16.mxu0 0
    %2368 = vmatpush1.bf16.msra.mxu0 0
    %2369 = vmatprep.subr.bf16.mxu0 0
    %2370 = vmatpush1.bf16.msra.mxu0 0
    %2371 = vmatprep.subr.bf16.mxu0 0
    %2372 = vmatpush1.bf16.msra.mxu0 0
    %2373 = vmatprep.subr.bf16.mxu0 0
    %2374 = vmatpush1.bf16.msra.mxu0 0
    %2375 = vmatprep.subr.bf16.mxu0 0
    %2376 = vmatpush1.bf16.msra.mxu0 0
    %2377 = vmatprep.subr.bf16.mxu0 0
    %2378 = vmatpush1.bf16.msra.mxu0 0
    %2379 = vmatprep.subr.bf16.mxu0 0
    %2380 = vmatpush1.bf16.msra.mxu0 0
    %2381 = vmatprep.mubr.bf16.mxu0 0
    %2382 = vmatmul.mubr.bf16.gmra.mrb[0].mxu0 %v2338
    %v2383 = vpop.f32.mrb[0].mxu0
    %v2384 = vadd.f32 0.0, %v2383
    %v2385 = vpop.f32.mrb[0].mxu0
    %v2386 = vpop.f32.mrb[0].mxu0
    %v2387 = vadd.f32 0.0, %v2386
    %v2388 = vpop.f32.mrb[0].mxu0
    %2389 = vmatprep.mubr.bf16.mxu0 0
    %2390 = vmatmul.mubr.bf16.gmra.mrb[0].mxu0 %v2341
    %v2391 = vpop.f32.mrb[0].mxu0
    %v2392 = vadd.f32 0.0, %v2391
    %v2393 = vpop.f32.mrb[0].mxu0
    %v2394 = vpop.f32.mrb[0].mxu0
    %v2395 = vadd.f32 0.0, %v2394
    %v2396 = vpop.f32.mrb[0].mxu0
    %2397 = vmatprep.mubr.bf16.mxu0 0
    %2398 = vmatmul.mubr.bf16.gmra.mrb[0].mxu0 %v2344
    %v2399 = vpop.f32.mrb[0].mxu0
    %v2400 = vadd.f32 0.0, %v2399
    %v2401 = vpop.f32.mrb[0].mxu0
    %v2402 = vpop.f32.mrb[0].mxu0
    %v2403 = vadd.f32 0.0, %v2402
    %v2404 = vpop.f32.mrb[0].mxu0
    %2405 = vmatprep.mubr.bf16.mxu0 0
    %2406 = vmatmul.mubr.bf16.gmra.mrb[0].mxu0 %v2347
    %v2407 = vpop.f32.mrb[0].mxu0
    %v2408 = vadd.f32 0.0, %v2407
    %v2409 = vpop.f32.mrb[0].mxu0
    %v2410 = vpop.f32.mrb[0].mxu0
    %v2411 = vadd.f32 0.0, %v2410
    %v2412 = vpop.f32.mrb[0].mxu0
    %2413 = vdwg.mxu0
    %v2414 = vadd.f32 %v2309, %v2384
    %v2415 = vadd.f32 %v2310, %v2387
    %v2416 = vadd.f32 %v2311, %v2392
    %v2417 = vadd.f32 %v2312, %v2395
    %v2418 = vadd.f32 %v2313, %v2400
    %v2419 = vadd.f32 %v2314, %v2403
    %v2420 = vadd.f32 %v2315, %v2408
    %v2421 = vadd.f32 %v2316, %v2411
    %v2422 = vpack.c.bf16 %v442, %v439
    %v2423 = vpack.c.bf16 %v450, %v447
    %v2424 = vpack.c.bf16 %v458, %v455
    %v2425 = vpack.c.bf16 %v466, %v463
    %v2426 = vmul.f32 %v334, %v469
    %v2427 = vmul.f32 %v338, %v470
    %v2428 = vmul.f32 %v344, %v471
    %v2429 = vmul.f32 %v348, %v472
    %v2430 = vmul.f32 %v354, %v473
    %v2431 = vmul.f32 %v358, %v474
    %v2432 = vmul.f32 %v364, %v475
    %v2433 = vmul.f32 %v368, %v476
    %v2434 = vmul.f32 %v336, %v478
    %v2435 = vmul.f32 %v340, %v479
    %v2436 = vmul.f32 %v346, %v480
    %v2437 = vmul.f32 %v350, %v481
    %v2438 = vmul.f32 %v356, %v482
    %v2439 = vmul.f32 %v360, %v483
    %v2440 = vmul.f32 %v366, %v484
    %v2441 = vmul.f32 %v370, %v485
    %v2442 = vadd.f32 %v2426, %v2434
    %v2443 = vadd.f32 %v2427, %v2435
    %v2444 = vadd.f32 %v2428, %v2436
    %v2445 = vadd.f32 %v2429, %v2437
    %v2446 = vadd.f32 %v2430, %v2438
    %v2447 = vadd.f32 %v2431, %v2439
    %v2448 = vadd.f32 %v2432, %v2440
    %v2449 = vadd.f32 %v2433, %v2441
    %v2450 = vmul.f32 %v439, %v486
    %v2451 = vmul.f32 %v442, %v487
    %v2452 = vmul.f32 %v447, %v488
    %v2453 = vmul.f32 %v450, %v489
    %v2454 = vmul.f32 %v455, %v490
    %v2455 = vmul.f32 %v458, %v491
    %v2456 = vmul.f32 %v463, %v492
    %v2457 = vmul.f32 %v466, %v493
    %v2458 = vmul.f32 %v439, %v1031
    %v2459 = vmul.f32 %v442, %v1033
    %v2460 = vmul.f32 %v447, %v1035
    %v2461 = vmul.f32 %v450, %v1037
    %v2462 = vmul.f32 %v455, %v1039
    %v2463 = vmul.f32 %v458, %v1041
    %v2464 = vmul.f32 %v463, %v1043
    %v2465 = vmul.f32 %v466, %v1045
    %2474 = vrot.lane.b32.xlu0 %v2458, 96
    %v2475 = vpop.permute.xlu0 %2474
    %2476 = vrot.lane.b32.xlu0 %v2459, 96
    %v2477 = vpop.permute.xlu0 %2476
    %2478 = vrot.lane.b32.xlu0 %v2460, 96
    %v2479 = vpop.permute.xlu0 %2478
    %2480 = vrot.lane.b32.xlu0 %v2461, 96
    %v2481 = vpop.permute.xlu0 %2480
    %2482 = vrot.lane.b32.xlu0 %v2462, 96
    %v2483 = vpop.permute.xlu0 %2482
    %2484 = vrot.lane.b32.xlu0 %v2463, 96
    %v2485 = vpop.permute.xlu0 %2484
    %2486 = vrot.lane.b32.xlu0 %v2464, 96
    %v2487 = vpop.permute.xlu0 %2486
    %2488 = vrot.lane.b32.xlu0 %v2465, 96
    %v2489 = vpop.permute.xlu0 %2488
    %v2498 = vadd.f32 %v2450, %v2475
    %v2499 = vadd.f32 %v2451, %v2477
    %v2500 = vadd.f32 %v2452, %v2479
    %v2501 = vadd.f32 %v2453, %v2481
    %v2502 = vadd.f32 %v2454, %v2483
    %v2503 = vadd.f32 %v2455, %v2485
    %v2504 = vadd.f32 %v2456, %v2487
    %v2505 = vadd.f32 %v2457, %v2489
    %v2506 = vpack.c.bf16 %v2499, %v2498
    %v2507 = vpack.c.bf16 %v2501, %v2500
    %v2508 = vpack.c.bf16 %v2503, %v2502
    %v2509 = vpack.c.bf16 %v2505, %v2504
    %2518 = vrot.lane.b32.xlu0 %v2442, 96
    %v2519 = vpop.permute.xlu0 %2518
    %2520 = vrot.lane.b32.xlu0 %v2443, 96
    %v2521 = vpop.permute.xlu0 %2520
    %2522 = vrot.lane.b32.xlu0 %v2444, 96
    %v2523 = vpop.permute.xlu0 %2522
    %2524 = vrot.lane.b32.xlu0 %v2445, 96
    %v2525 = vpop.permute.xlu0 %2524
    %2526 = vrot.lane.b32.xlu0 %v2446, 96
    %v2527 = vpop.permute.xlu0 %2526
    %2528 = vrot.lane.b32.xlu0 %v2447, 96
    %v2529 = vpop.permute.xlu0 %2528
    %2530 = vrot.lane.b32.xlu0 %v2448, 96
    %v2531 = vpop.permute.xlu0 %2530
    %2532 = vrot.lane.b32.xlu0 %v2449, 96
    %v2533 = vpop.permute.xlu0 %2532
    %2542 = vrot.lane.b32.xlu0 %v2442, 64
    %v2543 = vpop.permute.xlu0 %2542
    %2544 = vrot.lane.b32.xlu0 %v2443, 64
    %v2545 = vpop.permute.xlu0 %2544
    %2546 = vrot.lane.b32.xlu0 %v2444, 64
    %v2547 = vpop.permute.xlu0 %2546
    %2548 = vrot.lane.b32.xlu0 %v2445, 64
    %v2549 = vpop.permute.xlu0 %2548
    %2550 = vrot.lane.b32.xlu0 %v2446, 64
    %v2551 = vpop.permute.xlu0 %2550
    %2552 = vrot.lane.b32.xlu0 %v2447, 64
    %v2553 = vpop.permute.xlu0 %2552
    %2554 = vrot.lane.b32.xlu0 %v2448, 64
    %v2555 = vpop.permute.xlu0 %2554
    %2556 = vrot.lane.b32.xlu0 %v2449, 64
    %v2557 = vpop.permute.xlu0 %2556
    %2566 = vrot.lane.b32.xlu0 %v2442, 32
    %v2567 = vpop.permute.xlu0 %2566
    %2568 = vrot.lane.b32.xlu0 %v2443, 32
    %v2569 = vpop.permute.xlu0 %2568
    %2570 = vrot.lane.b32.xlu0 %v2444, 32
    %v2571 = vpop.permute.xlu0 %2570
    %2572 = vrot.lane.b32.xlu0 %v2445, 32
    %v2573 = vpop.permute.xlu0 %2572
    %2574 = vrot.lane.b32.xlu0 %v2446, 32
    %v2575 = vpop.permute.xlu0 %2574
    %2576 = vrot.lane.b32.xlu0 %v2447, 32
    %v2577 = vpop.permute.xlu0 %2576
    %2578 = vrot.lane.b32.xlu0 %v2448, 32
    %v2579 = vpop.permute.xlu0 %2578
    %2580 = vrot.lane.b32.xlu0 %v2449, 32
    %v2581 = vpop.permute.xlu0 %2580
    %v2590 = vpack.c.bf16 %v2443, %v2442
    %v2591 = vpack.c.bf16 %v2445, %v2444
    %v2592 = vpack.c.bf16 %v2447, %v2446
    %v2593 = vpack.c.bf16 %v2449, %v2448
    %v2594 = vpack.c.bf16 %v2521, %v2519
    %v2595 = vpack.c.bf16 %v2525, %v2523
    %v2596 = vpack.c.bf16 %v2529, %v2527
    %v2597 = vpack.c.bf16 %v2533, %v2531
    %v2598 = vpack.c.bf16 %v2545, %v2543
    %v2599 = vpack.c.bf16 %v2549, %v2547
    %v2600 = vpack.c.bf16 %v2553, %v2551
    %v2601 = vpack.c.bf16 %v2557, %v2555
    %v2602 = vpack.c.bf16 %v2569, %v2567
    %v2603 = vpack.c.bf16 %v2573, %v2571
    %v2604 = vpack.c.bf16 %v2577, %v2575
    %v2605 = vpack.c.bf16 %v2581, %v2579
    %v2607 = vsel %vm1202, %v2590, 0
    %v2610 = vsel %vm1202, %v2591, 0
    %v2613 = vsel %vm1202, %v2592, 0
    %v2616 = vsel %vm1202, %v2593, 0
    %v2619 = vsel %vm1202, %v2594, 0
    %v2622 = vsel %vm1202, %v2595, 0
    %v2625 = vsel %vm1202, %v2596, 0
    %v2628 = vsel %vm1202, %v2597, 0
    %v2631 = vsel %vm1202, %v2598, 0
    %v2634 = vsel %vm1202, %v2599, 0
    %v2637 = vsel %vm1202, %v2600, 0
    %v2640 = vsel %vm1202, %v2601, 0
    %v2643 = vsel %vm1202, %v2602, 0
    %v2646 = vsel %vm1202, %v2603, 0
    %v2649 = vsel %vm1202, %v2604, 0
    %v2652 = vsel %vm1202, %v2605, 0
    %v2655 = vsel %vm1202, %v2506, 0
    %v2658 = vsel %vm1202, %v2507, 0
    %v2661 = vsel %vm1202, %v2508, 0
    %v2664 = vsel %vm1202, %v2509, 0
    %2666 = vmatprep.subr.bf16.mxu0 0
    %2667 = vmatpush1.bf16.xpose.msra.mxu0 %v2655
    %2668 = vmatprep.subr.bf16.mxu0 0
    %2669 = vmatpush1.bf16.xpose.msra.mxu0 %v2658
    %2670 = vmatprep.subr.bf16.mxu0 0
    %2671 = vmatpush1.bf16.xpose.msra.mxu0 %v2661
    %2672 = vmatprep.subr.bf16.mxu0 0
    %2673 = vmatpush1.bf16.xpose.msra.mxu0 %v2664
    %2674 = vmatprep.subr.bf16.mxu0 0
    %2675 = vmatpush1.bf16.xpose.msra.mxu0 0
    %2676 = vmatprep.subr.bf16.mxu0 0
    %2677 = vmatpush1.bf16.xpose.msra.mxu0 0
    %2678 = vmatprep.subr.bf16.mxu0 0
    %2679 = vmatpush1.bf16.xpose.msra.mxu0 0
    %2680 = vmatprep.subr.bf16.mxu0 0
    %2681 = vmatpush1.bf16.xpose.msra.mxu0 0
    %2682 = vmatprep.subr.bf16.mxu0 0
    %2683 = vmatpush1.bf16.xpose.msra.mxu0 0
    %2684 = vmatprep.subr.bf16.mxu0 0
    %2685 = vmatpush1.bf16.xpose.msra.mxu0 0
    %2686 = vmatprep.subr.bf16.mxu0 0
    %2687 = vmatpush1.bf16.xpose.msra.mxu0 0
    %2688 = vmatprep.subr.bf16.mxu0 0
    %2689 = vmatpush1.bf16.xpose.msra.mxu0 0
    %2690 = vmatprep.subr.bf16.mxu0 0
    %2691 = vmatpush1.bf16.xpose.msra.mxu0 0
    %2692 = vmatprep.subr.bf16.mxu0 0
    %2693 = vmatpush1.bf16.xpose.msra.mxu0 0
    %2694 = vmatprep.subr.bf16.mxu0 0
    %2695 = vmatpush1.bf16.xpose.msra.mxu0 0
    %2696 = vmatprep.subr.bf16.mxu0 0
    %2697 = vmatpush1.bf16.xpose.msra.mxu0 0
    %2698 = vmatprep.mubr.bf16.mxu0 0
    %2699 = vmatmul.mubr.bf16.gmra.mrb[0].mxu0 %v2607
    %v2700 = vpop.f32.mrb[0].mxu0
    %v2701 = vadd.f32 %v954, %v2700
    %v2702 = vpop.f32.mrb[0].mxu0
    %v2703 = vpop.f32.mrb[0].mxu0
    %v2704 = vadd.f32 %v955, %v2703
    %v2705 = vpop.f32.mrb[0].mxu0
    %2706 = vmatprep.mubr.bf16.mxu0 0
    %2707 = vmatmul.mubr.bf16.gmra.mrb[0].mxu0 %v2610
    %v2708 = vpop.f32.mrb[0].mxu0
    %v2709 = vadd.f32 %v956, %v2708
    %v2710 = vpop.f32.mrb[0].mxu0
    %v2711 = vpop.f32.mrb[0].mxu0
    %v2712 = vadd.f32 %v957, %v2711
    %v2713 = vpop.f32.mrb[0].mxu0
    %2714 = vmatprep.mubr.bf16.mxu0 0
    %2715 = vmatmul.mubr.bf16.gmra.mrb[0].mxu0 %v2613
    %v2716 = vpop.f32.mrb[0].mxu0
    %v2717 = vadd.f32 %v958, %v2716
    %v2718 = vpop.f32.mrb[0].mxu0
    %v2719 = vpop.f32.mrb[0].mxu0
    %v2720 = vadd.f32 %v959, %v2719
    %v2721 = vpop.f32.mrb[0].mxu0
    %2722 = vmatprep.mubr.bf16.mxu0 0
    %2723 = vmatmul.mubr.bf16.gmra.mrb[0].mxu0 %v2616
    %v2724 = vpop.f32.mrb[0].mxu0
    %v2725 = vadd.f32 %v960, %v2724
    %v2726 = vpop.f32.mrb[0].mxu0
    %v2727 = vpop.f32.mrb[0].mxu0
    %v2728 = vadd.f32 %v961, %v2727
    %v2729 = vpop.f32.mrb[0].mxu0
    %2730 = vmatprep.mubr.bf16.mxu0 0
    %2731 = vmatmul.mubr.bf16.gmra.mrb[0].mxu0 %v2619
    %v2732 = vpop.f32.mrb[0].mxu0
    %v2733 = vadd.f32 %v962, %v2732
    %v2734 = vpop.f32.mrb[0].mxu0
    %v2735 = vpop.f32.mrb[0].mxu0
    %v2736 = vadd.f32 %v963, %v2735
    %v2737 = vpop.f32.mrb[0].mxu0
    %2738 = vmatprep.mubr.bf16.mxu0 0
    %2739 = vmatmul.mubr.bf16.gmra.mrb[0].mxu0 %v2622
    %v2740 = vpop.f32.mrb[0].mxu0
    %v2741 = vadd.f32 %v964, %v2740
    %v2742 = vpop.f32.mrb[0].mxu0
    %v2743 = vpop.f32.mrb[0].mxu0
    %v2744 = vadd.f32 %v965, %v2743
    %v2745 = vpop.f32.mrb[0].mxu0
    %2746 = vmatprep.mubr.bf16.mxu0 0
    %2747 = vmatmul.mubr.bf16.gmra.mrb[0].mxu0 %v2625
    %v2748 = vpop.f32.mrb[0].mxu0
    %v2749 = vadd.f32 %v966, %v2748
    %v2750 = vpop.f32.mrb[0].mxu0
    %v2751 = vpop.f32.mrb[0].mxu0
    %v2752 = vadd.f32 %v967, %v2751
    %v2753 = vpop.f32.mrb[0].mxu0
    %2754 = vmatprep.mubr.bf16.mxu0 0
    %2755 = vmatmul.mubr.bf16.gmra.mrb[0].mxu0 %v2628
    %v2756 = vpop.f32.mrb[0].mxu0
    %v2757 = vadd.f32 %v968, %v2756
    %v2758 = vpop.f32.mrb[0].mxu0
    %v2759 = vpop.f32.mrb[0].mxu0
    %v2760 = vadd.f32 %v969, %v2759
    %v2761 = vpop.f32.mrb[0].mxu0
    %2762 = vmatprep.mubr.bf16.mxu0 0
    %2763 = vmatmul.mubr.bf16.gmra.mrb[0].mxu0 %v2631
    %v2764 = vpop.f32.mrb[0].mxu0
    %v2765 = vadd.f32 %v970, %v2764
    %v2766 = vpop.f32.mrb[0].mxu0
    %v2767 = vpop.f32.mrb[0].mxu0
    %v2768 = vadd.f32 %v971, %v2767
    %v2769 = vpop.f32.mrb[0].mxu0
    %2770 = vmatprep.mubr.bf16.mxu0 0
    %2771 = vmatmul.mubr.bf16.gmra.mrb[0].mxu0 %v2634
    %v2772 = vpop.f32.mrb[0].mxu0
    %v2773 = vadd.f32 %v972, %v2772
    %v2774 = vpop.f32.mrb[0].mxu0
    %v2775 = vpop.f32.mrb[0].mxu0
    %v2776 = vadd.f32 %v973, %v2775
    %v2777 = vpop.f32.mrb[0].mxu0
    %2778 = vmatprep.mubr.bf16.mxu0 0
    %2779 = vmatmul.mubr.bf16.gmra.mrb[0].mxu0 %v2637
    %v2780 = vpop.f32.mrb[0].mxu0
    %v2781 = vadd.f32 %v974, %v2780
    %v2782 = vpop.f32.mrb[0].mxu0
    %v2783 = vpop.f32.mrb[0].mxu0
    %v2784 = vadd.f32 %v975, %v2783
    %v2785 = vpop.f32.mrb[0].mxu0
    %2786 = vmatprep.mubr.bf16.mxu0 0
    %2787 = vmatmul.mubr.bf16.gmra.mrb[0].mxu0 %v2640
    %v2788 = vpop.f32.mrb[0].mxu0
    %v2789 = vadd.f32 %v976, %v2788
    %v2790 = vpop.f32.mrb[0].mxu0
    %v2791 = vpop.f32.mrb[0].mxu0
    %v2792 = vadd.f32 %v977, %v2791
    %v2793 = vpop.f32.mrb[0].mxu0
    %2794 = vmatprep.mubr.bf16.mxu0 0
    %2795 = vmatmul.mubr.bf16.gmra.mrb[0].mxu0 %v2643
    %v2796 = vpop.f32.mrb[0].mxu0
    %v2797 = vadd.f32 %v978, %v2796
    %v2798 = vpop.f32.mrb[0].mxu0
    %v2799 = vpop.f32.mrb[0].mxu0
    %v2800 = vadd.f32 %v979, %v2799
    %v2801 = vpop.f32.mrb[0].mxu0
    %2802 = vmatprep.mubr.bf16.mxu0 0
    %2803 = vmatmul.mubr.bf16.gmra.mrb[0].mxu0 %v2646
    %v2804 = vpop.f32.mrb[0].mxu0
    %v2805 = vadd.f32 %v980, %v2804
    %v2806 = vpop.f32.mrb[0].mxu0
    %v2807 = vpop.f32.mrb[0].mxu0
    %v2808 = vadd.f32 %v981, %v2807
    %v2809 = vpop.f32.mrb[0].mxu0
    %2810 = vmatprep.mubr.bf16.mxu0 0
    %2811 = vmatmul.mubr.bf16.gmra.mrb[0].mxu0 %v2649
    %v2812 = vpop.f32.mrb[0].mxu0
    %v2813 = vadd.f32 %v982, %v2812
    %v2814 = vpop.f32.mrb[0].mxu0
    %v2815 = vpop.f32.mrb[0].mxu0
    %v2816 = vadd.f32 %v983, %v2815
    %v2817 = vpop.f32.mrb[0].mxu0
    %2818 = vmatprep.mubr.bf16.mxu0 0
    %2819 = vmatmul.mubr.bf16.gmra.mrb[0].mxu0 %v2652
    %v2820 = vpop.f32.mrb[0].mxu0
    %v2821 = vadd.f32 %v984, %v2820
    %v2822 = vpop.f32.mrb[0].mxu0
    %v2823 = vpop.f32.mrb[0].mxu0
    %v2824 = vadd.f32 %v985, %v2823
    %v2825 = vpop.f32.mrb[0].mxu0
    %2826 = vdwg.mxu0
    %v2827 = vsel %vm1424, %v2701, -inf
    %2828 = vmax.xlane.f32.xlu0 %v2827
    %v2829 = vpop.xlane.xlu0 %2828
    %v2830 = vsel %vm1424, %v2704, -inf
    %2831 = vmax.xlane.f32.xlu0 %v2830
    %v2832 = vpop.xlane.xlu0 %2831
    %v2833 = vsel %vm1424, %v2709, -inf
    %2834 = vmax.xlane.f32.xlu0 %v2833
    %v2835 = vpop.xlane.xlu0 %2834
    %v2836 = vsel %vm1424, %v2712, -inf
    %2837 = vmax.xlane.f32.xlu0 %v2836
    %v2838 = vpop.xlane.xlu0 %2837
    %v2839 = vsel %vm1424, %v2717, -inf
    %2840 = vmax.xlane.f32.xlu0 %v2839
    %v2841 = vpop.xlane.xlu0 %2840
    %v2842 = vsel %vm1424, %v2720, -inf
    %2843 = vmax.xlane.f32.xlu0 %v2842
    %v2844 = vpop.xlane.xlu0 %2843
    %v2845 = vsel %vm1424, %v2725, -inf
    %2846 = vmax.xlane.f32.xlu0 %v2845
    %v2847 = vpop.xlane.xlu0 %2846
    %v2848 = vsel %vm1424, %v2728, -inf
    %2849 = vmax.xlane.f32.xlu0 %v2848
    %v2850 = vpop.xlane.xlu0 %2849
    %v2851 = vsel %vm1424, %v2733, -inf
    %2852 = vmax.xlane.f32.xlu0 %v2851
    %v2853 = vpop.xlane.xlu0 %2852
    %v2854 = vsel %vm1424, %v2736, -inf
    %2855 = vmax.xlane.f32.xlu0 %v2854
    %v2856 = vpop.xlane.xlu0 %2855
    %v2857 = vsel %vm1424, %v2741, -inf
    %2858 = vmax.xlane.f32.xlu0 %v2857
    %v2859 = vpop.xlane.xlu0 %2858
    %v2860 = vsel %vm1424, %v2744, -inf
    %2861 = vmax.xlane.f32.xlu0 %v2860
    %v2862 = vpop.xlane.xlu0 %2861
    %v2863 = vsel %vm1424, %v2749, -inf
    %2864 = vmax.xlane.f32.xlu0 %v2863
    %v2865 = vpop.xlane.xlu0 %2864
    %v2866 = vsel %vm1424, %v2752, -inf
    %2867 = vmax.xlane.f32.xlu0 %v2866
    %v2868 = vpop.xlane.xlu0 %2867
    %v2869 = vsel %vm1424, %v2757, -inf
    %2870 = vmax.xlane.f32.xlu0 %v2869
    %v2871 = vpop.xlane.xlu0 %2870
    %v2872 = vsel %vm1424, %v2760, -inf
    %2873 = vmax.xlane.f32.xlu0 %v2872
    %v2874 = vpop.xlane.xlu0 %2873
    %v2875 = vsel %vm1424, %v2765, -inf
    %2876 = vmax.xlane.f32.xlu0 %v2875
    %v2877 = vpop.xlane.xlu0 %2876
    %v2878 = vsel %vm1424, %v2768, -inf
    %2879 = vmax.xlane.f32.xlu0 %v2878
    %v2880 = vpop.xlane.xlu0 %2879
    %v2881 = vsel %vm1424, %v2773, -inf
    %2882 = vmax.xlane.f32.xlu0 %v2881
    %v2883 = vpop.xlane.xlu0 %2882
    %v2884 = vsel %vm1424, %v2776, -inf
    %2885 = vmax.xlane.f32.xlu0 %v2884
    %v2886 = vpop.xlane.xlu0 %2885
    %v2887 = vsel %vm1424, %v2781, -inf
    %2888 = vmax.xlane.f32.xlu0 %v2887
    %v2889 = vpop.xlane.xlu0 %2888
    %v2890 = vsel %vm1424, %v2784, -inf
    %2891 = vmax.xlane.f32.xlu0 %v2890
    %v2892 = vpop.xlane.xlu0 %2891
    %v2893 = vsel %vm1424, %v2789, -inf
    %2894 = vmax.xlane.f32.xlu0 %v2893
    %v2895 = vpop.xlane.xlu0 %2894
    %v2896 = vsel %vm1424, %v2792, -inf
    %2897 = vmax.xlane.f32.xlu0 %v2896
    %v2898 = vpop.xlane.xlu0 %2897
    %v2899 = vsel %vm1424, %v2797, -inf
    %2900 = vmax.xlane.f32.xlu0 %v2899
    %v2901 = vpop.xlane.xlu0 %2900
    %v2902 = vsel %vm1424, %v2800, -inf
    %2903 = vmax.xlane.f32.xlu0 %v2902
    %v2904 = vpop.xlane.xlu0 %2903
    %v2905 = vsel %vm1424, %v2805, -inf
    %2906 = vmax.xlane.f32.xlu0 %v2905
    %v2907 = vpop.xlane.xlu0 %2906
    %v2908 = vsel %vm1424, %v2808, -inf
    %2909 = vmax.xlane.f32.xlu0 %v2908
    %v2910 = vpop.xlane.xlu0 %2909
    %v2911 = vsel %vm1424, %v2813, -inf
    %2912 = vmax.xlane.f32.xlu0 %v2911
    %v2913 = vpop.xlane.xlu0 %2912
    %v2914 = vsel %vm1424, %v2816, -inf
    %2915 = vmax.xlane.f32.xlu0 %v2914
    %v2916 = vpop.xlane.xlu0 %2915
    %v2917 = vsel %vm1424, %v2821, -inf
    %2918 = vmax.xlane.f32.xlu0 %v2917
    %v2919 = vpop.xlane.xlu0 %2918
    %v2920 = vsel %vm1424, %v2824, -inf
    %2921 = vmax.xlane.f32.xlu0 %v2920
    %v2922 = vpop.xlane.xlu0 %2921
    %v2923 = vsub.f32 %v2701, %v2829
    %v2924 = vsub.f32 %v2704, %v2832
    %v2925 = vsub.f32 %v2709, %v2835
    %v2926 = vsub.f32 %v2712, %v2838
    %v2927 = vsub.f32 %v2717, %v2841
    %v2928 = vsub.f32 %v2720, %v2844
    %v2929 = vsub.f32 %v2725, %v2847
    %v2930 = vsub.f32 %v2728, %v2850
    %v2931 = vsub.f32 %v2733, %v2853
    %v2932 = vsub.f32 %v2736, %v2856
    %v2933 = vsub.f32 %v2741, %v2859
    %v2934 = vsub.f32 %v2744, %v2862
    %v2935 = vsub.f32 %v2749, %v2865
    %v2936 = vsub.f32 %v2752, %v2868
    %v2937 = vsub.f32 %v2757, %v2871
    %v2938 = vsub.f32 %v2760, %v2874
    %v2939 = vsub.f32 %v2765, %v2877
    %v2940 = vsub.f32 %v2768, %v2880
    %v2941 = vsub.f32 %v2773, %v2883
    %v2942 = vsub.f32 %v2776, %v2886
    %v2943 = vsub.f32 %v2781, %v2889
    %v2944 = vsub.f32 %v2784, %v2892
    %v2945 = vsub.f32 %v2789, %v2895
    %v2946 = vsub.f32 %v2792, %v2898
    %v2947 = vsub.f32 %v2797, %v2901
    %v2948 = vsub.f32 %v2800, %v2904
    %v2949 = vsub.f32 %v2805, %v2907
    %v2950 = vsub.f32 %v2808, %v2910
    %v2951 = vsub.f32 %v2813, %v2913
    %v2952 = vsub.f32 %v2816, %v2916
    %v2953 = vsub.f32 %v2821, %v2919
    %v2954 = vsub.f32 %v2824, %v2922
    %v2955 = vmul.f32 %v2923, 1.442695
    %v2956 = vpow.pop %v2955
    %v2957 = vmul.f32 %v2924, 1.442695
    %v2958 = vpow.pop %v2957
    %v2959 = vmul.f32 %v2925, 1.442695
    %v2960 = vpow.pop %v2959
    %v2961 = vmul.f32 %v2926, 1.442695
    %v2962 = vpow.pop %v2961
    %v2963 = vmul.f32 %v2927, 1.442695
    %v2964 = vpow.pop %v2963
    %v2965 = vmul.f32 %v2928, 1.442695
    %v2966 = vpow.pop %v2965
    %v2967 = vmul.f32 %v2929, 1.442695
    %v2968 = vpow.pop %v2967
    %v2969 = vmul.f32 %v2930, 1.442695
    %v2970 = vpow.pop %v2969
    %v2971 = vmul.f32 %v2931, 1.442695
    %v2972 = vpow.pop %v2971
    %v2973 = vmul.f32 %v2932, 1.442695
    %v2974 = vpow.pop %v2973
    %v2975 = vmul.f32 %v2933, 1.442695
    %v2976 = vpow.pop %v2975
    %v2977 = vmul.f32 %v2934, 1.442695
    %v2978 = vpow.pop %v2977
    %v2979 = vmul.f32 %v2935, 1.442695
    %v2980 = vpow.pop %v2979
    %v2981 = vmul.f32 %v2936, 1.442695
    %v2982 = vpow.pop %v2981
    %v2983 = vmul.f32 %v2937, 1.442695
    %v2984 = vpow.pop %v2983
    %v2985 = vmul.f32 %v2938, 1.442695
    %v2986 = vpow.pop %v2985
    %v2987 = vmul.f32 %v2939, 1.442695
    %v2988 = vpow.pop %v2987
    %v2989 = vmul.f32 %v2940, 1.442695
    %v2990 = vpow.pop %v2989
    %v2991 = vmul.f32 %v2941, 1.442695
    %v2992 = vpow.pop %v2991
    %v2993 = vmul.f32 %v2942, 1.442695
    %v2994 = vpow.pop %v2993
    %v2995 = vmul.f32 %v2943, 1.442695
    %v2996 = vpow.pop %v2995
    %v2997 = vmul.f32 %v2944, 1.442695
    %v2998 = vpow.pop %v2997
    %v2999 = vmul.f32 %v2945, 1.442695
    %v3000 = vpow.pop %v2999
    %v3001 = vmul.f32 %v2946, 1.442695
    %v3002 = vpow.pop %v3001
    %v3003 = vmul.f32 %v2947, 1.442695
    %v3004 = vpow.pop %v3003
    %v3005 = vmul.f32 %v2948, 1.442695
    %v3006 = vpow.pop %v3005
    %v3007 = vmul.f32 %v2949, 1.442695
    %v3008 = vpow.pop %v3007
    %v3009 = vmul.f32 %v2950, 1.442695
    %v3010 = vpow.pop %v3009
    %v3011 = vmul.f32 %v2951, 1.442695
    %v3012 = vpow.pop %v3011
    %v3013 = vmul.f32 %v2952, 1.442695
    %v3014 = vpow.pop %v3013
    %v3015 = vmul.f32 %v2953, 1.442695
    %v3016 = vpow.pop %v3015
    %v3017 = vmul.f32 %v2954, 1.442695
    %v3018 = vpow.pop %v3017
    %v3019 = vsel %vm1424, %v2956, 0.0
    %3020 = vadd.xlane.f32.xlu0 %v3019
    %v3021 = vpop.xlane.xlu0 %3020
    %v3022 = vsel %vm1424, %v2958, 0.0
    %3023 = vadd.xlane.f32.xlu0 %v3022
    %v3024 = vpop.xlane.xlu0 %3023
    %v3025 = vsel %vm1424, %v2960, 0.0
    %3026 = vadd.xlane.f32.xlu0 %v3025
    %v3027 = vpop.xlane.xlu0 %3026
    %v3028 = vsel %vm1424, %v2962, 0.0
    %3029 = vadd.xlane.f32.xlu0 %v3028
    %v3030 = vpop.xlane.xlu0 %3029
    %v3031 = vsel %vm1424, %v2964, 0.0
    %3032 = vadd.xlane.f32.xlu0 %v3031
    %v3033 = vpop.xlane.xlu0 %3032
    %v3034 = vsel %vm1424, %v2966, 0.0
    %3035 = vadd.xlane.f32.xlu0 %v3034
    %v3036 = vpop.xlane.xlu0 %3035
    %v3037 = vsel %vm1424, %v2968, 0.0
    %3038 = vadd.xlane.f32.xlu0 %v3037
    %v3039 = vpop.xlane.xlu0 %3038
    %v3040 = vsel %vm1424, %v2970, 0.0
    %3041 = vadd.xlane.f32.xlu0 %v3040
    %v3042 = vpop.xlane.xlu0 %3041
    %v3043 = vsel %vm1424, %v2972, 0.0
    %3044 = vadd.xlane.f32.xlu0 %v3043
    %v3045 = vpop.xlane.xlu0 %3044
    %v3046 = vsel %vm1424, %v2974, 0.0
    %3047 = vadd.xlane.f32.xlu0 %v3046
    %v3048 = vpop.xlane.xlu0 %3047
    %v3049 = vsel %vm1424, %v2976, 0.0
    %3050 = vadd.xlane.f32.xlu0 %v3049
    %v3051 = vpop.xlane.xlu0 %3050
    %v3052 = vsel %vm1424, %v2978, 0.0
    %3053 = vadd.xlane.f32.xlu0 %v3052
    %v3054 = vpop.xlane.xlu0 %3053
    %v3055 = vsel %vm1424, %v2980, 0.0
    %3056 = vadd.xlane.f32.xlu0 %v3055
    %v3057 = vpop.xlane.xlu0 %3056
    %v3058 = vsel %vm1424, %v2982, 0.0
    %3059 = vadd.xlane.f32.xlu0 %v3058
    %v3060 = vpop.xlane.xlu0 %3059
    %v3061 = vsel %vm1424, %v2984, 0.0
    %3062 = vadd.xlane.f32.xlu0 %v3061
    %v3063 = vpop.xlane.xlu0 %3062
    %v3064 = vsel %vm1424, %v2986, 0.0
    %3065 = vadd.xlane.f32.xlu0 %v3064
    %v3066 = vpop.xlane.xlu0 %3065
    %v3067 = vsel %vm1424, %v2988, 0.0
    %3068 = vadd.xlane.f32.xlu0 %v3067
    %v3069 = vpop.xlane.xlu0 %3068
    %v3070 = vsel %vm1424, %v2990, 0.0
    %3071 = vadd.xlane.f32.xlu0 %v3070
    %v3072 = vpop.xlane.xlu0 %3071
    %v3073 = vsel %vm1424, %v2992, 0.0
    %3074 = vadd.xlane.f32.xlu0 %v3073
    %v3075 = vpop.xlane.xlu0 %3074
    %v3076 = vsel %vm1424, %v2994, 0.0
    %3077 = vadd.xlane.f32.xlu0 %v3076
    %v3078 = vpop.xlane.xlu0 %3077
    %v3079 = vsel %vm1424, %v2996, 0.0
    %3080 = vadd.xlane.f32.xlu0 %v3079
    %v3081 = vpop.xlane.xlu0 %3080
    %v3082 = vsel %vm1424, %v2998, 0.0
    %3083 = vadd.xlane.f32.xlu0 %v3082
    %v3084 = vpop.xlane.xlu0 %3083
    %v3085 = vsel %vm1424, %v3000, 0.0
    %3086 = vadd.xlane.f32.xlu0 %v3085
    %v3087 = vpop.xlane.xlu0 %3086
    %v3088 = vsel %vm1424, %v3002, 0.0
    %3089 = vadd.xlane.f32.xlu0 %v3088
    %v3090 = vpop.xlane.xlu0 %3089
    %v3091 = vsel %vm1424, %v3004, 0.0
    %3092 = vadd.xlane.f32.xlu0 %v3091
    %v3093 = vpop.xlane.xlu0 %3092
    %v3094 = vsel %vm1424, %v3006, 0.0
    %3095 = vadd.xlane.f32.xlu0 %v3094
    %v3096 = vpop.xlane.xlu0 %3095
    %v3097 = vsel %vm1424, %v3008, 0.0
    %3098 = vadd.xlane.f32.xlu0 %v3097
    %v3099 = vpop.xlane.xlu0 %3098
    %v3100 = vsel %vm1424, %v3010, 0.0
    %3101 = vadd.xlane.f32.xlu0 %v3100
    %v3102 = vpop.xlane.xlu0 %3101
    %v3103 = vsel %vm1424, %v3012, 0.0
    %3104 = vadd.xlane.f32.xlu0 %v3103
    %v3105 = vpop.xlane.xlu0 %3104
    %v3106 = vsel %vm1424, %v3014, 0.0
    %3107 = vadd.xlane.f32.xlu0 %v3106
    %v3108 = vpop.xlane.xlu0 %3107
    %v3109 = vsel %vm1424, %v3016, 0.0
    %3110 = vadd.xlane.f32.xlu0 %v3109
    %v3111 = vpop.xlane.xlu0 %3110
    %v3112 = vsel %vm1424, %v3018, 0.0
    %3113 = vadd.xlane.f32.xlu0 %v3112
    %v3114 = vpop.xlane.xlu0 %3113
    %v3115 = vrcp.pop %v3021
    %v3116 = vrcp.pop %v3024
    %v3117 = vrcp.pop %v3027
    %v3118 = vrcp.pop %v3030
    %v3119 = vrcp.pop %v3033
    %v3120 = vrcp.pop %v3036
    %v3121 = vrcp.pop %v3039
    %v3122 = vrcp.pop %v3042
    %v3123 = vrcp.pop %v3045
    %v3124 = vrcp.pop %v3048
    %v3125 = vrcp.pop %v3051
    %v3126 = vrcp.pop %v3054
    %v3127 = vrcp.pop %v3057
    %v3128 = vrcp.pop %v3060
    %v3129 = vrcp.pop %v3063
    %v3130 = vrcp.pop %v3066
    %v3131 = vrcp.pop %v3069
    %v3132 = vrcp.pop %v3072
    %v3133 = vrcp.pop %v3075
    %v3134 = vrcp.pop %v3078
    %v3135 = vrcp.pop %v3081
    %v3136 = vrcp.pop %v3084
    %v3137 = vrcp.pop %v3087
    %v3138 = vrcp.pop %v3090
    %v3139 = vrcp.pop %v3093
    %v3140 = vrcp.pop %v3096
    %v3141 = vrcp.pop %v3099
    %v3142 = vrcp.pop %v3102
    %v3143 = vrcp.pop %v3105
    %v3144 = vrcp.pop %v3108
    %v3145 = vrcp.pop %v3111
    %v3146 = vrcp.pop %v3114
    %v3147 = vmul.f32 %v2956, %v3115
    %v3148 = vmul.f32 %v2958, %v3116
    %v3149 = vmul.f32 %v2960, %v3117
    %v3150 = vmul.f32 %v2962, %v3118
    %v3151 = vmul.f32 %v2964, %v3119
    %v3152 = vmul.f32 %v2966, %v3120
    %v3153 = vmul.f32 %v2968, %v3121
    %v3154 = vmul.f32 %v2970, %v3122
    %v3155 = vmul.f32 %v2972, %v3123
    %v3156 = vmul.f32 %v2974, %v3124
    %v3157 = vmul.f32 %v2976, %v3125
    %v3158 = vmul.f32 %v2978, %v3126
    %v3159 = vmul.f32 %v2980, %v3127
    %v3160 = vmul.f32 %v2982, %v3128
    %v3161 = vmul.f32 %v2984, %v3129
    %v3162 = vmul.f32 %v2986, %v3130
    %v3163 = vmul.f32 %v2988, %v3131
    %v3164 = vmul.f32 %v2990, %v3132
    %v3165 = vmul.f32 %v2992, %v3133
    %v3166 = vmul.f32 %v2994, %v3134
    %v3167 = vmul.f32 %v2996, %v3135
    %v3168 = vmul.f32 %v2998, %v3136
    %v3169 = vmul.f32 %v3000, %v3137
    %v3170 = vmul.f32 %v3002, %v3138
    %v3171 = vmul.f32 %v3004, %v3139
    %v3172 = vmul.f32 %v3006, %v3140
    %v3173 = vmul.f32 %v3008, %v3141
    %v3174 = vmul.f32 %v3010, %v3142
    %v3175 = vmul.f32 %v3012, %v3143
    %v3176 = vmul.f32 %v3014, %v3144
    %v3177 = vmul.f32 %v3016, %v3145
    %v3178 = vmul.f32 %v3018, %v3146
    %v3179 = vpack.c.bf16 %v3148, %v3147
    %v3180 = vpack.c.bf16 %v3150, %v3149
    %v3181 = vpack.c.bf16 %v3152, %v3151
    %v3182 = vpack.c.bf16 %v3154, %v3153
    %v3183 = vpack.c.bf16 %v3156, %v3155
    %v3184 = vpack.c.bf16 %v3158, %v3157
    %v3185 = vpack.c.bf16 %v3160, %v3159
    %v3186 = vpack.c.bf16 %v3162, %v3161
    %v3187 = vpack.c.bf16 %v3164, %v3163
    %v3188 = vpack.c.bf16 %v3166, %v3165
    %v3189 = vpack.c.bf16 %v3168, %v3167
    %v3190 = vpack.c.bf16 %v3170, %v3169
    %v3191 = vpack.c.bf16 %v3172, %v3171
    %v3192 = vpack.c.bf16 %v3174, %v3173
    %v3193 = vpack.c.bf16 %v3176, %v3175
    %v3194 = vpack.c.bf16 %v3178, %v3177
    %3199 = vrot.lane.b32.xlu0 %v2422, 64
    %v3200 = vpop.permute.xlu0 %3199
    %3201 = vrot.lane.b32.xlu0 %v2423, 64
    %v3202 = vpop.permute.xlu0 %3201
    %3203 = vrot.lane.b32.xlu0 %v2424, 64
    %v3204 = vpop.permute.xlu0 %3203
    %3205 = vrot.lane.b32.xlu0 %v2425, 64
    %v3206 = vpop.permute.xlu0 %3205
    %v3212 = vsel %vm1424, %v3179, 0
    %v3215 = vsel %vm1424, %v3180, 0
    %v3218 = vsel %vm1424, %v3181, 0
    %v3221 = vsel %vm1424, %v3182, 0
    %v3224 = vsel %vm1424, %v3183, 0
    %v3227 = vsel %vm1424, %v3184, 0
    %v3230 = vsel %vm1424, %v3185, 0
    %v3233 = vsel %vm1424, %v3186, 0
    %v3236 = vsel %vm1424, %v3187, 0
    %v3239 = vsel %vm1424, %v3188, 0
    %v3242 = vsel %vm1424, %v3189, 0
    %v3245 = vsel %vm1424, %v3190, 0
    %v3248 = vsel %vm1424, %v3191, 0
    %v3251 = vsel %vm1424, %v3192, 0
    %v3254 = vsel %vm1424, %v3193, 0
    %v3257 = vsel %vm1424, %v3194, 0
    %3259 = vmatprep.subr.bf16.mxu0 0
    %3260 = vmatpush1.bf16.msra.mxu0 %v3200
    %3261 = vmatprep.subr.bf16.mxu0 0
    %3262 = vmatpush1.bf16.msra.mxu0 %v3202
    %3263 = vmatprep.subr.bf16.mxu0 0
    %3264 = vmatpush1.bf16.msra.mxu0 %v3204
    %3265 = vmatprep.subr.bf16.mxu0 0
    %3266 = vmatpush1.bf16.msra.mxu0 %v3206
    %3267 = vmatprep.subr.bf16.mxu0 0
    %3268 = vmatpush1.bf16.msra.mxu0 0
    %3269 = vmatprep.subr.bf16.mxu0 0
    %3270 = vmatpush1.bf16.msra.mxu0 0
    %3271 = vmatprep.subr.bf16.mxu0 0
    %3272 = vmatpush1.bf16.msra.mxu0 0
    %3273 = vmatprep.subr.bf16.mxu0 0
    %3274 = vmatpush1.bf16.msra.mxu0 0
    %3275 = vmatprep.subr.bf16.mxu0 0
    %3276 = vmatpush1.bf16.msra.mxu0 0
    %3277 = vmatprep.subr.bf16.mxu0 0
    %3278 = vmatpush1.bf16.msra.mxu0 0
    %3279 = vmatprep.subr.bf16.mxu0 0
    %3280 = vmatpush1.bf16.msra.mxu0 0
    %3281 = vmatprep.subr.bf16.mxu0 0
    %3282 = vmatpush1.bf16.msra.mxu0 0
    %3283 = vmatprep.subr.bf16.mxu0 0
    %3284 = vmatpush1.bf16.msra.mxu0 0
    %3285 = vmatprep.subr.bf16.mxu0 0
    %3286 = vmatpush1.bf16.msra.mxu0 0
    %3287 = vmatprep.subr.bf16.mxu0 0
    %3288 = vmatpush1.bf16.msra.mxu0 0
    %3289 = vmatprep.subr.bf16.mxu0 0
    %3290 = vmatpush1.bf16.msra.mxu0 0
    %3291 = vmatprep.mubr.bf16.mxu0 0
    %3292 = vmatmul.mubr.bf16.gmra.mrb[0].mxu0 %v3212
    %v3293 = vpop.f32.mrb[0].mxu0
    %v3294 = vadd.f32 0.0, %v3293
    %v3295 = vpop.f32.mrb[0].mxu0
    %v3296 = vpop.f32.mrb[0].mxu0
    %v3297 = vadd.f32 0.0, %v3296
    %v3298 = vpop.f32.mrb[0].mxu0
    %3299 = vmatprep.mubr.bf16.mxu0 0
    %3300 = vmatmul.mubr.bf16.gmra.mrb[0].mxu0 %v3215
    %v3301 = vpop.f32.mrb[0].mxu0
    %v3302 = vadd.f32 0.0, %v3301
    %v3303 = vpop.f32.mrb[0].mxu0
    %v3304 = vpop.f32.mrb[0].mxu0
    %v3305 = vadd.f32 0.0, %v3304
    %v3306 = vpop.f32.mrb[0].mxu0
    %3307 = vmatprep.mubr.bf16.mxu0 0
    %3308 = vmatmul.mubr.bf16.gmra.mrb[0].mxu0 %v3218
    %v3309 = vpop.f32.mrb[0].mxu0
    %v3310 = vadd.f32 0.0, %v3309
    %v3311 = vpop.f32.mrb[0].mxu0
    %v3312 = vpop.f32.mrb[0].mxu0
    %v3313 = vadd.f32 0.0, %v3312
    %v3314 = vpop.f32.mrb[0].mxu0
    %3315 = vmatprep.mubr.bf16.mxu0 0
    %3316 = vmatmul.mubr.bf16.gmra.mrb[0].mxu0 %v3221
    %v3317 = vpop.f32.mrb[0].mxu0
    %v3318 = vadd.f32 0.0, %v3317
    %v3319 = vpop.f32.mrb[0].mxu0
    %v3320 = vpop.f32.mrb[0].mxu0
    %v3321 = vadd.f32 0.0, %v3320
    %v3322 = vpop.f32.mrb[0].mxu0
    %3323 = vmatprep.mubr.bf16.mxu0 0
    %3324 = vmatmul.mubr.bf16.gmra.mrb[0].mxu0 %v3224
    %v3325 = vpop.f32.mrb[0].mxu0
    %v3326 = vadd.f32 0.0, %v3325
    %v3327 = vpop.f32.mrb[0].mxu0
    %v3328 = vpop.f32.mrb[0].mxu0
    %v3329 = vadd.f32 0.0, %v3328
    %v3330 = vpop.f32.mrb[0].mxu0
    %3331 = vmatprep.mubr.bf16.mxu0 0
    %3332 = vmatmul.mubr.bf16.gmra.mrb[0].mxu0 %v3227
    %v3333 = vpop.f32.mrb[0].mxu0
    %v3334 = vadd.f32 0.0, %v3333
    %v3335 = vpop.f32.mrb[0].mxu0
    %v3336 = vpop.f32.mrb[0].mxu0
    %v3337 = vadd.f32 0.0, %v3336
    %v3338 = vpop.f32.mrb[0].mxu0
    %3339 = vmatprep.mubr.bf16.mxu0 0
    %3340 = vmatmul.mubr.bf16.gmra.mrb[0].mxu0 %v3230
    %v3341 = vpop.f32.mrb[0].mxu0
    %v3342 = vadd.f32 0.0, %v3341
    %v3343 = vpop.f32.mrb[0].mxu0
    %v3344 = vpop.f32.mrb[0].mxu0
    %v3345 = vadd.f32 0.0, %v3344
    %v3346 = vpop.f32.mrb[0].mxu0
    %3347 = vmatprep.mubr.bf16.mxu0 0
    %3348 = vmatmul.mubr.bf16.gmra.mrb[0].mxu0 %v3233
    %v3349 = vpop.f32.mrb[0].mxu0
    %v3350 = vadd.f32 0.0, %v3349
    %v3351 = vpop.f32.mrb[0].mxu0
    %v3352 = vpop.f32.mrb[0].mxu0
    %v3353 = vadd.f32 0.0, %v3352
    %v3354 = vpop.f32.mrb[0].mxu0
    %3355 = vmatprep.mubr.bf16.mxu0 0
    %3356 = vmatmul.mubr.bf16.gmra.mrb[0].mxu0 %v3236
    %v3357 = vpop.f32.mrb[0].mxu0
    %v3358 = vadd.f32 0.0, %v3357
    %v3359 = vpop.f32.mrb[0].mxu0
    %v3360 = vpop.f32.mrb[0].mxu0
    %v3361 = vadd.f32 0.0, %v3360
    %v3362 = vpop.f32.mrb[0].mxu0
    %3363 = vmatprep.mubr.bf16.mxu0 0
    %3364 = vmatmul.mubr.bf16.gmra.mrb[0].mxu0 %v3239
    %v3365 = vpop.f32.mrb[0].mxu0
    %v3366 = vadd.f32 0.0, %v3365
    %v3367 = vpop.f32.mrb[0].mxu0
    %v3368 = vpop.f32.mrb[0].mxu0
    %v3369 = vadd.f32 0.0, %v3368
    %v3370 = vpop.f32.mrb[0].mxu0
    %3371 = vmatprep.mubr.bf16.mxu0 0
    %3372 = vmatmul.mubr.bf16.gmra.mrb[0].mxu0 %v3242
    %v3373 = vpop.f32.mrb[0].mxu0
    %v3374 = vadd.f32 0.0, %v3373
    %v3375 = vpop.f32.mrb[0].mxu0
    %v3376 = vpop.f32.mrb[0].mxu0
    %v3377 = vadd.f32 0.0, %v3376
    %v3378 = vpop.f32.mrb[0].mxu0
    %3379 = vmatprep.mubr.bf16.mxu0 0
    %3380 = vmatmul.mubr.bf16.gmra.mrb[0].mxu0 %v3245
    %v3381 = vpop.f32.mrb[0].mxu0
    %v3382 = vadd.f32 0.0, %v3381
    %v3383 = vpop.f32.mrb[0].mxu0
    %v3384 = vpop.f32.mrb[0].mxu0
    %v3385 = vadd.f32 0.0, %v3384
    %v3386 = vpop.f32.mrb[0].mxu0
    %3387 = vmatprep.mubr.bf16.mxu0 0
    %3388 = vmatmul.mubr.bf16.gmra.mrb[0].mxu0 %v3248
    %v3389 = vpop.f32.mrb[0].mxu0
    %v3390 = vadd.f32 0.0, %v3389
    %v3391 = vpop.f32.mrb[0].mxu0
    %v3392 = vpop.f32.mrb[0].mxu0
    %v3393 = vadd.f32 0.0, %v3392
    %v3394 = vpop.f32.mrb[0].mxu0
    %3395 = vmatprep.mubr.bf16.mxu0 0
    %3396 = vmatmul.mubr.bf16.gmra.mrb[0].mxu0 %v3251
    %v3397 = vpop.f32.mrb[0].mxu0
    %v3398 = vadd.f32 0.0, %v3397
    %v3399 = vpop.f32.mrb[0].mxu0
    %v3400 = vpop.f32.mrb[0].mxu0
    %v3401 = vadd.f32 0.0, %v3400
    %v3402 = vpop.f32.mrb[0].mxu0
    %3403 = vmatprep.mubr.bf16.mxu0 0
    %3404 = vmatmul.mubr.bf16.gmra.mrb[0].mxu0 %v3254
    %v3405 = vpop.f32.mrb[0].mxu0
    %v3406 = vadd.f32 0.0, %v3405
    %v3407 = vpop.f32.mrb[0].mxu0
    %v3408 = vpop.f32.mrb[0].mxu0
    %v3409 = vadd.f32 0.0, %v3408
    %v3410 = vpop.f32.mrb[0].mxu0
    %3411 = vmatprep.mubr.bf16.mxu0 0
    %3412 = vmatmul.mubr.bf16.gmra.mrb[0].mxu0 %v3257
    %v3413 = vpop.f32.mrb[0].mxu0
    %v3414 = vadd.f32 0.0, %v3413
    %v3415 = vpop.f32.mrb[0].mxu0
    %v3416 = vpop.f32.mrb[0].mxu0
    %v3417 = vadd.f32 0.0, %v3416
    %v3418 = vpop.f32.mrb[0].mxu0
    %3419 = vdwg.mxu0
    %v3420 = vpack.c.bf16 %v3297, %v3294
    %v3421 = vpack.c.bf16 %v3305, %v3302
    %v3422 = vpack.c.bf16 %v3313, %v3310
    %v3423 = vpack.c.bf16 %v3321, %v3318
    %v3424 = vpack.c.bf16 %v3329, %v3326
    %v3425 = vpack.c.bf16 %v3337, %v3334
    %v3426 = vpack.c.bf16 %v3345, %v3342
    %v3427 = vpack.c.bf16 %v3353, %v3350
    %v3429 = vsel %vm1202, %v3424, 0
    %v3432 = vsel %vm1202, %v3425, 0
    %v3435 = vsel %vm1202, %v3426, 0
    %v3438 = vsel %vm1202, %v3427, 0
    %3440 = vmatprep.subr.bf16.mxu0 0
    %3441 = vmatpush1.bf16.msra.mxu0 %v2042
    %3442 = vmatprep.subr.bf16.mxu0 0
    %3443 = vmatpush1.bf16.msra.mxu0 %v2043
    %3444 = vmatprep.subr.bf16.mxu0 0
    %3445 = vmatpush1.bf16.msra.mxu0 0
    %3446 = vmatprep.subr.bf16.mxu0 0
    %3447 = vmatpush1.bf16.msra.mxu0 0
    %3448 = vmatprep.subr.bf16.mxu0 0
    %3449 = vmatpush1.bf16.msra.mxu0 0
    %3450 = vmatprep.subr.bf16.mxu0 0
    %3451 = vmatpush1.bf16.msra.mxu0 0
    %3452 = vmatprep.subr.bf16.mxu0 0
    %3453 = vmatpush1.bf16.msra.mxu0 0
    %3454 = vmatprep.subr.bf16.mxu0 0
    %3455 = vmatpush1.bf16.msra.mxu0 0
    %3456 = vmatprep.subr.bf16.mxu0 0
    %3457 = vmatpush1.bf16.msra.mxu0 0
    %3458 = vmatprep.subr.bf16.mxu0 0
    %3459 = vmatpush1.bf16.msra.mxu0 0
    %3460 = vmatprep.subr.bf16.mxu0 0
    %3461 = vmatpush1.bf16.msra.mxu0 0
    %3462 = vmatprep.subr.bf16.mxu0 0
    %3463 = vmatpush1.bf16.msra.mxu0 0
    %3464 = vmatprep.subr.bf16.mxu0 0
    %3465 = vmatpush1.bf16.msra.mxu0 0
    %3466 = vmatprep.subr.bf16.mxu0 0
    %3467 = vmatpush1.bf16.msra.mxu0 0
    %3468 = vmatprep.subr.bf16.mxu0 0
    %3469 = vmatpush1.bf16.msra.mxu0 0
    %3470 = vmatprep.subr.bf16.mxu0 0
    %3471 = vmatpush1.bf16.msra.mxu0 0
    %3472 = vmatprep.mubr.bf16.mxu0 0
    %3473 = vmatmul.mubr.bf16.gmra.mrb[0].mxu0 %v3429
    %v3474 = vpop.f32.mrb[0].mxu0
    %v3475 = vadd.f32 0.0, %v3474
    %v3476 = vpop.f32.mrb[0].mxu0
    %v3477 = vpop.f32.mrb[0].mxu0
    %v3478 = vadd.f32 0.0, %v3477
    %v3479 = vpop.f32.mrb[0].mxu0
    %3480 = vmatprep.mubr.bf16.mxu0 0
    %3481 = vmatmul.mubr.bf16.gmra.mrb[0].mxu0 %v3432
    %v3482 = vpop.f32.mrb[0].mxu0
    %v3483 = vadd.f32 0.0, %v3482
    %v3484 = vpop.f32.mrb[0].mxu0
    %v3485 = vpop.f32.mrb[0].mxu0
    %v3486 = vadd.f32 0.0, %v3485
    %v3487 = vpop.f32.mrb[0].mxu0
    %3488 = vmatprep.mubr.bf16.mxu0 0
    %3489 = vmatmul.mubr.bf16.gmra.mrb[0].mxu0 %v3435
    %v3490 = vpop.f32.mrb[0].mxu0
    %v3491 = vadd.f32 0.0, %v3490
    %v3492 = vpop.f32.mrb[0].mxu0
    %v3493 = vpop.f32.mrb[0].mxu0
    %v3494 = vadd.f32 0.0, %v3493
    %v3495 = vpop.f32.mrb[0].mxu0
    %3496 = vmatprep.mubr.bf16.mxu0 0
    %3497 = vmatmul.mubr.bf16.gmra.mrb[0].mxu0 %v3438
    %v3498 = vpop.f32.mrb[0].mxu0
    %v3499 = vadd.f32 0.0, %v3498
    %v3500 = vpop.f32.mrb[0].mxu0
    %v3501 = vpop.f32.mrb[0].mxu0
    %v3502 = vadd.f32 0.0, %v3501
    %v3503 = vpop.f32.mrb[0].mxu0
    %3504 = vdwg.mxu0
    %v3506 = vsel %vm1202, %v3420, 0
    %v3509 = vsel %vm1202, %v3421, 0
    %v3512 = vsel %vm1202, %v3422, 0
    %v3515 = vsel %vm1202, %v3423, 0
    %3517 = vmatprep.subr.bf16.mxu0 0
    %3518 = vmatpush1.bf16.msra.mxu0 %v2131
    %3519 = vmatprep.subr.bf16.mxu0 0
    %3520 = vmatpush1.bf16.msra.mxu0 %v2132
    %3521 = vmatprep.subr.bf16.mxu0 0
    %3522 = vmatpush1.bf16.msra.mxu0 0
    %3523 = vmatprep.subr.bf16.mxu0 0
    %3524 = vmatpush1.bf16.msra.mxu0 0
    %3525 = vmatprep.subr.bf16.mxu0 0
    %3526 = vmatpush1.bf16.msra.mxu0 0
    %3527 = vmatprep.subr.bf16.mxu0 0
    %3528 = vmatpush1.bf16.msra.mxu0 0
    %3529 = vmatprep.subr.bf16.mxu0 0
    %3530 = vmatpush1.bf16.msra.mxu0 0
    %3531 = vmatprep.subr.bf16.mxu0 0
    %3532 = vmatpush1.bf16.msra.mxu0 0
    %3533 = vmatprep.subr.bf16.mxu0 0
    %3534 = vmatpush1.bf16.msra.mxu0 0
    %3535 = vmatprep.subr.bf16.mxu0 0
    %3536 = vmatpush1.bf16.msra.mxu0 0
    %3537 = vmatprep.subr.bf16.mxu0 0
    %3538 = vmatpush1.bf16.msra.mxu0 0
    %3539 = vmatprep.subr.bf16.mxu0 0
    %3540 = vmatpush1.bf16.msra.mxu0 0
    %3541 = vmatprep.subr.bf16.mxu0 0
    %3542 = vmatpush1.bf16.msra.mxu0 0
    %3543 = vmatprep.subr.bf16.mxu0 0
    %3544 = vmatpush1.bf16.msra.mxu0 0
    %3545 = vmatprep.subr.bf16.mxu0 0
    %3546 = vmatpush1.bf16.msra.mxu0 0
    %3547 = vmatprep.subr.bf16.mxu0 0
    %3548 = vmatpush1.bf16.msra.mxu0 0
    %3549 = vmatprep.mubr.bf16.mxu0 0
    %3550 = vmatmul.mubr.bf16.gmra.mrb[0].mxu0 %v3506
    %v3551 = vpop.f32.mrb[0].mxu0
    %v3552 = vadd.f32 %v3475, %v3551
    %v3553 = vpop.f32.mrb[0].mxu0
    %v3554 = vpop.f32.mrb[0].mxu0
    %v3555 = vadd.f32 %v3478, %v3554
    %v3556 = vpop.f32.mrb[0].mxu0
    %3557 = vmatprep.mubr.bf16.mxu0 0
    %3558 = vmatmul.mubr.bf16.gmra.mrb[0].mxu0 %v3509
    %v3559 = vpop.f32.mrb[0].mxu0
    %v3560 = vadd.f32 %v3483, %v3559
    %v3561 = vpop.f32.mrb[0].mxu0
    %v3562 = vpop.f32.mrb[0].mxu0
    %v3563 = vadd.f32 %v3486, %v3562
    %v3564 = vpop.f32.mrb[0].mxu0
    %3565 = vmatprep.mubr.bf16.mxu0 0
    %3566 = vmatmul.mubr.bf16.gmra.mrb[0].mxu0 %v3512
    %v3567 = vpop.f32.mrb[0].mxu0
    %v3568 = vadd.f32 %v3491, %v3567
    %v3569 = vpop.f32.mrb[0].mxu0
    %v3570 = vpop.f32.mrb[0].mxu0
    %v3571 = vadd.f32 %v3494, %v3570
    %v3572 = vpop.f32.mrb[0].mxu0
    %3573 = vmatprep.mubr.bf16.mxu0 0
    %3574 = vmatmul.mubr.bf16.gmra.mrb[0].mxu0 %v3515
    %v3575 = vpop.f32.mrb[0].mxu0
    %v3576 = vadd.f32 %v3499, %v3575
    %v3577 = vpop.f32.mrb[0].mxu0
    %v3578 = vpop.f32.mrb[0].mxu0
    %v3579 = vadd.f32 %v3502, %v3578
    %v3580 = vpop.f32.mrb[0].mxu0
    %3581 = vdwg.mxu0
    %v3582 = vpack.c.bf16 %v3361, %v3358
    %v3583 = vpack.c.bf16 %v3369, %v3366
    %v3584 = vpack.c.bf16 %v3377, %v3374
    %v3585 = vpack.c.bf16 %v3385, %v3382
    %v3587 = vsel %vm1202, %v3582, 0
    %v3590 = vsel %vm1202, %v3583, 0
    %v3593 = vsel %vm1202, %v3584, 0
    %v3596 = vsel %vm1202, %v3585, 0
    %3598 = vmatprep.subr.bf16.mxu0 0
    %3599 = vmatpush1.bf16.msra.mxu0 %v2228
    %3600 = vmatprep.subr.bf16.mxu0 0
    %3601 = vmatpush1.bf16.msra.mxu0 %v2229
    %3602 = vmatprep.subr.bf16.mxu0 0
    %3603 = vmatpush1.bf16.msra.mxu0 0
    %3604 = vmatprep.subr.bf16.mxu0 0
    %3605 = vmatpush1.bf16.msra.mxu0 0
    %3606 = vmatprep.subr.bf16.mxu0 0
    %3607 = vmatpush1.bf16.msra.mxu0 0
    %3608 = vmatprep.subr.bf16.mxu0 0
    %3609 = vmatpush1.bf16.msra.mxu0 0
    %3610 = vmatprep.subr.bf16.mxu0 0
    %3611 = vmatpush1.bf16.msra.mxu0 0
    %3612 = vmatprep.subr.bf16.mxu0 0
    %3613 = vmatpush1.bf16.msra.mxu0 0
    %3614 = vmatprep.subr.bf16.mxu0 0
    %3615 = vmatpush1.bf16.msra.mxu0 0
    %3616 = vmatprep.subr.bf16.mxu0 0
    %3617 = vmatpush1.bf16.msra.mxu0 0
    %3618 = vmatprep.subr.bf16.mxu0 0
    %3619 = vmatpush1.bf16.msra.mxu0 0
    %3620 = vmatprep.subr.bf16.mxu0 0
    %3621 = vmatpush1.bf16.msra.mxu0 0
    %3622 = vmatprep.subr.bf16.mxu0 0
    %3623 = vmatpush1.bf16.msra.mxu0 0
    %3624 = vmatprep.subr.bf16.mxu0 0
    %3625 = vmatpush1.bf16.msra.mxu0 0
    %3626 = vmatprep.subr.bf16.mxu0 0
    %3627 = vmatpush1.bf16.msra.mxu0 0
    %3628 = vmatprep.subr.bf16.mxu0 0
    %3629 = vmatpush1.bf16.msra.mxu0 0
    %3630 = vmatprep.mubr.bf16.mxu0 0
    %3631 = vmatmul.mubr.bf16.gmra.mrb[0].mxu0 %v3587
    %v3632 = vpop.f32.mrb[0].mxu0
    %v3633 = vadd.f32 0.0, %v3632
    %v3634 = vpop.f32.mrb[0].mxu0
    %v3635 = vpop.f32.mrb[0].mxu0
    %v3636 = vadd.f32 0.0, %v3635
    %v3637 = vpop.f32.mrb[0].mxu0
    %3638 = vmatprep.mubr.bf16.mxu0 0
    %3639 = vmatmul.mubr.bf16.gmra.mrb[0].mxu0 %v3590
    %v3640 = vpop.f32.mrb[0].mxu0
    %v3641 = vadd.f32 0.0, %v3640
    %v3642 = vpop.f32.mrb[0].mxu0
    %v3643 = vpop.f32.mrb[0].mxu0
    %v3644 = vadd.f32 0.0, %v3643
    %v3645 = vpop.f32.mrb[0].mxu0
    %3646 = vmatprep.mubr.bf16.mxu0 0
    %3647 = vmatmul.mubr.bf16.gmra.mrb[0].mxu0 %v3593
    %v3648 = vpop.f32.mrb[0].mxu0
    %v3649 = vadd.f32 0.0, %v3648
    %v3650 = vpop.f32.mrb[0].mxu0
    %v3651 = vpop.f32.mrb[0].mxu0
    %v3652 = vadd.f32 0.0, %v3651
    %v3653 = vpop.f32.mrb[0].mxu0
    %3654 = vmatprep.mubr.bf16.mxu0 0
    %3655 = vmatmul.mubr.bf16.gmra.mrb[0].mxu0 %v3596
    %v3656 = vpop.f32.mrb[0].mxu0
    %v3657 = vadd.f32 0.0, %v3656
    %v3658 = vpop.f32.mrb[0].mxu0
    %v3659 = vpop.f32.mrb[0].mxu0
    %v3660 = vadd.f32 0.0, %v3659
    %v3661 = vpop.f32.mrb[0].mxu0
    %3662 = vdwg.mxu0
    %v3663 = vadd.f32 %v3552, %v3633
    %v3664 = vadd.f32 %v3555, %v3636
    %v3665 = vadd.f32 %v3560, %v3641
    %v3666 = vadd.f32 %v3563, %v3644
    %v3667 = vadd.f32 %v3568, %v3649
    %v3668 = vadd.f32 %v3571, %v3652
    %v3669 = vadd.f32 %v3576, %v3657
    %v3670 = vadd.f32 %v3579, %v3660
    %v3671 = vpack.c.bf16 %v3393, %v3390
    %v3672 = vpack.c.bf16 %v3401, %v3398
    %v3673 = vpack.c.bf16 %v3409, %v3406
    %v3674 = vpack.c.bf16 %v3417, %v3414
    %v3676 = vsel %vm1202, %v3671, 0
    %v3679 = vsel %vm1202, %v3672, 0
    %v3682 = vsel %vm1202, %v3673, 0
    %v3685 = vsel %vm1202, %v3674, 0
    %3687 = vmatprep.subr.bf16.mxu0 0
    %3688 = vmatpush1.bf16.msra.mxu0 %v2333
    %3689 = vmatprep.subr.bf16.mxu0 0
    %3690 = vmatpush1.bf16.msra.mxu0 %v2334
    %3691 = vmatprep.subr.bf16.mxu0 0
    %3692 = vmatpush1.bf16.msra.mxu0 0
    %3693 = vmatprep.subr.bf16.mxu0 0
    %3694 = vmatpush1.bf16.msra.mxu0 0
    %3695 = vmatprep.subr.bf16.mxu0 0
    %3696 = vmatpush1.bf16.msra.mxu0 0
    %3697 = vmatprep.subr.bf16.mxu0 0
    %3698 = vmatpush1.bf16.msra.mxu0 0
    %3699 = vmatprep.subr.bf16.mxu0 0
    %3700 = vmatpush1.bf16.msra.mxu0 0
    %3701 = vmatprep.subr.bf16.mxu0 0
    %3702 = vmatpush1.bf16.msra.mxu0 0
    %3703 = vmatprep.subr.bf16.mxu0 0
    %3704 = vmatpush1.bf16.msra.mxu0 0
    %3705 = vmatprep.subr.bf16.mxu0 0
    %3706 = vmatpush1.bf16.msra.mxu0 0
    %3707 = vmatprep.subr.bf16.mxu0 0
    %3708 = vmatpush1.bf16.msra.mxu0 0
    %3709 = vmatprep.subr.bf16.mxu0 0
    %3710 = vmatpush1.bf16.msra.mxu0 0
    %3711 = vmatprep.subr.bf16.mxu0 0
    %3712 = vmatpush1.bf16.msra.mxu0 0
    %3713 = vmatprep.subr.bf16.mxu0 0
    %3714 = vmatpush1.bf16.msra.mxu0 0
    %3715 = vmatprep.subr.bf16.mxu0 0
    %3716 = vmatpush1.bf16.msra.mxu0 0
    %3717 = vmatprep.subr.bf16.mxu0 0
    %3718 = vmatpush1.bf16.msra.mxu0 0
    %3719 = vmatprep.mubr.bf16.mxu0 0
    %3720 = vmatmul.mubr.bf16.gmra.mrb[0].mxu0 %v3676
    %v3721 = vpop.f32.mrb[0].mxu0
    %v3722 = vadd.f32 0.0, %v3721
    %v3723 = vpop.f32.mrb[0].mxu0
    %v3724 = vpop.f32.mrb[0].mxu0
    %v3725 = vadd.f32 0.0, %v3724
    %v3726 = vpop.f32.mrb[0].mxu0
    %3727 = vmatprep.mubr.bf16.mxu0 0
    %3728 = vmatmul.mubr.bf16.gmra.mrb[0].mxu0 %v3679
    %v3729 = vpop.f32.mrb[0].mxu0
    %v3730 = vadd.f32 0.0, %v3729
    %v3731 = vpop.f32.mrb[0].mxu0
    %v3732 = vpop.f32.mrb[0].mxu0
    %v3733 = vadd.f32 0.0, %v3732
    %v3734 = vpop.f32.mrb[0].mxu0
    %3735 = vmatprep.mubr.bf16.mxu0 0
    %3736 = vmatmul.mubr.bf16.gmra.mrb[0].mxu0 %v3682
    %v3737 = vpop.f32.mrb[0].mxu0
    %v3738 = vadd.f32 0.0, %v3737
    %v3739 = vpop.f32.mrb[0].mxu0
    %v3740 = vpop.f32.mrb[0].mxu0
    %v3741 = vadd.f32 0.0, %v3740
    %v3742 = vpop.f32.mrb[0].mxu0
    %3743 = vmatprep.mubr.bf16.mxu0 0
    %3744 = vmatmul.mubr.bf16.gmra.mrb[0].mxu0 %v3685
    %v3745 = vpop.f32.mrb[0].mxu0
    %v3746 = vadd.f32 0.0, %v3745
    %v3747 = vpop.f32.mrb[0].mxu0
    %v3748 = vpop.f32.mrb[0].mxu0
    %v3749 = vadd.f32 0.0, %v3748
    %v3750 = vpop.f32.mrb[0].mxu0
    %3751 = vdwg.mxu0
    %v3752 = vadd.f32 %v3663, %v3722
    %v3753 = vadd.f32 %v3664, %v3725
    %v3754 = vadd.f32 %v3665, %v3730
    %v3755 = vadd.f32 %v3666, %v3733
    %v3756 = vadd.f32 %v3667, %v3738
    %v3757 = vadd.f32 %v3668, %v3741
    %v3758 = vadd.f32 %v3669, %v3746
    %v3759 = vadd.f32 %v3670, %v3749
    %v3760 = vadd.f32 %v75, %v2414
    %v3761 = vadd.f32 %v76, %v2415
    %v3762 = vadd.f32 %v77, %v2416
    %v3763 = vadd.f32 %v78, %v2417
    %v3764 = vadd.f32 %v79, %v2418
    %v3765 = vadd.f32 %v80, %v2419
    %v3766 = vadd.f32 %v81, %v2420
    %v3767 = vadd.f32 %v82, %v2421
    %v3768 = vadd.f32 %v83, %v3752
    %v3769 = vadd.f32 %v84, %v3753
    %v3770 = vadd.f32 %v85, %v3754
    %v3771 = vadd.f32 %v86, %v3755
    %v3772 = vadd.f32 %v87, %v3756
    %v3773 = vadd.f32 %v88, %v3757
    %v3774 = vadd.f32 %v89, %v3758
    %v3775 = vadd.f32 %v90, %v3759
    %v3776 = vmul.f32 %v3760, %v3760
    %v3777 = vmul.f32 %v3761, %v3761
    %v3778 = vmul.f32 %v3762, %v3762
    %v3779 = vmul.f32 %v3763, %v3763
    %v3780 = vmul.f32 %v3764, %v3764
    %v3781 = vmul.f32 %v3765, %v3765
    %v3782 = vmul.f32 %v3766, %v3766
    %v3783 = vmul.f32 %v3767, %v3767
    %v3784 = vmul.f32 %v3768, %v3768
    %v3785 = vmul.f32 %v3769, %v3769
    %v3786 = vmul.f32 %v3770, %v3770
    %v3787 = vmul.f32 %v3771, %v3771
    %v3788 = vmul.f32 %v3772, %v3772
    %v3789 = vmul.f32 %v3773, %v3773
    %v3790 = vmul.f32 %v3774, %v3774
    %v3791 = vmul.f32 %v3775, %v3775
    %3792 = vadd.xlane.f32.xlu0 %v3776
    %v3793 = vpop.xlane.xlu0 %3792
    %3794 = vadd.xlane.f32.xlu0 %v3777
    %v3795 = vpop.xlane.xlu0 %3794
    %3796 = vadd.xlane.f32.xlu0 %v3778
    %v3797 = vpop.xlane.xlu0 %3796
    %3798 = vadd.xlane.f32.xlu0 %v3779
    %v3799 = vpop.xlane.xlu0 %3798
    %3800 = vadd.xlane.f32.xlu0 %v3780
    %v3801 = vpop.xlane.xlu0 %3800
    %3802 = vadd.xlane.f32.xlu0 %v3781
    %v3803 = vpop.xlane.xlu0 %3802
    %3804 = vadd.xlane.f32.xlu0 %v3782
    %v3805 = vpop.xlane.xlu0 %3804
    %3806 = vadd.xlane.f32.xlu0 %v3783
    %v3807 = vpop.xlane.xlu0 %3806
    %3808 = vadd.xlane.f32.xlu0 %v3784
    %v3809 = vpop.xlane.xlu0 %3808
    %3810 = vadd.xlane.f32.xlu0 %v3785
    %v3811 = vpop.xlane.xlu0 %3810
    %3812 = vadd.xlane.f32.xlu0 %v3786
    %v3813 = vpop.xlane.xlu0 %3812
    %3814 = vadd.xlane.f32.xlu0 %v3787
    %v3815 = vpop.xlane.xlu0 %3814
    %3816 = vadd.xlane.f32.xlu0 %v3788
    %v3817 = vpop.xlane.xlu0 %3816
    %3818 = vadd.xlane.f32.xlu0 %v3789
    %v3819 = vpop.xlane.xlu0 %3818
    %3820 = vadd.xlane.f32.xlu0 %v3790
    %v3821 = vpop.xlane.xlu0 %3820
    %3822 = vadd.xlane.f32.xlu0 %v3791
    %v3823 = vpop.xlane.xlu0 %3822
    %v3824 = vrcp.pop 128.0
    %v3825 = vmul.f32 %v3793, %v3824
    %v3826 = vmul.f32 %v3795, %v3824
    %v3827 = vmul.f32 %v3797, %v3824
    %v3828 = vmul.f32 %v3799, %v3824
    %v3829 = vmul.f32 %v3801, %v3824
    %v3830 = vmul.f32 %v3803, %v3824
    %v3831 = vmul.f32 %v3805, %v3824
    %v3832 = vmul.f32 %v3807, %v3824
    %v3833 = vmul.f32 %v3809, %v3824
    %v3834 = vmul.f32 %v3811, %v3824
    %v3835 = vmul.f32 %v3813, %v3824
    %v3836 = vmul.f32 %v3815, %v3824
    %v3837 = vmul.f32 %v3817, %v3824
    %v3838 = vmul.f32 %v3819, %v3824
    %v3839 = vmul.f32 %v3821, %v3824
    %v3840 = vmul.f32 %v3823, %v3824
    %v3841 = vadd.f32 %v3825, 1e-06
    %v3842 = vadd.f32 %v3826, 1e-06
    %v3843 = vadd.f32 %v3827, 1e-06
    %v3844 = vadd.f32 %v3828, 1e-06
    %v3845 = vadd.f32 %v3829, 1e-06
    %v3846 = vadd.f32 %v3830, 1e-06
    %v3847 = vadd.f32 %v3831, 1e-06
    %v3848 = vadd.f32 %v3832, 1e-06
    %v3849 = vadd.f32 %v3833, 1e-06
    %v3850 = vadd.f32 %v3834, 1e-06
    %v3851 = vadd.f32 %v3835, 1e-06
    %v3852 = vadd.f32 %v3836, 1e-06
    %v3853 = vadd.f32 %v3837, 1e-06
    %v3854 = vadd.f32 %v3838, 1e-06
    %v3855 = vadd.f32 %v3839, 1e-06
    %v3856 = vadd.f32 %v3840, 1e-06
    %v3857 = vrsqrt.pop %v3841
    %v3858 = vrsqrt.pop %v3842
    %v3859 = vrsqrt.pop %v3843
    %v3860 = vrsqrt.pop %v3844
    %v3861 = vrsqrt.pop %v3845
    %v3862 = vrsqrt.pop %v3846
    %v3863 = vrsqrt.pop %v3847
    %v3864 = vrsqrt.pop %v3848
    %v3865 = vrsqrt.pop %v3849
    %v3866 = vrsqrt.pop %v3850
    %v3867 = vrsqrt.pop %v3851
    %v3868 = vrsqrt.pop %v3852
    %v3869 = vrsqrt.pop %v3853
    %v3870 = vrsqrt.pop %v3854
    %v3871 = vrsqrt.pop %v3855
    %v3872 = vrsqrt.pop %v3856
    %v3873 = vmul.f32 %v3760, %v3857
    %v3874 = vmul.f32 %v3761, %v3858
    %v3875 = vmul.f32 %v3762, %v3859
    %v3876 = vmul.f32 %v3763, %v3860
    %v3877 = vmul.f32 %v3764, %v3861
    %v3878 = vmul.f32 %v3765, %v3862
    %v3879 = vmul.f32 %v3766, %v3863
    %v3880 = vmul.f32 %v3767, %v3864
    %v3881 = vmul.f32 %v3768, %v3865
    %v3882 = vmul.f32 %v3769, %v3866
    %v3883 = vmul.f32 %v3770, %v3867
    %v3884 = vmul.f32 %v3771, %v3868
    %v3885 = vmul.f32 %v3772, %v3869
    %v3886 = vmul.f32 %v3773, %v3870
    %v3887 = vmul.f32 %v3774, %v3871
    %v3888 = vmul.f32 %v3775, %v3872
    %v3889 = vld [vmem:[%s5] sm:$0x1]
    %v3891 = vlaneseq
    %v3892 = vshrl.u32 %v3891, 7
    %v3893 = vsub.s32 0, %v3892
    %v3894 = vrot.slane %v3889, %v3893
    %v3896 = vmul.f32 %v3873, %v3894
    %v3897 = vmul.f32 %v3874, %v3894
    %v3898 = vmul.f32 %v3875, %v3894
    %v3899 = vmul.f32 %v3876, %v3894
    %v3900 = vmul.f32 %v3877, %v3894
    %v3901 = vmul.f32 %v3878, %v3894
    %v3902 = vmul.f32 %v3879, %v3894
    %v3903 = vmul.f32 %v3880, %v3894
    %v3904 = vmul.f32 %v3881, %v3894
    %v3905 = vmul.f32 %v3882, %v3894
    %v3906 = vmul.f32 %v3883, %v3894
    %v3907 = vmul.f32 %v3884, %v3894
    %v3908 = vmul.f32 %v3885, %v3894
    %v3909 = vmul.f32 %v3886, %v3894
    %v3910 = vmul.f32 %v3887, %v3894
    %v3911 = vmul.f32 %v3888, %v3894
    %v3912 = vpack.c.bf16 %v3897, %v3896
    %v3913 = vpack.c.bf16 %v3899, %v3898
    %v3914 = vpack.c.bf16 %v3901, %v3900
    %v3915 = vpack.c.bf16 %v3903, %v3902
    %v3916 = vpack.c.bf16 %v3905, %v3904
    %v3917 = vpack.c.bf16 %v3907, %v3906
    %v3918 = vpack.c.bf16 %v3909, %v3908
    %v3919 = vpack.c.bf16 %v3911, %v3910
    %v3920 = vld [vmem:[%s3] sm:$0xff]
    %v3921 = vld [vmem:[%s3 + $0x8] sm:$0xff]
    %v3922 = vld [vmem:[%s3 + $0x10] sm:$0xff]
    %v3923 = vld [vmem:[%s3 + $0x18] sm:$0xff]
    %v3924 = vld [vmem:[%s3 + $0x20] sm:$0xff]
    %v3925 = vld [vmem:[%s3 + $0x28] sm:$0xff]
    %v3926 = vld [vmem:[%s3 + $0x30] sm:$0xff]
    %v3927 = vld [vmem:[%s3 + $0x38] sm:$0xff]
    %v3928 = vld [vmem:[%s3 + $0x40] sm:$0xff]
    %v3929 = vld [vmem:[%s3 + $0x48] sm:$0xff]
    %v3930 = vld [vmem:[%s3 + $0x50] sm:$0xff]
    %v3931 = vld [vmem:[%s3 + $0x58] sm:$0xff]
    %v3932 = vld [vmem:[%s3 + $0x60] sm:$0xff]
    %v3933 = vld [vmem:[%s3 + $0x68] sm:$0xff]
    %v3934 = vld [vmem:[%s3 + $0x70] sm:$0xff]
    %v3935 = vld [vmem:[%s3 + $0x78] sm:$0xff]
    %v3936 = vld [vmem:[%s3 + $0x80] sm:$0xff]
    %v3937 = vld [vmem:[%s3 + $0x88] sm:$0xff]
    %v3938 = vld [vmem:[%s3 + $0x90] sm:$0xff]
    %v3939 = vld [vmem:[%s3 + $0x98] sm:$0xff]
    %v3940 = vld [vmem:[%s3 + $0xa0] sm:$0xff]
    %v3941 = vld [vmem:[%s3 + $0xa8] sm:$0xff]
    %v3942 = vld [vmem:[%s3 + $0xb0] sm:$0xff]
    %v3943 = vld [vmem:[%s3 + $0xb8] sm:$0xff]
    %v3944 = vld [vmem:[%s3 + $0xc0] sm:$0xff]
    %v3945 = vld [vmem:[%s3 + $0xc8] sm:$0xff]
    %v3946 = vld [vmem:[%s3 + $0xd0] sm:$0xff]
    %v3947 = vld [vmem:[%s3 + $0xd8] sm:$0xff]
    %v3948 = vld [vmem:[%s3 + $0xe0] sm:$0xff]
    %v3949 = vld [vmem:[%s3 + $0xe8] sm:$0xff]
    %v3950 = vld [vmem:[%s3 + $0xf0] sm:$0xff]
    %v3951 = vld [vmem:[%s3 + $0xf8] sm:$0xff]
    %v3984 = vunpack.c.l.b16 %v3920
    %v3985 = vunpack.c.h.b16 %v3920
    %v3986 = vunpack.c.l.b16 %v3921
    %v3987 = vunpack.c.h.b16 %v3921
    %v3988 = vunpack.c.l.b16 %v3922
    %v3989 = vunpack.c.h.b16 %v3922
    %v3990 = vunpack.c.l.b16 %v3923
    %v3991 = vunpack.c.h.b16 %v3923
    %v3992 = vunpack.c.l.b16 %v3924
    %v3993 = vunpack.c.h.b16 %v3924
    %v3994 = vunpack.c.l.b16 %v3925
    %v3995 = vunpack.c.h.b16 %v3925
    %v3996 = vunpack.c.l.b16 %v3926
    %v3997 = vunpack.c.h.b16 %v3926
    %v3998 = vunpack.c.l.b16 %v3927
    %v3999 = vunpack.c.h.b16 %v3927
    %v4000 = vunpack.c.l.b16 %v3928
    %v4001 = vunpack.c.h.b16 %v3928
    %v4002 = vunpack.c.l.b16 %v3929
    %v4003 = vunpack.c.h.b16 %v3929
    %v4004 = vunpack.c.l.b16 %v3930
    %v4005 = vunpack.c.h.b16 %v3930
    %v4006 = vunpack.c.l.b16 %v3931
    %v4007 = vunpack.c.h.b16 %v3931
    %v4008 = vunpack.c.l.b16 %v3932
    %v4009 = vunpack.c.h.b16 %v3932
    %v4010 = vunpack.c.l.b16 %v3933
    %v4011 = vunpack.c.h.b16 %v3933
    %v4012 = vunpack.c.l.b16 %v3934
    %v4013 = vunpack.c.h.b16 %v3934
    %v4014 = vunpack.c.l.b16 %v3935
    %v4015 = vunpack.c.h.b16 %v3935
    %v4016 = vunpack.c.l.b16 %v3936
    %v4017 = vunpack.c.h.b16 %v3936
    %v4018 = vunpack.c.l.b16 %v3937
    %v4019 = vunpack.c.h.b16 %v3937
    %v4020 = vunpack.c.l.b16 %v3938
    %v4021 = vunpack.c.h.b16 %v3938
    %v4022 = vunpack.c.l.b16 %v3939
    %v4023 = vunpack.c.h.b16 %v3939
    %v4024 = vunpack.c.l.b16 %v3940
    %v4025 = vunpack.c.h.b16 %v3940
    %v4026 = vunpack.c.l.b16 %v3941
    %v4027 = vunpack.c.h.b16 %v3941
    %v4028 = vunpack.c.l.b16 %v3942
    %v4029 = vunpack.c.h.b16 %v3942
    %v4030 = vunpack.c.l.b16 %v3943
    %v4031 = vunpack.c.h.b16 %v3943
    %v4032 = vunpack.c.l.b16 %v3944
    %v4033 = vunpack.c.h.b16 %v3944
    %v4034 = vunpack.c.l.b16 %v3945
    %v4035 = vunpack.c.h.b16 %v3945
    %v4036 = vunpack.c.l.b16 %v3946
    %v4037 = vunpack.c.h.b16 %v3946
    %v4038 = vunpack.c.l.b16 %v3947
    %v4039 = vunpack.c.h.b16 %v3947
    %v4040 = vunpack.c.l.b16 %v3948
    %v4041 = vunpack.c.h.b16 %v3948
    %v4042 = vunpack.c.l.b16 %v3949
    %v4043 = vunpack.c.h.b16 %v3949
    %v4044 = vunpack.c.l.b16 %v3950
    %v4045 = vunpack.c.h.b16 %v3950
    %v4046 = vunpack.c.l.b16 %v3951
    %v4047 = vunpack.c.h.b16 %v3951
    %v4048 = vpack.c.b16 %v3988, %v3984
    %v4049 = vpack.c.b16 %v3989, %v3985
    %v4050 = vpack.c.b16 %v3990, %v3986
    %v4051 = vpack.c.b16 %v3991, %v3987
    %v4052 = vpack.c.b16 %v3996, %v3992
    %v4053 = vpack.c.b16 %v3997, %v3993
    %v4054 = vpack.c.b16 %v3998, %v3994
    %v4055 = vpack.c.b16 %v3999, %v3995
    %v4056 = vpack.c.b16 %v4004, %v4000
    %v4057 = vpack.c.b16 %v4005, %v4001
    %v4058 = vpack.c.b16 %v4006, %v4002
    %v4059 = vpack.c.b16 %v4007, %v4003
    %v4060 = vpack.c.b16 %v4012, %v4008
    %v4061 = vpack.c.b16 %v4013, %v4009
    %v4062 = vpack.c.b16 %v4014, %v4010
    %v4063 = vpack.c.b16 %v4015, %v4011
    %v4064 = vpack.c.b16 %v4020, %v4016
    %v4065 = vpack.c.b16 %v4021, %v4017
    %v4066 = vpack.c.b16 %v4022, %v4018
    %v4067 = vpack.c.b16 %v4023, %v4019
    %v4068 = vpack.c.b16 %v4028, %v4024
    %v4069 = vpack.c.b16 %v4029, %v4025
    %v4070 = vpack.c.b16 %v4030, %v4026
    %v4071 = vpack.c.b16 %v4031, %v4027
    %v4072 = vpack.c.b16 %v4036, %v4032
    %v4073 = vpack.c.b16 %v4037, %v4033
    %v4074 = vpack.c.b16 %v4038, %v4034
    %v4075 = vpack.c.b16 %v4039, %v4035
    %v4076 = vpack.c.b16 %v4044, %v4040
    %v4077 = vpack.c.b16 %v4045, %v4041
    %v4078 = vpack.c.b16 %v4046, %v4042
    %v4079 = vpack.c.b16 %v4047, %v4043
    %4112 = vmatprep.subr.bf16.mxu0 %v4049
    %4113 = vmatpush1.bf16.msra.mxu0 %v4048
    %4114 = vmatprep.subr.bf16.mxu0 %v4053
    %4115 = vmatpush1.bf16.msra.mxu0 %v4052
    %4116 = vmatprep.subr.bf16.mxu0 %v4057
    %4117 = vmatpush1.bf16.msra.mxu0 %v4056
    %4118 = vmatprep.subr.bf16.mxu0 %v4061
    %4119 = vmatpush1.bf16.msra.mxu0 %v4060
    %4120 = vmatprep.subr.bf16.mxu0 %v4065
    %4121 = vmatpush1.bf16.msra.mxu0 %v4064
    %4122 = vmatprep.subr.bf16.mxu0 %v4069
    %4123 = vmatpush1.bf16.msra.mxu0 %v4068
    %4124 = vmatprep.subr.bf16.mxu0 %v4073
    %4125 = vmatpush1.bf16.msra.mxu0 %v4072
    %4126 = vmatprep.subr.bf16.mxu0 %v4077
    %4127 = vmatpush1.bf16.msra.mxu0 %v4076
    %4128 = vmatprep.subr.bf16.mxu0 0
    %4129 = vmatpush1.bf16.msra.mxu0 0
    %4130 = vmatprep.subr.bf16.mxu0 0
    %4131 = vmatpush1.bf16.msra.mxu0 0
    %4132 = vmatprep.subr.bf16.mxu0 0
    %4133 = vmatpush1.bf16.msra.mxu0 0
    %4134 = vmatprep.subr.bf16.mxu0 0
    %4135 = vmatpush1.bf16.msra.mxu0 0
    %4136 = vmatprep.subr.bf16.mxu0 0
    %4137 = vmatpush1.bf16.msra.mxu0 0
    %4138 = vmatprep.subr.bf16.mxu0 0
    %4139 = vmatpush1.bf16.msra.mxu0 0
    %4140 = vmatprep.subr.bf16.mxu0 0
    %4141 = vmatpush1.bf16.msra.mxu0 0
    %4142 = vmatprep.subr.bf16.mxu0 0
    %4143 = vmatpush1.bf16.msra.mxu0 0
    %4144 = vmatprep.mubr.bf16.mxu0 0
    %4145 = vmatmul.mubr.bf16.gmra.mrb[0].mxu0 %v3912
    %v4146 = vpop.f32.mrb[0].mxu0
    %v4147 = vadd.f32 0.0, %v4146
    %v4148 = vpop.f32.mrb[0].mxu0
    %v4149 = vadd.f32 0.0, %v4148
    %v4150 = vpop.f32.mrb[0].mxu0
    %v4151 = vadd.f32 0.0, %v4150
    %v4152 = vpop.f32.mrb[0].mxu0
    %v4153 = vadd.f32 0.0, %v4152
    %4154 = vmatprep.mubr.bf16.mxu0 0
    %4155 = vmatmul.mubr.bf16.gmra.mrb[0].mxu0 %v3913
    %v4156 = vpop.f32.mrb[0].mxu0
    %v4157 = vadd.f32 0.0, %v4156
    %v4158 = vpop.f32.mrb[0].mxu0
    %v4159 = vadd.f32 0.0, %v4158
    %v4160 = vpop.f32.mrb[0].mxu0
    %v4161 = vadd.f32 0.0, %v4160
    %v4162 = vpop.f32.mrb[0].mxu0
    %v4163 = vadd.f32 0.0, %v4162
    %4164 = vmatprep.mubr.bf16.mxu0 0
    %4165 = vmatmul.mubr.bf16.gmra.mrb[0].mxu0 %v3914
    %v4166 = vpop.f32.mrb[0].mxu0
    %v4167 = vadd.f32 0.0, %v4166
    %v4168 = vpop.f32.mrb[0].mxu0
    %v4169 = vadd.f32 0.0, %v4168
    %v4170 = vpop.f32.mrb[0].mxu0
    %v4171 = vadd.f32 0.0, %v4170
    %v4172 = vpop.f32.mrb[0].mxu0
    %v4173 = vadd.f32 0.0, %v4172
    %4174 = vmatprep.mubr.bf16.mxu0 0
    %4175 = vmatmul.mubr.bf16.gmra.mrb[0].mxu0 %v3915
    %v4176 = vpop.f32.mrb[0].mxu0
    %v4177 = vadd.f32 0.0, %v4176
    %v4178 = vpop.f32.mrb[0].mxu0
    %v4179 = vadd.f32 0.0, %v4178
    %v4180 = vpop.f32.mrb[0].mxu0
    %v4181 = vadd.f32 0.0, %v4180
    %v4182 = vpop.f32.mrb[0].mxu0
    %v4183 = vadd.f32 0.0, %v4182
    %4184 = vmatprep.mubr.bf16.mxu0 0
    %4185 = vmatmul.mubr.bf16.gmra.mrb[0].mxu0 %v3916
    %v4186 = vpop.f32.mrb[0].mxu0
    %v4187 = vadd.f32 0.0, %v4186
    %v4188 = vpop.f32.mrb[0].mxu0
    %v4189 = vadd.f32 0.0, %v4188
    %v4190 = vpop.f32.mrb[0].mxu0
    %v4191 = vadd.f32 0.0, %v4190
    %v4192 = vpop.f32.mrb[0].mxu0
    %v4193 = vadd.f32 0.0, %v4192
    %4194 = vmatprep.mubr.bf16.mxu0 0
    %4195 = vmatmul.mubr.bf16.gmra.mrb[0].mxu0 %v3917
    %v4196 = vpop.f32.mrb[0].mxu0
    %v4197 = vadd.f32 0.0, %v4196
    %v4198 = vpop.f32.mrb[0].mxu0
    %v4199 = vadd.f32 0.0, %v4198
    %v4200 = vpop.f32.mrb[0].mxu0
    %v4201 = vadd.f32 0.0, %v4200
    %v4202 = vpop.f32.mrb[0].mxu0
    %v4203 = vadd.f32 0.0, %v4202
    %4204 = vmatprep.mubr.bf16.mxu0 0
    %4205 = vmatmul.mubr.bf16.gmra.mrb[0].mxu0 %v3918
    %v4206 = vpop.f32.mrb[0].mxu0
    %v4207 = vadd.f32 0.0, %v4206
    %v4208 = vpop.f32.mrb[0].mxu0
    %v4209 = vadd.f32 0.0, %v4208
    %v4210 = vpop.f32.mrb[0].mxu0
    %v4211 = vadd.f32 0.0, %v4210
    %v4212 = vpop.f32.mrb[0].mxu0
    %v4213 = vadd.f32 0.0, %v4212
    %4214 = vmatprep.mubr.bf16.mxu0 0
    %4215 = vmatmul.mubr.bf16.gmra.mrb[0].mxu0 %v3919
    %v4216 = vpop.f32.mrb[0].mxu0
    %v4217 = vadd.f32 0.0, %v4216
    %v4218 = vpop.f32.mrb[0].mxu0
    %v4219 = vadd.f32 0.0, %v4218
    %v4220 = vpop.f32.mrb[0].mxu0
    %v4221 = vadd.f32 0.0, %v4220
    %v4222 = vpop.f32.mrb[0].mxu0
    %v4223 = vadd.f32 0.0, %v4222
    %4224 = vdwg.mxu0
    %4225 = vmatprep.subr.bf16.mxu0 %v4051
    %4226 = vmatpush1.bf16.msra.mxu0 %v4050
    %4227 = vmatprep.subr.bf16.mxu0 %v4055
    %4228 = vmatpush1.bf16.msra.mxu0 %v4054
    %4229 = vmatprep.subr.bf16.mxu0 %v4059
    %4230 = vmatpush1.bf16.msra.mxu0 %v4058
    %4231 = vmatprep.subr.bf16.mxu0 %v4063
    %4232 = vmatpush1.bf16.msra.mxu0 %v4062
    %4233 = vmatprep.subr.bf16.mxu0 %v4067
    %4234 = vmatpush1.bf16.msra.mxu0 %v4066
    %4235 = vmatprep.subr.bf16.mxu0 %v4071
    %4236 = vmatpush1.bf16.msra.mxu0 %v4070
    %4237 = vmatprep.subr.bf16.mxu0 %v4075
    %4238 = vmatpush1.bf16.msra.mxu0 %v4074
    %4239 = vmatprep.subr.bf16.mxu0 %v4079
    %4240 = vmatpush1.bf16.msra.mxu0 %v4078
    %4241 = vmatprep.subr.bf16.mxu0 0
    %4242 = vmatpush1.bf16.msra.mxu0 0
    %4243 = vmatprep.subr.bf16.mxu0 0
    %4244 = vmatpush1.bf16.msra.mxu0 0
    %4245 = vmatprep.subr.bf16.mxu0 0
    %4246 = vmatpush1.bf16.msra.mxu0 0
    %4247 = vmatprep.subr.bf16.mxu0 0
    %4248 = vmatpush1.bf16.msra.mxu0 0
    %4249 = vmatprep.subr.bf16.mxu0 0
    %4250 = vmatpush1.bf16.msra.mxu0 0
    %4251 = vmatprep.subr.bf16.mxu0 0
    %4252 = vmatpush1.bf16.msra.mxu0 0
    %4253 = vmatprep.subr.bf16.mxu0 0
    %4254 = vmatpush1.bf16.msra.mxu0 0
    %4255 = vmatprep.subr.bf16.mxu0 0
    %4256 = vmatpush1.bf16.msra.mxu0 0
    %4257 = vmatprep.mubr.bf16.mxu0 0
    %4258 = vmatmul.mubr.bf16.gmra.mrb[0].mxu0 %v3912
    %v4259 = vpop.f32.mrb[0].mxu0
    %v4260 = vadd.f32 0.0, %v4259
    %v4261 = vpop.f32.mrb[0].mxu0
    %v4262 = vadd.f32 0.0, %v4261
    %v4263 = vpop.f32.mrb[0].mxu0
    %v4264 = vadd.f32 0.0, %v4263
    %v4265 = vpop.f32.mrb[0].mxu0
    %v4266 = vadd.f32 0.0, %v4265
    %4267 = vmatprep.mubr.bf16.mxu0 0
    %4268 = vmatmul.mubr.bf16.gmra.mrb[0].mxu0 %v3913
    %v4269 = vpop.f32.mrb[0].mxu0
    %v4270 = vadd.f32 0.0, %v4269
    %v4271 = vpop.f32.mrb[0].mxu0
    %v4272 = vadd.f32 0.0, %v4271
    %v4273 = vpop.f32.mrb[0].mxu0
    %v4274 = vadd.f32 0.0, %v4273
    %v4275 = vpop.f32.mrb[0].mxu0
    %v4276 = vadd.f32 0.0, %v4275
    %4277 = vmatprep.mubr.bf16.mxu0 0
    %4278 = vmatmul.mubr.bf16.gmra.mrb[0].mxu0 %v3914
    %v4279 = vpop.f32.mrb[0].mxu0
    %v4280 = vadd.f32 0.0, %v4279
    %v4281 = vpop.f32.mrb[0].mxu0
    %v4282 = vadd.f32 0.0, %v4281
    %v4283 = vpop.f32.mrb[0].mxu0
    %v4284 = vadd.f32 0.0, %v4283
    %v4285 = vpop.f32.mrb[0].mxu0
    %v4286 = vadd.f32 0.0, %v4285
    %4287 = vmatprep.mubr.bf16.mxu0 0
    %4288 = vmatmul.mubr.bf16.gmra.mrb[0].mxu0 %v3915
    %v4289 = vpop.f32.mrb[0].mxu0
    %v4290 = vadd.f32 0.0, %v4289
    %v4291 = vpop.f32.mrb[0].mxu0
    %v4292 = vadd.f32 0.0, %v4291
    %v4293 = vpop.f32.mrb[0].mxu0
    %v4294 = vadd.f32 0.0, %v4293
    %v4295 = vpop.f32.mrb[0].mxu0
    %v4296 = vadd.f32 0.0, %v4295
    %4297 = vmatprep.mubr.bf16.mxu0 0
    %4298 = vmatmul.mubr.bf16.gmra.mrb[0].mxu0 %v3916
    %v4299 = vpop.f32.mrb[0].mxu0
    %v4300 = vadd.f32 0.0, %v4299
    %v4301 = vpop.f32.mrb[0].mxu0
    %v4302 = vadd.f32 0.0, %v4301
    %v4303 = vpop.f32.mrb[0].mxu0
    %v4304 = vadd.f32 0.0, %v4303
    %v4305 = vpop.f32.mrb[0].mxu0
    %v4306 = vadd.f32 0.0, %v4305
    %4307 = vmatprep.mubr.bf16.mxu0 0
    %4308 = vmatmul.mubr.bf16.gmra.mrb[0].mxu0 %v3917
    %v4309 = vpop.f32.mrb[0].mxu0
    %v4310 = vadd.f32 0.0, %v4309
    %v4311 = vpop.f32.mrb[0].mxu0
    %v4312 = vadd.f32 0.0, %v4311
    %v4313 = vpop.f32.mrb[0].mxu0
    %v4314 = vadd.f32 0.0, %v4313
    %v4315 = vpop.f32.mrb[0].mxu0
    %v4316 = vadd.f32 0.0, %v4315
    %4317 = vmatprep.mubr.bf16.mxu0 0
    %4318 = vmatmul.mubr.bf16.gmra.mrb[0].mxu0 %v3918
    %v4319 = vpop.f32.mrb[0].mxu0
    %v4320 = vadd.f32 0.0, %v4319
    %v4321 = vpop.f32.mrb[0].mxu0
    %v4322 = vadd.f32 0.0, %v4321
    %v4323 = vpop.f32.mrb[0].mxu0
    %v4324 = vadd.f32 0.0, %v4323
    %v4325 = vpop.f32.mrb[0].mxu0
    %v4326 = vadd.f32 0.0, %v4325
    %4327 = vmatprep.mubr.bf16.mxu0 0
    %4328 = vmatmul.mubr.bf16.gmra.mrb[0].mxu0 %v3919
    %v4329 = vpop.f32.mrb[0].mxu0
    %v4330 = vadd.f32 0.0, %v4329
    %v4331 = vpop.f32.mrb[0].mxu0
    %v4332 = vadd.f32 0.0, %v4331
    %v4333 = vpop.f32.mrb[0].mxu0
    %v4334 = vadd.f32 0.0, %v4333
    %v4335 = vpop.f32.mrb[0].mxu0
    %v4336 = vadd.f32 0.0, %v4335
    %4337 = vdwg.mxu0
    %v4338 = vxor.u32 %v4147, 2147483648
    %v4339 = vxor.u32 %v4149, 2147483648
    %v4340 = vxor.u32 %v4151, 2147483648
    %v4341 = vxor.u32 %v4153, 2147483648
    %v4342 = vxor.u32 %v4157, 2147483648
    %v4343 = vxor.u32 %v4159, 2147483648
    %v4344 = vxor.u32 %v4161, 2147483648
    %v4345 = vxor.u32 %v4163, 2147483648
    %v4346 = vxor.u32 %v4167, 2147483648
    %v4347 = vxor.u32 %v4169, 2147483648
    %v4348 = vxor.u32 %v4171, 2147483648
    %v4349 = vxor.u32 %v4173, 2147483648
    %v4350 = vxor.u32 %v4177, 2147483648
    %v4351 = vxor.u32 %v4179, 2147483648
    %v4352 = vxor.u32 %v4181, 2147483648
    %v4353 = vxor.u32 %v4183, 2147483648
    %v4354 = vxor.u32 %v4187, 2147483648
    %v4355 = vxor.u32 %v4189, 2147483648
    %v4356 = vxor.u32 %v4191, 2147483648
    %v4357 = vxor.u32 %v4193, 2147483648
    %v4358 = vxor.u32 %v4197, 2147483648
    %v4359 = vxor.u32 %v4199, 2147483648
    %v4360 = vxor.u32 %v4201, 2147483648
    %v4361 = vxor.u32 %v4203, 2147483648
    %v4362 = vxor.u32 %v4207, 2147483648
    %v4363 = vxor.u32 %v4209, 2147483648
    %v4364 = vxor.u32 %v4211, 2147483648
    %v4365 = vxor.u32 %v4213, 2147483648
    %v4366 = vxor.u32 %v4217, 2147483648
    %v4367 = vxor.u32 %v4219, 2147483648
    %v4368 = vxor.u32 %v4221, 2147483648
    %v4369 = vxor.u32 %v4223, 2147483648
    %v4370 = vmul.f32 %v4338, 1.442695
    %v4371 = vpow.pop %v4370
    %v4372 = vmul.f32 %v4339, 1.442695
    %v4373 = vpow.pop %v4372
    %v4374 = vmul.f32 %v4340, 1.442695
    %v4375 = vpow.pop %v4374
    %v4376 = vmul.f32 %v4341, 1.442695
    %v4377 = vpow.pop %v4376
    %v4378 = vmul.f32 %v4342, 1.442695
    %v4379 = vpow.pop %v4378
    %v4380 = vmul.f32 %v4343, 1.442695
    %v4381 = vpow.pop %v4380
    %v4382 = vmul.f32 %v4344, 1.442695
    %v4383 = vpow.pop %v4382
    %v4384 = vmul.f32 %v4345, 1.442695
    %v4385 = vpow.pop %v4384
    %v4386 = vmul.f32 %v4346, 1.442695
    %v4387 = vpow.pop %v4386
    %v4388 = vmul.f32 %v4347, 1.442695
    %v4389 = vpow.pop %v4388
    %v4390 = vmul.f32 %v4348, 1.442695
    %v4391 = vpow.pop %v4390
    %v4392 = vmul.f32 %v4349, 1.442695
    %v4393 = vpow.pop %v4392
    %v4394 = vmul.f32 %v4350, 1.442695
    %v4395 = vpow.pop %v4394
    %v4396 = vmul.f32 %v4351, 1.442695
    %v4397 = vpow.pop %v4396
    %v4398 = vmul.f32 %v4352, 1.442695
    %v4399 = vpow.pop %v4398
    %v4400 = vmul.f32 %v4353, 1.442695
    %v4401 = vpow.pop %v4400
    %v4402 = vmul.f32 %v4354, 1.442695
    %v4403 = vpow.pop %v4402
    %v4404 = vmul.f32 %v4355, 1.442695
    %v4405 = vpow.pop %v4404
    %v4406 = vmul.f32 %v4356, 1.442695
    %v4407 = vpow.pop %v4406
    %v4408 = vmul.f32 %v4357, 1.442695
    %v4409 = vpow.pop %v4408
    %v4410 = vmul.f32 %v4358, 1.442695
    %v4411 = vpow.pop %v4410
    %v4412 = vmul.f32 %v4359, 1.442695
    %v4413 = vpow.pop %v4412
    %v4414 = vmul.f32 %v4360, 1.442695
    %v4415 = vpow.pop %v4414
    %v4416 = vmul.f32 %v4361, 1.442695
    %v4417 = vpow.pop %v4416
    %v4418 = vmul.f32 %v4362, 1.442695
    %v4419 = vpow.pop %v4418
    %v4420 = vmul.f32 %v4363, 1.442695
    %v4421 = vpow.pop %v4420
    %v4422 = vmul.f32 %v4364, 1.442695
    %v4423 = vpow.pop %v4422
    %v4424 = vmul.f32 %v4365, 1.442695
    %v4425 = vpow.pop %v4424
    %v4426 = vmul.f32 %v4366, 1.442695
    %v4427 = vpow.pop %v4426
    %v4428 = vmul.f32 %v4367, 1.442695
    %v4429 = vpow.pop %v4428
    %v4430 = vmul.f32 %v4368, 1.442695
    %v4431 = vpow.pop %v4430
    %v4432 = vmul.f32 %v4369, 1.442695
    %v4433 = vpow.pop %v4432
    %v4434 = vadd.f32 %v4371, 1.0
    %v4435 = vadd.f32 %v4373, 1.0
    %v4436 = vadd.f32 %v4375, 1.0
    %v4437 = vadd.f32 %v4377, 1.0
    %v4438 = vadd.f32 %v4379, 1.0
    %v4439 = vadd.f32 %v4381, 1.0
    %v4440 = vadd.f32 %v4383, 1.0
    %v4441 = vadd.f32 %v4385, 1.0
    %v4442 = vadd.f32 %v4387, 1.0
    %v4443 = vadd.f32 %v4389, 1.0
    %v4444 = vadd.f32 %v4391, 1.0
    %v4445 = vadd.f32 %v4393, 1.0
    %v4446 = vadd.f32 %v4395, 1.0
    %v4447 = vadd.f32 %v4397, 1.0
    %v4448 = vadd.f32 %v4399, 1.0
    %v4449 = vadd.f32 %v4401, 1.0
    %v4450 = vadd.f32 %v4403, 1.0
    %v4451 = vadd.f32 %v4405, 1.0
    %v4452 = vadd.f32 %v4407, 1.0
    %v4453 = vadd.f32 %v4409, 1.0
    %v4454 = vadd.f32 %v4411, 1.0
    %v4455 = vadd.f32 %v4413, 1.0
    %v4456 = vadd.f32 %v4415, 1.0
    %v4457 = vadd.f32 %v4417, 1.0
    %v4458 = vadd.f32 %v4419, 1.0
    %v4459 = vadd.f32 %v4421, 1.0
    %v4460 = vadd.f32 %v4423, 1.0
    %v4461 = vadd.f32 %v4425, 1.0
    %v4462 = vadd.f32 %v4427, 1.0
    %v4463 = vadd.f32 %v4429, 1.0
    %v4464 = vadd.f32 %v4431, 1.0
    %v4465 = vadd.f32 %v4433, 1.0
    %v4466 = vrcp.pop %v4434
    %v4467 = vmul.f32 1.0, %v4466
    %v4468 = vrcp.pop %v4435
    %v4469 = vmul.f32 1.0, %v4468
    %v4470 = vrcp.pop %v4436
    %v4471 = vmul.f32 1.0, %v4470
    %v4472 = vrcp.pop %v4437
    %v4473 = vmul.f32 1.0, %v4472
    %v4474 = vrcp.pop %v4438
    %v4475 = vmul.f32 1.0, %v4474
    %v4476 = vrcp.pop %v4439
    %v4477 = vmul.f32 1.0, %v4476
    %v4478 = vrcp.pop %v4440
    %v4479 = vmul.f32 1.0, %v4478
    %v4480 = vrcp.pop %v4441
    %v4481 = vmul.f32 1.0, %v4480
    %v4482 = vrcp.pop %v4442
    %v4483 = vmul.f32 1.0, %v4482
    %v4484 = vrcp.pop %v4443
    %v4485 = vmul.f32 1.0, %v4484
    %v4486 = vrcp.pop %v4444
    %v4487 = vmul.f32 1.0, %v4486
    %v4488 = vrcp.pop %v4445
    %v4489 = vmul.f32 1.0, %v4488
    %v4490 = vrcp.pop %v4446
    %v4491 = vmul.f32 1.0, %v4490
    %v4492 = vrcp.pop %v4447
    %v4493 = vmul.f32 1.0, %v4492
    %v4494 = vrcp.pop %v4448
    %v4495 = vmul.f32 1.0, %v4494
    %v4496 = vrcp.pop %v4449
    %v4497 = vmul.f32 1.0, %v4496
    %v4498 = vrcp.pop %v4450
    %v4499 = vmul.f32 1.0, %v4498
    %v4500 = vrcp.pop %v4451
    %v4501 = vmul.f32 1.0, %v4500
    %v4502 = vrcp.pop %v4452
    %v4503 = vmul.f32 1.0, %v4502
    %v4504 = vrcp.pop %v4453
    %v4505 = vmul.f32 1.0, %v4504
    %v4506 = vrcp.pop %v4454
    %v4507 = vmul.f32 1.0, %v4506
    %v4508 = vrcp.pop %v4455
    %v4509 = vmul.f32 1.0, %v4508
    %v4510 = vrcp.pop %v4456
    %v4511 = vmul.f32 1.0, %v4510
    %v4512 = vrcp.pop %v4457
    %v4513 = vmul.f32 1.0, %v4512
    %v4514 = vrcp.pop %v4458
    %v4515 = vmul.f32 1.0, %v4514
    %v4516 = vrcp.pop %v4459
    %v4517 = vmul.f32 1.0, %v4516
    %v4518 = vrcp.pop %v4460
    %v4519 = vmul.f32 1.0, %v4518
    %v4520 = vrcp.pop %v4461
    %v4521 = vmul.f32 1.0, %v4520
    %v4522 = vrcp.pop %v4462
    %v4523 = vmul.f32 1.0, %v4522
    %v4524 = vrcp.pop %v4463
    %v4525 = vmul.f32 1.0, %v4524
    %v4526 = vrcp.pop %v4464
    %v4527 = vmul.f32 1.0, %v4526
    %v4528 = vrcp.pop %v4465
    %v4529 = vmul.f32 1.0, %v4528
    %v4530 = vmul.f32 %v4147, %v4467
    %v4531 = vmul.f32 %v4149, %v4469
    %v4532 = vmul.f32 %v4151, %v4471
    %v4533 = vmul.f32 %v4153, %v4473
    %v4534 = vmul.f32 %v4157, %v4475
    %v4535 = vmul.f32 %v4159, %v4477
    %v4536 = vmul.f32 %v4161, %v4479
    %v4537 = vmul.f32 %v4163, %v4481
    %v4538 = vmul.f32 %v4167, %v4483
    %v4539 = vmul.f32 %v4169, %v4485
    %v4540 = vmul.f32 %v4171, %v4487
    %v4541 = vmul.f32 %v4173, %v4489
    %v4542 = vmul.f32 %v4177, %v4491
    %v4543 = vmul.f32 %v4179, %v4493
    %v4544 = vmul.f32 %v4181, %v4495
    %v4545 = vmul.f32 %v4183, %v4497
    %v4546 = vmul.f32 %v4187, %v4499
    %v4547 = vmul.f32 %v4189, %v4501
    %v4548 = vmul.f32 %v4191, %v4503
    %v4549 = vmul.f32 %v4193, %v4505
    %v4550 = vmul.f32 %v4197, %v4507
    %v4551 = vmul.f32 %v4199, %v4509
    %v4552 = vmul.f32 %v4201, %v4511
    %v4553 = vmul.f32 %v4203, %v4513
    %v4554 = vmul.f32 %v4207, %v4515
    %v4555 = vmul.f32 %v4209, %v4517
    %v4556 = vmul.f32 %v4211, %v4519
    %v4557 = vmul.f32 %v4213, %v4521
    %v4558 = vmul.f32 %v4217, %v4523
    %v4559 = vmul.f32 %v4219, %v4525
    %v4560 = vmul.f32 %v4221, %v4527
    %v4561 = vmul.f32 %v4223, %v4529
    %v4562 = vmul.f32 %v4530, %v4260
    %v4563 = vmul.f32 %v4531, %v4262
    %v4564 = vmul.f32 %v4532, %v4264
    %v4565 = vmul.f32 %v4533, %v4266
    %v4566 = vmul.f32 %v4534, %v4270
    %v4567 = vmul.f32 %v4535, %v4272
    %v4568 = vmul.f32 %v4536, %v4274
    %v4569 = vmul.f32 %v4537, %v4276
    %v4570 = vmul.f32 %v4538, %v4280
    %v4571 = vmul.f32 %v4539, %v4282
    %v4572 = vmul.f32 %v4540, %v4284
    %v4573 = vmul.f32 %v4541, %v4286
    %v4574 = vmul.f32 %v4542, %v4290
    %v4575 = vmul.f32 %v4543, %v4292
    %v4576 = vmul.f32 %v4544, %v4294
    %v4577 = vmul.f32 %v4545, %v4296
    %v4578 = vmul.f32 %v4546, %v4300
    %v4579 = vmul.f32 %v4547, %v4302
    %v4580 = vmul.f32 %v4548, %v4304
    %v4581 = vmul.f32 %v4549, %v4306
    %v4582 = vmul.f32 %v4550, %v4310
    %v4583 = vmul.f32 %v4551, %v4312
    %v4584 = vmul.f32 %v4552, %v4314
    %v4585 = vmul.f32 %v4553, %v4316
    %v4586 = vmul.f32 %v4554, %v4320
    %v4587 = vmul.f32 %v4555, %v4322
    %v4588 = vmul.f32 %v4556, %v4324
    %v4589 = vmul.f32 %v4557, %v4326
    %v4590 = vmul.f32 %v4558, %v4330
    %v4591 = vmul.f32 %v4559, %v4332
    %v4592 = vmul.f32 %v4560, %v4334
    %v4593 = vmul.f32 %v4561, %v4336
    %v4594 = vpack.c.bf16 %v4564, %v4562
    %v4595 = vpack.c.bf16 %v4565, %v4563
    %v4596 = vpack.c.bf16 %v4568, %v4566
    %v4597 = vpack.c.bf16 %v4569, %v4567
    %v4598 = vpack.c.bf16 %v4572, %v4570
    %v4599 = vpack.c.bf16 %v4573, %v4571
    %v4600 = vpack.c.bf16 %v4576, %v4574
    %v4601 = vpack.c.bf16 %v4577, %v4575
    %v4602 = vpack.c.bf16 %v4580, %v4578
    %v4603 = vpack.c.bf16 %v4581, %v4579
    %v4604 = vpack.c.bf16 %v4584, %v4582
    %v4605 = vpack.c.bf16 %v4585, %v4583
    %v4606 = vpack.c.bf16 %v4588, %v4586
    %v4607 = vpack.c.bf16 %v4589, %v4587
    %v4608 = vpack.c.bf16 %v4592, %v4590
    %v4609 = vpack.c.bf16 %v4593, %v4591
    %v4610 = vld [vmem:[#allocation5] sm:$0xf]
    %v4611 = vld [vmem:[#allocation5 + $0x4] sm:$0xf]
    %v4612 = vld [vmem:[#allocation5 + $0x8] sm:$0xf]
    %v4613 = vld [vmem:[#allocation5 + $0xc] sm:$0xf]
    %v4614 = vld [vmem:[#allocation5 + $0x10] sm:$0xf]
    %v4615 = vld [vmem:[#allocation5 + $0x14] sm:$0xf]
    %v4616 = vld [vmem:[#allocation5 + $0x18] sm:$0xf]
    %v4617 = vld [vmem:[#allocation5 + $0x1c] sm:$0xf]
    %v4618 = vld [vmem:[#allocation5 + $0x20] sm:$0xf]
    %v4619 = vld [vmem:[#allocation5 + $0x24] sm:$0xf]
    %v4620 = vld [vmem:[#allocation5 + $0x28] sm:$0xf]
    %v4621 = vld [vmem:[#allocation5 + $0x2c] sm:$0xf]
    %v4622 = vld [vmem:[#allocation5 + $0x30] sm:$0xf]
    %v4623 = vld [vmem:[#allocation5 + $0x34] sm:$0xf]
    %v4624 = vld [vmem:[#allocation5 + $0x38] sm:$0xf]
    %v4625 = vld [vmem:[#allocation5 + $0x3c] sm:$0xf]
    %v4626 = vld [vmem:[#allocation5 + $0x40] sm:$0xf]
    %v4627 = vld [vmem:[#allocation5 + $0x44] sm:$0xf]
    %v4628 = vld [vmem:[#allocation5 + $0x48] sm:$0xf]
    %v4629 = vld [vmem:[#allocation5 + $0x4c] sm:$0xf]
    %v4630 = vld [vmem:[#allocation5 + $0x50] sm:$0xf]
    %v4631 = vld [vmem:[#allocation5 + $0x54] sm:$0xf]
    %v4632 = vld [vmem:[#allocation5 + $0x58] sm:$0xf]
    %v4633 = vld [vmem:[#allocation5 + $0x5c] sm:$0xf]
    %v4634 = vld [vmem:[#allocation5 + $0x60] sm:$0xf]
    %v4635 = vld [vmem:[#allocation5 + $0x64] sm:$0xf]
    %v4636 = vld [vmem:[#allocation5 + $0x68] sm:$0xf]
    %v4637 = vld [vmem:[#allocation5 + $0x6c] sm:$0xf]
    %v4638 = vld [vmem:[#allocation5 + $0x70] sm:$0xf]
    %v4639 = vld [vmem:[#allocation5 + $0x74] sm:$0xf]
    %v4640 = vld [vmem:[#allocation5 + $0x78] sm:$0xf]
    %v4641 = vld [vmem:[#allocation5 + $0x7c] sm:$0xf]
    %v4674 = vunpack.c.l.b16 %v4610
    %v4675 = vunpack.c.l.b16 %v4611
    %v4676 = vunpack.c.l.b16 %v4612
    %v4677 = vunpack.c.l.b16 %v4613
    %v4678 = vunpack.c.l.b16 %v4614
    %v4679 = vunpack.c.l.b16 %v4615
    %v4680 = vunpack.c.l.b16 %v4616
    %v4681 = vunpack.c.l.b16 %v4617
    %v4682 = vunpack.c.l.b16 %v4618
    %v4683 = vunpack.c.l.b16 %v4619
    %v4684 = vunpack.c.l.b16 %v4620
    %v4685 = vunpack.c.l.b16 %v4621
    %v4686 = vunpack.c.l.b16 %v4622
    %v4687 = vunpack.c.l.b16 %v4623
    %v4688 = vunpack.c.l.b16 %v4624
    %v4689 = vunpack.c.l.b16 %v4625
    %v4690 = vunpack.c.l.b16 %v4626
    %v4691 = vunpack.c.l.b16 %v4627
    %v4692 = vunpack.c.l.b16 %v4628
    %v4693 = vunpack.c.l.b16 %v4629
    %v4694 = vunpack.c.l.b16 %v4630
    %v4695 = vunpack.c.l.b16 %v4631
    %v4696 = vunpack.c.l.b16 %v4632
    %v4697 = vunpack.c.l.b16 %v4633
    %v4698 = vunpack.c.l.b16 %v4634
    %v4699 = vunpack.c.l.b16 %v4635
    %v4700 = vunpack.c.l.b16 %v4636
    %v4701 = vunpack.c.l.b16 %v4637
    %v4702 = vunpack.c.l.b16 %v4638
    %v4703 = vunpack.c.l.b16 %v4639
    %v4704 = vunpack.c.l.b16 %v4640
    %v4705 = vunpack.c.l.b16 %v4641
    %v4706 = vpack.c.b16 %v4675, %v4674
    %v4707 = vpack.c.b16 %v4677, %v4676
    %v4708 = vpack.c.b16 %v4679, %v4678
    %v4709 = vpack.c.b16 %v4681, %v4680
    %v4710 = vpack.c.b16 %v4683, %v4682
    %v4711 = vpack.c.b16 %v4685, %v4684
    %v4712 = vpack.c.b16 %v4687, %v4686
    %v4713 = vpack.c.b16 %v4689, %v4688
    %v4714 = vpack.c.b16 %v4691, %v4690
    %v4715 = vpack.c.b16 %v4693, %v4692
    %v4716 = vpack.c.b16 %v4695, %v4694
    %v4717 = vpack.c.b16 %v4697, %v4696
    %v4718 = vpack.c.b16 %v4699, %v4698
    %v4719 = vpack.c.b16 %v4701, %v4700
    %v4720 = vpack.c.b16 %v4703, %v4702
    %v4721 = vpack.c.b16 %v4705, %v4704
    %4738 = vmatprep.subr.bf16.mxu0 0
    %4739 = vmatpush1.bf16.msra.mxu0 %v4706
    %4740 = vmatprep.subr.bf16.mxu0 0
    %4741 = vmatpush1.bf16.msra.mxu0 %v4707
    %4742 = vmatprep.subr.bf16.mxu0 0
    %4743 = vmatpush1.bf16.msra.mxu0 %v4708
    %4744 = vmatprep.subr.bf16.mxu0 0
    %4745 = vmatpush1.bf16.msra.mxu0 %v4709
    %4746 = vmatprep.subr.bf16.mxu0 0
    %4747 = vmatpush1.bf16.msra.mxu0 %v4710
    %4748 = vmatprep.subr.bf16.mxu0 0
    %4749 = vmatpush1.bf16.msra.mxu0 %v4711
    %4750 = vmatprep.subr.bf16.mxu0 0
    %4751 = vmatpush1.bf16.msra.mxu0 %v4712
    %4752 = vmatprep.subr.bf16.mxu0 0
    %4753 = vmatpush1.bf16.msra.mxu0 %v4713
    %4754 = vmatprep.subr.bf16.mxu0 0
    %4755 = vmatpush1.bf16.msra.mxu0 %v4714
    %4756 = vmatprep.subr.bf16.mxu0 0
    %4757 = vmatpush1.bf16.msra.mxu0 %v4715
    %4758 = vmatprep.subr.bf16.mxu0 0
    %4759 = vmatpush1.bf16.msra.mxu0 %v4716
    %4760 = vmatprep.subr.bf16.mxu0 0
    %4761 = vmatpush1.bf16.msra.mxu0 %v4717
    %4762 = vmatprep.subr.bf16.mxu0 0
    %4763 = vmatpush1.bf16.msra.mxu0 %v4718
    %4764 = vmatprep.subr.bf16.mxu0 0
    %4765 = vmatpush1.bf16.msra.mxu0 %v4719
    %4766 = vmatprep.subr.bf16.mxu0 0
    %4767 = vmatpush1.bf16.msra.mxu0 %v4720
    %4768 = vmatprep.subr.bf16.mxu0 0
    %4769 = vmatpush1.bf16.msra.mxu0 %v4721
    %4770 = vmatprep.mubr.bf16.mxu0 %v4595
    %4771 = vmatmul.mubr.bf16.gmra.mrb[0].mxu0 %v4594
    %v4772 = vpop.f32.mrb[0].mxu0
    %v4773 = vadd.f32 0.0, %v4772
    %v4774 = vpop.f32.mrb[0].mxu0
    %v4775 = vpop.f32.mrb[0].mxu0
    %v4776 = vadd.f32 0.0, %v4775
    %v4777 = vpop.f32.mrb[0].mxu0
    %4778 = vmatprep.mubr.bf16.mxu0 %v4597
    %4779 = vmatmul.mubr.bf16.gmra.mrb[0].mxu0 %v4596
    %v4780 = vpop.f32.mrb[0].mxu0
    %v4781 = vadd.f32 0.0, %v4780
    %v4782 = vpop.f32.mrb[0].mxu0
    %v4783 = vpop.f32.mrb[0].mxu0
    %v4784 = vadd.f32 0.0, %v4783
    %v4785 = vpop.f32.mrb[0].mxu0
    %4786 = vmatprep.mubr.bf16.mxu0 %v4599
    %4787 = vmatmul.mubr.bf16.gmra.mrb[0].mxu0 %v4598
    %v4788 = vpop.f32.mrb[0].mxu0
    %v4789 = vadd.f32 0.0, %v4788
    %v4790 = vpop.f32.mrb[0].mxu0
    %v4791 = vpop.f32.mrb[0].mxu0
    %v4792 = vadd.f32 0.0, %v4791
    %v4793 = vpop.f32.mrb[0].mxu0
    %4794 = vmatprep.mubr.bf16.mxu0 %v4601
    %4795 = vmatmul.mubr.bf16.gmra.mrb[0].mxu0 %v4600
    %v4796 = vpop.f32.mrb[0].mxu0
    %v4797 = vadd.f32 0.0, %v4796
    %v4798 = vpop.f32.mrb[0].mxu0
    %v4799 = vpop.f32.mrb[0].mxu0
    %v4800 = vadd.f32 0.0, %v4799
    %v4801 = vpop.f32.mrb[0].mxu0
    %4802 = vmatprep.mubr.bf16.mxu0 %v4603
    %4803 = vmatmul.mubr.bf16.gmra.mrb[0].mxu0 %v4602
    %v4804 = vpop.f32.mrb[0].mxu0
    %v4805 = vadd.f32 0.0, %v4804
    %v4806 = vpop.f32.mrb[0].mxu0
    %v4807 = vpop.f32.mrb[0].mxu0
    %v4808 = vadd.f32 0.0, %v4807
    %v4809 = vpop.f32.mrb[0].mxu0
    %4810 = vmatprep.mubr.bf16.mxu0 %v4605
    %4811 = vmatmul.mubr.bf16.gmra.mrb[0].mxu0 %v4604
    %v4812 = vpop.f32.mrb[0].mxu0
    %v4813 = vadd.f32 0.0, %v4812
    %v4814 = vpop.f32.mrb[0].mxu0
    %v4815 = vpop.f32.mrb[0].mxu0
    %v4816 = vadd.f32 0.0, %v4815
    %v4817 = vpop.f32.mrb[0].mxu0
    %4818 = vmatprep.mubr.bf16.mxu0 %v4607
    %4819 = vmatmul.mubr.bf16.gmra.mrb[0].mxu0 %v4606
    %v4820 = vpop.f32.mrb[0].mxu0
    %v4821 = vadd.f32 0.0, %v4820
    %v4822 = vpop.f32.mrb[0].mxu0
    %v4823 = vpop.f32.mrb[0].mxu0
    %v4824 = vadd.f32 0.0, %v4823
    %v4825 = vpop.f32.mrb[0].mxu0
    %4826 = vmatprep.mubr.bf16.mxu0 %v4609
    %4827 = vmatmul.mubr.bf16.gmra.mrb[0].mxu0 %v4608
    %v4828 = vpop.f32.mrb[0].mxu0
    %v4829 = vadd.f32 0.0, %v4828
    %v4830 = vpop.f32.mrb[0].mxu0
    %v4831 = vpop.f32.mrb[0].mxu0
    %v4832 = vadd.f32 0.0, %v4831
    %v4833 = vpop.f32.mrb[0].mxu0
    %4834 = vdwg.mxu0
    %v4835 = vadd.f32 %v3896, %v4773
    %v4836 = vadd.f32 %v3897, %v4776
    %v4837 = vadd.f32 %v3898, %v4781
    %v4838 = vadd.f32 %v3899, %v4784
    %v4839 = vadd.f32 %v3900, %v4789
    %v4840 = vadd.f32 %v3901, %v4792
    %v4841 = vadd.f32 %v3902, %v4797
    %v4842 = vadd.f32 %v3903, %v4800
    %v4843 = vadd.f32 %v3904, %v4805
    %v4844 = vadd.f32 %v3905, %v4808
    %v4845 = vadd.f32 %v3906, %v4813
    %v4846 = vadd.f32 %v3907, %v4816
    %v4847 = vadd.f32 %v3908, %v4821
    %v4848 = vadd.f32 %v3909, %v4824
    %v4849 = vadd.f32 %v3910, %v4829
    %v4850 = vadd.f32 %v3911, %v4832
    %v4851 = vmul.f32 %v4835, %v4835
    %v4852 = vmul.f32 %v4836, %v4836
    %v4853 = vmul.f32 %v4837, %v4837
    %v4854 = vmul.f32 %v4838, %v4838
    %v4855 = vmul.f32 %v4839, %v4839
    %v4856 = vmul.f32 %v4840, %v4840
    %v4857 = vmul.f32 %v4841, %v4841
    %v4858 = vmul.f32 %v4842, %v4842
    %v4859 = vmul.f32 %v4843, %v4843
    %v4860 = vmul.f32 %v4844, %v4844
    %v4861 = vmul.f32 %v4845, %v4845
    %v4862 = vmul.f32 %v4846, %v4846
    %v4863 = vmul.f32 %v4847, %v4847
    %v4864 = vmul.f32 %v4848, %v4848
    %v4865 = vmul.f32 %v4849, %v4849
    %v4866 = vmul.f32 %v4850, %v4850
    %4867 = vadd.xlane.f32.xlu0 %v4851
    %v4868 = vpop.xlane.xlu0 %4867
    %4869 = vadd.xlane.f32.xlu0 %v4852
    %v4870 = vpop.xlane.xlu0 %4869
    %4871 = vadd.xlane.f32.xlu0 %v4853
    %v4872 = vpop.xlane.xlu0 %4871
    %4873 = vadd.xlane.f32.xlu0 %v4854
    %v4874 = vpop.xlane.xlu0 %4873
    %4875 = vadd.xlane.f32.xlu0 %v4855
    %v4876 = vpop.xlane.xlu0 %4875
    %4877 = vadd.xlane.f32.xlu0 %v4856
    %v4878 = vpop.xlane.xlu0 %4877
    %4879 = vadd.xlane.f32.xlu0 %v4857
    %v4880 = vpop.xlane.xlu0 %4879
    %4881 = vadd.xlane.f32.xlu0 %v4858
    %v4882 = vpop.xlane.xlu0 %4881
    %4883 = vadd.xlane.f32.xlu0 %v4859
    %v4884 = vpop.xlane.xlu0 %4883
    %4885 = vadd.xlane.f32.xlu0 %v4860
    %v4886 = vpop.xlane.xlu0 %4885
    %4887 = vadd.xlane.f32.xlu0 %v4861
    %v4888 = vpop.xlane.xlu0 %4887
    %4889 = vadd.xlane.f32.xlu0 %v4862
    %v4890 = vpop.xlane.xlu0 %4889
    %4891 = vadd.xlane.f32.xlu0 %v4863
    %v4892 = vpop.xlane.xlu0 %4891
    %4893 = vadd.xlane.f32.xlu0 %v4864
    %v4894 = vpop.xlane.xlu0 %4893
    %4895 = vadd.xlane.f32.xlu0 %v4865
    %v4896 = vpop.xlane.xlu0 %4895
    %4897 = vadd.xlane.f32.xlu0 %v4866
    %v4898 = vpop.xlane.xlu0 %4897
    %v4899 = vmul.f32 %v4868, %v3824
    %v4900 = vmul.f32 %v4870, %v3824
    %v4901 = vmul.f32 %v4872, %v3824
    %v4902 = vmul.f32 %v4874, %v3824
    %v4903 = vmul.f32 %v4876, %v3824
    %v4904 = vmul.f32 %v4878, %v3824
    %v4905 = vmul.f32 %v4880, %v3824
    %v4906 = vmul.f32 %v4882, %v3824
    %v4907 = vmul.f32 %v4884, %v3824
    %v4908 = vmul.f32 %v4886, %v3824
    %v4909 = vmul.f32 %v4888, %v3824
    %v4910 = vmul.f32 %v4890, %v3824
    %v4911 = vmul.f32 %v4892, %v3824
    %v4912 = vmul.f32 %v4894, %v3824
    %v4913 = vmul.f32 %v4896, %v3824
    %v4914 = vmul.f32 %v4898, %v3824
    %v4915 = vadd.f32 %v4899, 1e-06
    %v4916 = vadd.f32 %v4900, 1e-06
    %v4917 = vadd.f32 %v4901, 1e-06
    %v4918 = vadd.f32 %v4902, 1e-06
    %v4919 = vadd.f32 %v4903, 1e-06
    %v4920 = vadd.f32 %v4904, 1e-06
    %v4921 = vadd.f32 %v4905, 1e-06
    %v4922 = vadd.f32 %v4906, 1e-06
    %v4923 = vadd.f32 %v4907, 1e-06
    %v4924 = vadd.f32 %v4908, 1e-06
    %v4925 = vadd.f32 %v4909, 1e-06
    %v4926 = vadd.f32 %v4910, 1e-06
    %v4927 = vadd.f32 %v4911, 1e-06
    %v4928 = vadd.f32 %v4912, 1e-06
    %v4929 = vadd.f32 %v4913, 1e-06
    %v4930 = vadd.f32 %v4914, 1e-06
    %v4931 = vrsqrt.pop %v4915
    %v4932 = vrsqrt.pop %v4916
    %v4933 = vrsqrt.pop %v4917
    %v4934 = vrsqrt.pop %v4918
    %v4935 = vrsqrt.pop %v4919
    %v4936 = vrsqrt.pop %v4920
    %v4937 = vrsqrt.pop %v4921
    %v4938 = vrsqrt.pop %v4922
    %v4939 = vrsqrt.pop %v4923
    %v4940 = vrsqrt.pop %v4924
    %v4941 = vrsqrt.pop %v4925
    %v4942 = vrsqrt.pop %v4926
    %v4943 = vrsqrt.pop %v4927
    %v4944 = vrsqrt.pop %v4928
    %v4945 = vrsqrt.pop %v4929
    %v4946 = vrsqrt.pop %v4930
    %v4947 = vmul.f32 %v4835, %v4931
    %v4948 = vmul.f32 %v4836, %v4932
    %v4949 = vmul.f32 %v4837, %v4933
    %v4950 = vmul.f32 %v4838, %v4934
    %v4951 = vmul.f32 %v4839, %v4935
    %v4952 = vmul.f32 %v4840, %v4936
    %v4953 = vmul.f32 %v4841, %v4937
    %v4954 = vmul.f32 %v4842, %v4938
    %v4955 = vmul.f32 %v4843, %v4939
    %v4956 = vmul.f32 %v4844, %v4940
    %v4957 = vmul.f32 %v4845, %v4941
    %v4958 = vmul.f32 %v4846, %v4942
    %v4959 = vmul.f32 %v4847, %v4943
    %v4960 = vmul.f32 %v4848, %v4944
    %v4961 = vmul.f32 %v4849, %v4945
    %v4962 = vmul.f32 %v4850, %v4946
    %v4963 = vld [vmem:[%s6] sm:$0x1]
    %v4965 = vlaneseq
    %v4966 = vshrl.u32 %v4965, 7
    %v4967 = vsub.s32 0, %v4966
    %v4968 = vrot.slane %v4963, %v4967
    %v4970 = vmul.f32 %v4947, %v4968
    %v4971 = vmul.f32 %v4948, %v4968
    %v4972 = vmul.f32 %v4949, %v4968
    %v4973 = vmul.f32 %v4950, %v4968
    %v4974 = vmul.f32 %v4951, %v4968
    %v4975 = vmul.f32 %v4952, %v4968
    %v4976 = vmul.f32 %v4953, %v4968
    %v4977 = vmul.f32 %v4954, %v4968
    %v4978 = vmul.f32 %v4955, %v4968
    %v4979 = vmul.f32 %v4956, %v4968
    %v4980 = vmul.f32 %v4957, %v4968
    %v4981 = vmul.f32 %v4958, %v4968
    %v4982 = vmul.f32 %v4959, %v4968
    %v4983 = vmul.f32 %v4960, %v4968
    %v4984 = vmul.f32 %v4961, %v4968
    %v4985 = vmul.f32 %v4962, %v4968
    %4986 = vst [vmem:[#allocation8] sm:$0xff] %v4970
    %4987 = vst [vmem:[#allocation8 + $0x8] sm:$0xff] %v4971
    %4988 = vst [vmem:[#allocation8 + $0x10] sm:$0xff] %v4972
    %4989 = vst [vmem:[#allocation8 + $0x18] sm:$0xff] %v4973
    %4990 = vst [vmem:[#allocation8 + $0x20] sm:$0xff] %v4974
    %4991 = vst [vmem:[#allocation8 + $0x28] sm:$0xff] %v4975
    %4992 = vst [vmem:[#allocation8 + $0x30] sm:$0xff] %v4976
    %4993 = vst [vmem:[#allocation8 + $0x38] sm:$0xff] %v4977
    %4994 = vst [vmem:[#allocation8 + $0x40] sm:$0xff] %v4978
    %4995 = vst [vmem:[#allocation8 + $0x48] sm:$0xff] %v4979
    %4996 = vst [vmem:[#allocation8 + $0x50] sm:$0xff] %v4980
    %4997 = vst [vmem:[#allocation8 + $0x58] sm:$0xff] %v4981
    %4998 = vst [vmem:[#allocation8 + $0x60] sm:$0xff] %v4982
    %4999 = vst [vmem:[#allocation8 + $0x68] sm:$0xff] %v4983
    %5000 = vst [vmem:[#allocation8 + $0x70] sm:$0xff] %v4984
    %5001 = vst [vmem:[#allocation8 + $0x78] sm:$0xff] %v4985
    // Predicated region
    $region50: #{tts_adapter_layer.1} parent=1 // pred_check
      _
    $region51: #{tts_adapter_layer.1} parent=1 // pred_check_branch
      %5003 = sbr.rel (0) target = $region53
    $region52: #{tts_adapter_layer.1} parent=1 // pred_region
      %s5005 = ssub.s32 2048, 2048
      %5006 = vsyncadd [#allocation4], %s5005
      %s5007 = sshll.u32 [#allocation8], 4
      %s5008 = int_to_ptr.vmem [resolvable:$true] %s5007
      %5013 = dma.vmem_to_hbm [thread:$0]  %s5008, 2048, %s9, [#allocation4], 128, 128, 8
    $region53: #{tts_adapter_layer.1} parent=1 // pred_fallthru
      _
    // Predicated region
    $region54: #{tts_adapter_layer.1} parent=1 // pred_check
      _
    $region55: #{tts_adapter_layer.1} parent=1 // pred_check_branch
      %5015 = sbr.rel (0) target = $region57
    $region56: #{tts_adapter_layer.1} parent=1 // pred_region
      %5016 = dma.done [#allocation4], 2048
    $region57: #{tts_adapter_layer.1} parent=1 // pred_fallthru
      _
    %5017 = vsyncpa [#allocation3], 1
    %5018 = vsyncpa [#allocation6], 1
    %5019 = vsyncpa [#allocation4], 1

</llo_original>
